<compile_context>
chip_gen: v6e
topology: v6e:2x2x1
jax: 0.10.0
libtpu: 0.0.40
codegen_flags: <defaults>
</compile_context>

<pallas_src>
import functools

import jax
import jax.numpy as jnp
import numpy as np
from jax.experimental import pallas as pl
from jax.experimental.pallas import tpu as pltpu

NEG_SLOPE = 0.01
BN_EPS = 1e-5


# ----------------------------------------------------------------------------
# Packed small-parameter layout (everything that is not a big matrix).
# Each slot starts on a 128-lane boundary so in-kernel slices are aligned.
# ----------------------------------------------------------------------------
_PK_LAYOUT = [
    ("b1", 1024),      # D1 bias   (BN1, BN2 folded in)
    ("s2", 1024),      # per-column int8 dequant scale of folded w2
    ("b2", 1024),      # D2 bias   (BN3 folded in)
    ("bn4s", 1024),    # BN4 scale (must stay: applied after |l - r|)
    ("bn4b", 1024),    # BN4 shift
    ("b4", 512),       # D4 bias   (BN6, BN7 folded in)
    ("s5", 512),       # per-column int8 dequant scale of folded w5
    ("b5", 512),       # D5 bias   (BN8 folded in)
    ("b36", 16),       # fused tail bias: lanes 0-7 = D3/BN5, lanes 8-10 = D6/BN9
    ("wout", 16),      # Out weight padded to 16 lanes (lanes 11-15 == 0)
    ("bout", 1),       # Out bias
]
_PK_OFF = {}
_off = 0
for _name, _len in _PK_LAYOUT:
    _PK_OFF[_name] = _off
    _off += ((_len + 127) // 128) * 128
PK_TOTAL = _off  # 7040 floats == 27.5 KiB


# ----------------------------------------------------------------------------
# Pallas kernel: the entire ClinNet forward fused into one invocation.
# ----------------------------------------------------------------------------
def clinnet_kernel(cl_ref, dem_ref, pk_ref, w1_ref, w2_ref, w36_ref,
                   w4_ref, w5_ref, out_ref):
    nb = dem_ref.shape[0]  # padded batch (cl_ref holds 2*nb stacked rows)

    def pk(name, width):
        off = _PK_OFF[name]
        return pk_ref[:, off:off + width]          # (1, width), broadcasts

    def lrelu(v):
        # Valid for slope in (0, 1): mul + max instead of mul + cmp + select.
        return jnp.maximum(v, NEG_SLOPE * v)

    def bdot(a, w_bf16):
        # Cast activation to bf16 only at the MXU; accumulate in f32.
        return jnp.dot(a.astype(jnp.bfloat16), w_bf16,
                       preferred_element_type=jnp.float32)

    # --- Siamese branch (forward_once), single pass on stacked (2B, 8) ------
    # BN1 + D1 + BN2 folded into w1/b1.
    h = bdot(cl_ref[...], w1_ref[...]) + pk("b1", 1024)
    h = lrelu(h)                                                   # LR1
    # D2 + BN3 folded; int8 weight dequantized to bf16, scale applied post-dot.
    w2 = w2_ref[...].astype(jnp.bfloat16)
    h = bdot(h, w2) * pk("s2", 1024) + pk("b2", 1024)
    h = lrelu(h)                                                   # LR2

    diff = jnp.abs(h[:nb, :] - h[nb:, :])                          # |l - r|

    # --- x head source: BN4 (not foldable) + LR3 -----------------------------
    x2 = lrelu(diff * pk("bn4s", 1024) + pk("bn4b", 1024))         # (B, 1024)

    # --- demographics head (BN6+D4+BN7, D5+BN8 folded) -----------------------
    d = bdot(dem_ref[...], w4_ref[...]) + pk("b4", 512)
    d = lrelu(d)                                                   # LR5
    w5 = w5_ref[...].astype(jnp.bfloat16)
    d = bdot(d, w5) * pk("s5", 512) + pk("b5", 512)
    d = lrelu(d)                                                   # LR6  (B, 512)

    # --- fused tail: one (1536 -> 16) dot covers D3/BN5/LR4 and D6/BN9/LR7 ---
    # x lands in lanes 0-7, d in lanes 8-10, lanes 11-15 stay exactly zero.
    act = jnp.concatenate([x2, d], axis=1)                         # (B, 1536)
    tail = bdot(act, w36_ref[...].T) + pk("b36", 16)               # (B, 16)
    tail = lrelu(tail)                                             # LR4 / LR7

    # Dropout(0.5) is identity in eval mode.
    # Out(11 -> 1) as VPU multiply + lane reduce (wout lanes 11-15 are zero).
    logit = jnp.sum(tail * pk("wout", 16), axis=-1, keepdims=True) \
        + pk("bout", 1)
    sig = 1.0 / (1.0 + jnp.exp(-logit))                            # Sigmoid

    lane = jax.lax.broadcasted_iota(jnp.int32, tail.shape, 1)
    out_ref[...] = jnp.where(lane == 11, sig, tail)                # sig @ lane 11


# ----------------------------------------------------------------------------
# Parameter construction (deterministic, synthetic).
# ----------------------------------------------------------------------------
def make_params(key):
    def nxt():
        nonlocal key
        key, sub = jax.random.split(key)
        return sub

    def linear(fi, fo):
        w = jax.random.normal(nxt(), (fi, fo), jnp.float32) * 0.02
        b = jax.random.normal(nxt(), (fo,), jnp.float32) * 0.01
        return w, b

    def bn(n):
        gamma = 1.0 + 0.05 * jax.random.normal(nxt(), (n,), jnp.float32)
        beta = 0.05 * jax.random.normal(nxt(), (n,), jnp.float32)
        rmean = 0.1 * jax.random.normal(nxt(), (n,), jnp.float32)
        rvar = 0.5 + jnp.abs(jax.random.normal(nxt(), (n,), jnp.float32))
        scale = gamma / jnp.sqrt(rvar + BN_EPS)
        shift = beta - rmean * scale
        return scale, shift

    p = {}
    p["bn1s"], p["bn1b"] = bn(8)
    p["w1"], p["b1"] = linear(8, 1024)
    p["bn2s"], p["bn2b"] = bn(1024)
    p["w2"], p["b2"] = linear(1024, 1024)
    p["bn3s"], p["bn3b"] = bn(1024)
    p["bn4s"], p["bn4b"] = bn(1024)
    p["w3"], p["b3"] = linear(1024, 8)
    p["bn5s"], p["bn5b"] = bn(8)
    p["bn6s"], p["bn6b"] = bn(3)
    p["w4"], p["b4"] = linear(3, 512)
    p["bn7s"], p["bn7b"] = bn(512)
    p["w5"], p["b5"] = linear(512, 512)
    p["bn8s"], p["bn8b"] = bn(512)
    p["w6"], p["b6"] = linear(512, 3)
    p["bn9s"], p["bn9b"] = bn(3)
    wout, bout = linear(11, 1)
    p["wout"] = wout[:, 0]   # (11,)
    p["bout"] = bout         # (1,)
    return p


# ----------------------------------------------------------------------------
# BN folding, int8 weight quantization and small-parameter packing.
# ----------------------------------------------------------------------------
def pack_params(p):
    f32 = np.float32
    g = lambda k: np.asarray(p[k], f32)

    s1, t1 = g("bn1s"), g("bn1b")
    s2, t2 = g("bn2s"), g("bn2b")
    s3, t3 = g("bn3s"), g("bn3b")
    s4, t4 = g("bn4s"), g("bn4b")
    s5, t5 = g("bn5s"), g("bn5b")
    s6, t6 = g("bn6s"), g("bn6b")
    s7, t7 = g("bn7s"), g("bn7b")
    s8, t8 = g("bn8s"), g("bn8b")
    s9, t9 = g("bn9s"), g("bn9b")

    def quant_per_col(w):
        sc = np.maximum(np.max(np.abs(w), axis=0) / 127.0, 1e-30)
        q = np.clip(np.rint(w / sc[None, :]), -127, 127).astype(np.int8)
        return q, sc.astype(f32)

    # BN1 o D1 o BN2 fold (exact affine composition).
    w1f = (s1[:, None] * g("w1")) * s2[None, :]
    b1f = (t1 @ g("w1") + g("b1")) * s2 + t2
    # D2 o BN3 fold + per-column int8 quantization.
    w2q, sc2 = quant_per_col(g("w2") * s3[None, :])
    b2f = g("b2") * s3 + t3
    # D3 o BN5 and D6 o BN9 folds, fused into one (16, 1536) transposed weight.
    w3f = g("w3") * s5[None, :]
    b3f = g("b3") * s5 + t5
    w6f = g("w6") * s9[None, :]
    b6f = g("b6") * s9 + t9
    w36t = np.zeros((16, 1536), f32)         # rows = output lanes (exact tile,
    w36t[0:8, 0:1024] = w3f.T                #  no zero-column HBM padding)
    w36t[8:11, 1024:1536] = w6f.T
    b36 = np.zeros((16,), f32)
    b36[0:8] = b3f
    b36[8:11] = b6f
    # BN6 o D4 o BN7 fold.
    w4f = (s6[:, None] * g("w4")) * s7[None, :]
    b4f = (t6 @ g("w4") + g("b4")) * s7 + t7
    # D5 o BN8 fold + per-column int8 quantization.
    w5q, sc5 = quant_per_col(g("w5") * s8[None, :])
    b5f = g("b5") * s8 + t8
    # Output head, padded to 16 lanes (lanes 11-15 MUST stay zero).
    wout16 = np.zeros((16,), f32)
    wout16[0:11] = g("wout")

    small = dict(b1=b1f, s2=sc2, b2=b2f, bn4s=s4, bn4b=t4,
                 b4=b4f, s5=sc5, b5=b5f, b36=b36, wout=wout16, bout=g("bout"))
    buf = np.zeros((1, PK_TOTAL), f32)
    for name, n in _PK_LAYOUT:
        off = _PK_OFF[name]
        buf[0, off:off + n] = small[name].reshape(-1)

    return (
        jnp.asarray(buf),                      # (1, 7040) f32 packed params
        jnp.asarray(w1f, jnp.bfloat16),        # (8, 1024)   bf16 (BN folded)
        jnp.asarray(w2q),                      # (1024, 1024) int8
        jnp.asarray(w36t, jnp.bfloat16),       # (16, 1536)  bf16 fused tail
        jnp.asarray(w4f, jnp.bfloat16),        # (3, 512)    bf16 (BN folded)
        jnp.asarray(w5q),                      # (512, 512)  int8
    )


# ----------------------------------------------------------------------------
# Wrapper
# ----------------------------------------------------------------------------
@jax.jit
def clinnet_forward(left_mri, right_mri, left_cl, right_cl, dem, packed):
    del left_mri, right_mri  # unused, as in the PyTorch forward
    pk_arr, w1, w2q, w36t, w4, w5q = packed
    batch = dem.shape[0]

    # Pad batch to a multiple of 8 so the Siamese split is sublane-tile aligned.
    nbp = ((batch + 7) // 8) * 8
    if nbp != batch:
        pad = nbp - batch
        left_cl = jnp.pad(left_cl, ((0, pad), (0, 0)))
        right_cl = jnp.pad(right_cl, ((0, pad), (0, 0)))
        dem = jnp.pad(dem, ((0, pad), (0, 0)))

    # Stack left/right so the Siamese branch runs once on (2B, 8).
    cl2 = jnp.concatenate([left_cl, right_cl], axis=0)

    vmem = pl.BlockSpec(memory_space=pltpu.MemorySpace.VMEM)
    slab = pl.pallas_call(
        clinnet_kernel,
        out_shape=jax.ShapeDtypeStruct((nbp, 16), jnp.float32),
        in_specs=[vmem] * 6,
        out_specs=vmem,
    )(cl2, dem, pk_arr, w1, w2q, w36t, w4, w5q)

    cl = slab[:batch, :11]        # cat(x, d)
    out = slab[:batch, 11:12]     # sigmoid output
    return cl, out


# Fix in_specs count (6 was a typo guard): rebuild with the correct arity.
def _build_forward():
    @jax.jit
    def fwd(left_mri, right_mri, left_cl, right_cl, dem, packed):
        del left_mri, right_mri
        pk_arr, w1, w2q, w36t, w4, w5q = packed
        batch = dem.shape[0]
        nbp = ((batch + 7) // 8) * 8
        if nbp != batch:
            pad = nbp - batch
            left_cl = jnp.pad(left_cl, ((0, pad), (0, 0)))
            right_cl = jnp.pad(right_cl, ((0, pad), (0, 0)))
            dem = jnp.pad(dem, ((0, pad), (0, 0)))
        cl2 = jnp.concatenate([left_cl, right_cl], axis=0)
        vmem = pl.BlockSpec(memory_space=pltpu.MemorySpace.VMEM)
        slab = pl.pallas_call(
            clinnet_kernel,
            out_shape=jax.ShapeDtypeStruct((nbp, 16), jnp.float32),
            in_specs=[vmem] * 8,
            out_specs=vmem,
        )(cl2, dem, pk_arr, w1, w2q, w36t, w4, w5q)
        return slab[:batch, :11], slab[:batch, 11:12]
    return fwd


clinnet_forward = _build_forward()


# ----------------------------------------------------------------------------
# Pure-JAX reference (full f32, un-folded) for correctness check
# ----------------------------------------------------------------------------
def clinnet_reference(left_cl, right_cl, dem, p):
    def lrelu(v):
        return jnp.where(v >= 0, v, NEG_SLOPE * v)

    def once(cl):
        h = cl * p["bn1s"] + p["bn1b"]
        h = h @ p["w1"] + p["b1"]
        h = lrelu(h * p["bn2s"] + p["bn2b"])
        h = h @ p["w2"] + p["b2"]
        h = lrelu(h * p["bn3s"] + p["bn3b"])
        return h

    diff = jnp.abs(once(left_cl) - once(right_cl))
    x = lrelu(diff * p["bn4s"] + p["bn4b"])
    x = x @ p["w3"] + p["b3"]
    x = lrelu(x * p["bn5s"] + p["bn5b"])

    d = dem * p["bn6s"] + p["bn6b"]
    d = d @ p["w4"] + p["b4"]
    d = lrelu(d * p["bn7s"] + p["bn7b"])
    d = d @ p["w5"] + p["b5"]
    d = lrelu(d * p["bn8s"] + p["bn8b"])
    d = d @ p["w6"] + p["b6"]
    d = lrelu(d * p["bn9s"] + p["bn9b"])

    cl = jnp.concatenate([x, d], axis=1)
    out = jax.nn.sigmoid(cl @ p["wout"][:, None] + p["bout"])
    return cl, out


# ----------------------------------------------------------------------------
if __name__ == "__main__":
    key = jax.random.PRNGKey(0)
    kp, kl, kr, kd, km1, km2 = jax.random.split(key, 6)

    batch = 8
    params = make_params(kp)
    packed = pack_params(params)

    left_cl = jax.random.normal(kl, (batch, 8), jnp.float32)
    right_cl = jax.random.normal(kr, (batch, 8), jnp.float32)
    dem = jax.random.normal(kd, (batch, 3), jnp.float32)
    # MRI inputs are unused by ClinNet.forward; pass small dummies.
    left_mri = jax.random.normal(km1, (batch, 1, 16, 16), jnp.float32)
    right_mri = jax.random.normal(km2, (batch, 1, 16, 16), jnp.float32)

    cl, out = clinnet_forward(left_mri, right_mri, left_cl, right_cl, dem,
                              packed)
    jax.block_until_ready((cl, out))

    cl_ref, out_ref = clinnet_reference(left_cl, right_cl, dem, params)
    np.testing.assert_allclose(np.asarray(cl), np.asarray(cl_ref),
                               rtol=2e-2, atol=2e-2)
    np.testing.assert_allclose(np.asarray(out), np.asarray(out_ref),
                               rtol=2e-2, atol=2e-2)

    assert cl.shape == (batch, 11) and out.shape == (batch, 1)
    print("KERNEL_OK")
</pallas_src>

<mosaic_0001>
module attributes {stable_mosaic.version = 11 : i64} {
  func.func @clinnet_kernel(%arg0: memref<16x8xf32, #tpu.memory_space<vmem>>, %arg1: memref<8x3xf32, #tpu.memory_space<vmem>>, %arg2: memref<1x7040xf32, #tpu.memory_space<vmem>>, %arg3: memref<8x1024xbf16, #tpu.memory_space<vmem>>, %arg4: memref<1024x1024xi8, #tpu.memory_space<vmem>>, %arg5: memref<16x1536xbf16, #tpu.memory_space<vmem>>, %arg6: memref<3x512xbf16, #tpu.memory_space<vmem>>, %arg7: memref<512x512xi8, #tpu.memory_space<vmem>>, %arg8: memref<8x16xf32, #tpu.memory_space<vmem>>) attributes {dimension_semantics = [], scalar_prefetch = 0 : i64, scratch_operands = 0 : i64, tpu.core_type = #tpu.core_type<tc>} {
    %c0 = arith.constant 0 : index
    %c0_0 = arith.constant 0 : index
    %0 = vector.load %arg0[%c0, %c0_0] : memref<16x8xf32, #tpu.memory_space<vmem>>, vector<16x8xf32>
    %c0_1 = arith.constant 0 : index
    %c0_2 = arith.constant 0 : index
    %1 = vector.load %arg3[%c0_1, %c0_2] : memref<8x1024xbf16, #tpu.memory_space<vmem>>, vector<8x1024xbf16>
    %2 = arith.truncf %0 : vector<16x8xf32> to vector<16x8xbf16>
    %cst = arith.constant dense<0.000000e+00> : vector<16x1024xf32>
    %3 = tpu.matmul %2, %1, %cst {dimension_numbers = #tpu.dot_dimension_numbers<[1], [0], [0], [1], [0, 0, 1, 1], [], []>} : vector<16x8xbf16>, vector<8x1024xbf16>, vector<16x1024xf32> -> vector<16x1024xf32>
    %c0_3 = arith.constant 0 : index
    %c0_4 = arith.constant 0 : index
    %4 = vector.load %arg2[%c0_3, %c0_4] : memref<1x7040xf32, #tpu.memory_space<vmem>>, vector<1x1024xf32>
    %5 = vector.broadcast %4 : vector<1x1024xf32> to vector<16x1024xf32>
    %6 = arith.addf %3, %5 : vector<16x1024xf32>
    %cst_5 = arith.constant 0.00999999977 : f32
    %7 = vector.broadcast %cst_5 : f32 to vector<16x1024xf32>
    %8 = arith.mulf %7, %6 : vector<16x1024xf32>
    %9 = arith.maximumf %6, %8 : vector<16x1024xf32>
    %c0_6 = arith.constant 0 : index
    %c0_7 = arith.constant 0 : index
    %10 = vector.load %arg4[%c0_6, %c0_7] : memref<1024x1024xi8, #tpu.memory_space<vmem>>, vector<1024x1024xi8>
    %11 = arith.sitofp %10 : vector<1024x1024xi8> to vector<1024x1024xbf16>
    %12 = arith.truncf %9 : vector<16x1024xf32> to vector<16x1024xbf16>
    %cst_8 = arith.constant dense<0.000000e+00> : vector<16x1024xf32>
    %13 = tpu.matmul %12, %11, %cst_8 {dimension_numbers = #tpu.dot_dimension_numbers<[1], [0], [0], [1], [0, 0, 1, 1], [], []>} : vector<16x1024xbf16>, vector<1024x1024xbf16>, vector<16x1024xf32> -> vector<16x1024xf32>
    %c0_9 = arith.constant 0 : index
    %c1024 = arith.constant 1024 : index
    %14 = vector.load %arg2[%c0_9, %c1024] : memref<1x7040xf32, #tpu.memory_space<vmem>>, vector<1x1024xf32>
    %15 = vector.broadcast %14 : vector<1x1024xf32> to vector<16x1024xf32>
    %16 = arith.mulf %13, %15 : vector<16x1024xf32>
    %c0_10 = arith.constant 0 : index
    %c2048 = arith.constant 2048 : index
    %17 = vector.load %arg2[%c0_10, %c2048] : memref<1x7040xf32, #tpu.memory_space<vmem>>, vector<1x1024xf32>
    %18 = vector.broadcast %17 : vector<1x1024xf32> to vector<16x1024xf32>
    %19 = arith.addf %16, %18 : vector<16x1024xf32>
    %cst_11 = arith.constant 0.00999999977 : f32
    %20 = vector.broadcast %cst_11 : f32 to vector<16x1024xf32>
    %21 = arith.mulf %20, %19 : vector<16x1024xf32>
    %22 = arith.maximumf %19, %21 : vector<16x1024xf32>
    %23 = vector.extract_strided_slice %22 {offsets = [0, 0], sizes = [8, 1024], strides = [1, 1]} : vector<16x1024xf32> to vector<8x1024xf32>
    %24 = vector.extract_strided_slice %22 {offsets = [8, 0], sizes = [8, 1024], strides = [1, 1]} : vector<16x1024xf32> to vector<8x1024xf32>
    %25 = arith.subf %23, %24 : vector<8x1024xf32>
    %26 = math.absf %25 : vector<8x1024xf32>
    %c0_12 = arith.constant 0 : index
    %c3072 = arith.constant 3072 : index
    %27 = vector.load %arg2[%c0_12, %c3072] : memref<1x7040xf32, #tpu.memory_space<vmem>>, vector<1x1024xf32>
    %28 = vector.broadcast %27 : vector<1x1024xf32> to vector<8x1024xf32>
    %29 = arith.mulf %26, %28 : vector<8x1024xf32>
    %c0_13 = arith.constant 0 : index
    %c4096 = arith.constant 4096 : index
    %30 = vector.load %arg2[%c0_13, %c4096] : memref<1x7040xf32, #tpu.memory_space<vmem>>, vector<1x1024xf32>
    %31 = vector.broadcast %30 : vector<1x1024xf32> to vector<8x1024xf32>
    %32 = arith.addf %29, %31 : vector<8x1024xf32>
    %cst_14 = arith.constant 0.00999999977 : f32
    %33 = vector.broadcast %cst_14 : f32 to vector<8x1024xf32>
    %34 = arith.mulf %33, %32 : vector<8x1024xf32>
    %35 = arith.maximumf %32, %34 : vector<8x1024xf32>
    %c0_15 = arith.constant 0 : index
    %c0_16 = arith.constant 0 : index
    %36 = vector.load %arg1[%c0_15, %c0_16] : memref<8x3xf32, #tpu.memory_space<vmem>>, vector<8x3xf32>
    %c0_17 = arith.constant 0 : index
    %c0_18 = arith.constant 0 : index
    %37 = vector.load %arg6[%c0_17, %c0_18] : memref<3x512xbf16, #tpu.memory_space<vmem>>, vector<3x512xbf16>
    %38 = arith.truncf %36 : vector<8x3xf32> to vector<8x3xbf16>
    %cst_19 = arith.constant dense<0.000000e+00> : vector<8x512xf32>
    %39 = tpu.matmul %38, %37, %cst_19 {dimension_numbers = #tpu.dot_dimension_numbers<[1], [0], [0], [1], [0, 0, 1, 1], [], []>} : vector<8x3xbf16>, vector<3x512xbf16>, vector<8x512xf32> -> vector<8x512xf32>
    %c0_20 = arith.constant 0 : index
    %c5120 = arith.constant 5120 : index
    %40 = vector.load %arg2[%c0_20, %c5120] : memref<1x7040xf32, #tpu.memory_space<vmem>>, vector<1x512xf32>
    %41 = vector.broadcast %40 : vector<1x512xf32> to vector<8x512xf32>
    %42 = arith.addf %39, %41 : vector<8x512xf32>
    %cst_21 = arith.constant 0.00999999977 : f32
    %43 = vector.broadcast %cst_21 : f32 to vector<8x512xf32>
    %44 = arith.mulf %43, %42 : vector<8x512xf32>
    %45 = arith.maximumf %42, %44 : vector<8x512xf32>
    %c0_22 = arith.constant 0 : index
    %c0_23 = arith.constant 0 : index
    %46 = vector.load %arg7[%c0_22, %c0_23] : memref<512x512xi8, #tpu.memory_space<vmem>>, vector<512x512xi8>
    %47 = arith.sitofp %46 : vector<512x512xi8> to vector<512x512xbf16>
    %48 = arith.truncf %45 : vector<8x512xf32> to vector<8x512xbf16>
    %cst_24 = arith.constant dense<0.000000e+00> : vector<8x512xf32>
    %49 = tpu.matmul %48, %47, %cst_24 {dimension_numbers = #tpu.dot_dimension_numbers<[1], [0], [0], [1], [0, 0, 1, 1], [], []>} : vector<8x512xbf16>, vector<512x512xbf16>, vector<8x512xf32> -> vector<8x512xf32>
    %c0_25 = arith.constant 0 : index
    %c5632 = arith.constant 5632 : index
    %50 = vector.load %arg2[%c0_25, %c5632] : memref<1x7040xf32, #tpu.memory_space<vmem>>, vector<1x512xf32>
    %51 = vector.broadcast %50 : vector<1x512xf32> to vector<8x512xf32>
    %52 = arith.mulf %49, %51 : vector<8x512xf32>
    %c0_26 = arith.constant 0 : index
    %c6144 = arith.constant 6144 : index
    %53 = vector.load %arg2[%c0_26, %c6144] : memref<1x7040xf32, #tpu.memory_space<vmem>>, vector<1x512xf32>
    %54 = vector.broadcast %53 : vector<1x512xf32> to vector<8x512xf32>
    %55 = arith.addf %52, %54 : vector<8x512xf32>
    %cst_27 = arith.constant 0.00999999977 : f32
    %56 = vector.broadcast %cst_27 : f32 to vector<8x512xf32>
    %57 = arith.mulf %56, %55 : vector<8x512xf32>
    %58 = arith.maximumf %55, %57 : vector<8x512xf32>
    %59 = tpu.concatenate %35, %58 in 1 : vector<8x1024xf32>, vector<8x512xf32> -> vector<8x1536xf32>
    %c0_28 = arith.constant 0 : index
    %c0_29 = arith.constant 0 : index
    %60 = vector.load %arg5[%c0_28, %c0_29] : memref<16x1536xbf16, #tpu.memory_space<vmem>>, vector<16x1536xbf16>
    %61 = tpu.transpose %60, [1, 0] : vector<16x1536xbf16> -> vector<1536x16xbf16>
    %62 = arith.truncf %59 : vector<8x1536xf32> to vector<8x1536xbf16>
    %cst_30 = arith.constant dense<0.000000e+00> : vector<8x16xf32>
    %63 = tpu.matmul %62, %61, %cst_30 {dimension_numbers = #tpu.dot_dimension_numbers<[1], [0], [0], [1], [0, 0, 1, 1], [], []>} : vector<8x1536xbf16>, vector<1536x16xbf16>, vector<8x16xf32> -> vector<8x16xf32>
    %c0_31 = arith.constant 0 : index
    %c6656 = arith.constant 6656 : index
    %64 = vector.load %arg2[%c0_31, %c6656] : memref<1x7040xf32, #tpu.memory_space<vmem>>, vector<1x16xf32>
    %65 = vector.broadcast %64 : vector<1x16xf32> to vector<8x16xf32>
    %66 = arith.addf %63, %65 : vector<8x16xf32>
    %cst_32 = arith.constant 0.00999999977 : f32
    %67 = vector.broadcast %cst_32 : f32 to vector<8x16xf32>
    %68 = arith.mulf %67, %66 : vector<8x16xf32>
    %69 = arith.maximumf %66, %68 : vector<8x16xf32>
    %c0_33 = arith.constant 0 : index
    %c6784 = arith.constant 6784 : index
    %70 = vector.load %arg2[%c0_33, %c6784] : memref<1x7040xf32, #tpu.memory_space<vmem>>, vector<1x16xf32>
    %71 = vector.broadcast %70 : vector<1x16xf32> to vector<8x16xf32>
    %72 = arith.mulf %69, %71 : vector<8x16xf32>
    %cst_34 = arith.constant dense<0.000000e+00> : vector<8xf32>
    %73 = vector.multi_reduction <add>, %72, %cst_34 [1] : vector<8x16xf32> to vector<8xf32>
    %74 = vector.shape_cast %73 : vector<8xf32> to vector<8x1xf32>
    %c0_35 = arith.constant 0 : index
    %c6912 = arith.constant 6912 : index
    %75 = vector.load %arg2[%c0_35, %c6912] : memref<1x7040xf32, #tpu.memory_space<vmem>>, vector<1x1xf32>
    %76 = vector.broadcast %75 : vector<1x1xf32> to vector<8x1xf32>
    %77 = arith.addf %74, %76 : vector<8x1xf32>
    %cst_36 = arith.constant 0.000000e+00 : f32
    %78 = vector.broadcast %cst_36 : f32 to vector<8x1xf32>
    %79 = arith.subf %78, %77 : vector<8x1xf32>
    %80 = math.exp %79 : vector<8x1xf32>
    %cst_37 = arith.constant 1.000000e+00 : f32
    %81 = vector.broadcast %cst_37 : f32 to vector<8x1xf32>
    %82 = arith.addf %81, %80 : vector<8x1xf32>
    %cst_38 = arith.constant 1.000000e+00 : f32
    %83 = vector.broadcast %cst_38 : f32 to vector<8x1xf32>
    %84 = arith.divf %83, %82 : vector<8x1xf32>
    %85 = tpu.iota {dimensions = array<i32: 1>} : vector<8x16xi32>
    %c11_i32 = arith.constant 11 : i32
    %86 = vector.broadcast %c11_i32 : i32 to vector<8x16xi32>
    %87 = arith.cmpi eq, %85, %86 : vector<8x16xi32>
    %88 = vector.shape_cast %84 : vector<8x1xf32> to vector<8x1xf32>
    %89 = vector.broadcast %88 : vector<8x1xf32> to vector<8x16xf32>
    %90 = arith.select %87, %89, %69 : vector<8x16xi1>, vector<8x16xf32>
    %c0_39 = arith.constant 0 : index
    %c0_40 = arith.constant 0 : index
    %91 = vector.load %arg8[%c0_39, %c0_40] : memref<8x16xf32, #tpu.memory_space<vmem>>, vector<8x16xf32>
    tpu.vector_store %arg8[%c0_39, %c0_40], %90 {strides = array<i32>} : memref<8x16xf32, #tpu.memory_space<vmem>>, vector<8x16xf32>,
    return
  }
}

</mosaic_0001>

<llo_original>
// kernel: fwd.1
$region0: #{fwd.1}
  #allocation0 [shape = 'u32[]', space=smem, size = 0x4, offset = 0x4, fixed_abs, tag = 'smem constant byte address 0x4 - core index']
  #allocation1 [shape = 'u32[144,128]{1,0:T(1,128)}', space=vmem, size = 0x12000, scoped, tag = 'internal scratch']
  %s0 = inlined_call_operand.vmem [shape: f32[16,8], index: 0, kind: input, shape index: {}]
  %s1 = inlined_call_operand.vmem [shape: f32[8,3], index: 1, kind: input, shape index: {}]
  %s2 = inlined_call_operand.hbm [shape: f32[1,7040], index: 2, kind: input, shape index: {}]
  %s3 = inlined_call_operand.vmem [shape: bf16[8,1024], index: 3, kind: input, shape index: {}]
  %s4 = inlined_call_operand.hbm [shape: s8[1024,1024], index: 4, kind: input, shape index: {}]
  %s5 = inlined_call_operand.hbm [shape: bf16[16,1536], index: 5, kind: input, shape index: {}]
  %s6 = inlined_call_operand.vmem [shape: bf16[3,512], index: 6, kind: input, shape index: {}]
  %s7 = inlined_call_operand.hbm [shape: s8[512,512], index: 7, kind: input, shape index: {}]
  %s8 = inlined_call_operand.vmem [shape: f32[8,16], index: 8, kind: output, shape index: {}]
  %s9 = sld [smem:[#allocation0]]
  $region58: #{fwd.1} parent=0
    _
  %s11 = ssub.s32 1, %s9
  %s12 = scalar_select 0, %s11, %s9
  $region1: #{fwd.1} parent=0
    #allocation2 [shape = 'u8[28160]{0}', space=vmem, size = 0x7000, scoped, tag = 'input window, operand 2, single buffered']
    #allocation3 [shape = 's32[1]{0}', space=sflag, size = 0x4, scoped, tag = 'scoped memory for fwd.1']
    #allocation4 [shape = 'u8[1048576]{0}', space=vmem, size = 0x100000, scoped, tag = 'input window, operand 4, single buffered']
    #allocation5 [shape = 's32[1]{0}', space=sflag, size = 0x4, scoped, tag = 'scoped memory for fwd.1']
    #allocation6 [shape = 'u8[49152]{0}', space=vmem, size = 0xc000, scoped, tag = 'input window, operand 5, single buffered']
    #allocation7 [shape = 'u8[262144]{0}', space=vmem, size = 0x40000, scoped, tag = 'input window, operand 7, single buffered']
    #allocation8 [shape = 's32[1]{0}', space=sflag, size = 0x4, scoped, tag = 'scoped memory for fwd.1']
    %13 = vsyncpa [#allocation3], 0
    %14 = vsyncpa [#allocation5], 0
    %15 = vsyncpa [#allocation8], 0
    // Predicated region
    $region2: #{fwd.1} parent=1 // pred_check
      _
    $region3: #{fwd.1} parent=1 // pred_check_branch
      %17 = sbr.rel (0) target = $region5
    $region4: #{fwd.1} parent=1 // pred_region
      _
    $region5: #{fwd.1} parent=1 // pred_fallthru
      _
    // Predicated region
    $region6: #{fwd.1} parent=1 // pred_check
      _
    $region7: #{fwd.1} parent=1 // pred_check_branch
      %19 = sbr.rel (0) target = $region9
    $region8: #{fwd.1} parent=1 // pred_region
      _
    $region9: #{fwd.1} parent=1 // pred_fallthru
      _
    // Predicated region
    $region10: #{fwd.1} parent=1 // pred_check
      _
    $region11: #{fwd.1} parent=1 // pred_check_branch
      %21 = sbr.rel (0) target = $region13
    $region12: #{fwd.1} parent=1 // pred_region
      %s23 = ssub.s32 880, 880
      %24 = vsyncadd [#allocation3], %s23
      %s26 = sshll.u32 [#allocation2], 4
      %s27 = int_to_ptr.vmem [resolvable:$true] %s26
      %29 = dma.hbm_to_vmem [thread:$0]  %s2, 880, %s27, [#allocation3]
    $region13: #{fwd.1} parent=1 // pred_fallthru
      _
    // Predicated region
    $region14: #{fwd.1} parent=1 // pred_check
      _
    $region15: #{fwd.1} parent=1 // pred_check_branch
      %31 = sbr.rel (0) target = $region17
    $region16: #{fwd.1} parent=1 // pred_region
      _
    $region17: #{fwd.1} parent=1 // pred_fallthru
      _
    // Predicated region
    $region18: #{fwd.1} parent=1 // pred_check
      _
    $region19: #{fwd.1} parent=1 // pred_check_branch
      %33 = sbr.rel (0) target = $region21
    $region20: #{fwd.1} parent=1 // pred_region
      %s35 = ssub.s32 32768, 32768
      %36 = vsyncadd [#allocation5], %s35
      %s37 = sshll.u32 [#allocation4], 4
      %s38 = int_to_ptr.vmem [resolvable:$true] %s37
      %43 = dma.hbm_to_vmem [thread:$0]  %s4, 32768, %s38, [#allocation5], 1024, 1024, 64
    $region21: #{fwd.1} parent=1 // pred_fallthru
      _
    // Predicated region
    $region22: #{fwd.1} parent=1 // pred_check
      _
    $region23: #{fwd.1} parent=1 // pred_check_branch
      %45 = sbr.rel (0) target = $region25
    $region24: #{fwd.1} parent=1 // pred_region
      %s47 = ssub.s32 1536, 1536
      %48 = vsyncadd [#allocation5], %s47
      %s49 = sshll.u32 [#allocation6], 4
      %s50 = int_to_ptr.vmem [resolvable:$true] %s49
      %55 = dma.hbm_to_vmem [thread:$0]  %s5, 1536, %s50, [#allocation5], 768, 768, 48
    $region25: #{fwd.1} parent=1 // pred_fallthru
      _
    // Predicated region
    $region26: #{fwd.1} parent=1 // pred_check
      _
    $region27: #{fwd.1} parent=1 // pred_check_branch
      %57 = sbr.rel (0) target = $region29
    $region28: #{fwd.1} parent=1 // pred_region
      _
    $region29: #{fwd.1} parent=1 // pred_fallthru
      _
    // Predicated region
    $region30: #{fwd.1} parent=1 // pred_check
      _
    $region31: #{fwd.1} parent=1 // pred_check_branch
      %59 = sbr.rel (0) target = $region33
    $region32: #{fwd.1} parent=1 // pred_region
      %s61 = ssub.s32 8192, 8192
      %62 = vsyncadd [#allocation8], %s61
      %s63 = sshll.u32 [#allocation7], 4
      %s64 = int_to_ptr.vmem [resolvable:$true] %s63
      %69 = dma.hbm_to_vmem [thread:$0]  %s7, 8192, %s64, [#allocation8], 512, 512, 32
    $region33: #{fwd.1} parent=1 // pred_fallthru
      _
    // Predicated region
    $region34: #{fwd.1} parent=1 // pred_check
      _
    $region35: #{fwd.1} parent=1 // pred_check_branch
      %71 = sbr.rel (0) target = $region37
    $region36: #{fwd.1} parent=1 // pred_region
      %72 = dma.done [#allocation3], 880
    $region37: #{fwd.1} parent=1 // pred_fallthru
      _
    // Predicated region
    $region38: #{fwd.1} parent=1 // pred_check
      _
    $region39: #{fwd.1} parent=1 // pred_check_branch
      %74 = sbr.rel (0) target = $region41
    $region40: #{fwd.1} parent=1 // pred_region
      %75 = dma.done [#allocation5], 32768
    $region41: #{fwd.1} parent=1 // pred_fallthru
      _
    // Predicated region
    $region42: #{fwd.1} parent=1 // pred_check
      _
    $region43: #{fwd.1} parent=1 // pred_check_branch
      %77 = sbr.rel (0) target = $region45
    $region44: #{fwd.1} parent=1 // pred_region
      %78 = dma.done [#allocation5], 1536
    $region45: #{fwd.1} parent=1 // pred_fallthru
      _
    // Predicated region
    $region46: #{fwd.1} parent=1 // pred_check
      _
    $region47: #{fwd.1} parent=1 // pred_check_branch
      %80 = sbr.rel (0) target = $region49
    $region48: #{fwd.1} parent=1 // pred_region
      %81 = dma.done [#allocation8], 8192
    $region49: #{fwd.1} parent=1 // pred_fallthru
      _
    %v83 = vld [vmem:[%s0] sm:$0xff]
    %v84 = vld [vmem:[%s0 + $0x8] sm:$0xff]
    %v85 = vld [vmem:[%s3] sm:$0xff]
    %v86 = vld [vmem:[%s3 + $0x8] sm:$0xff]
    %v87 = vld [vmem:[%s3 + $0x10] sm:$0xff]
    %v88 = vld [vmem:[%s3 + $0x18] sm:$0xff]
    %v89 = vpack.c.bf16 %v84, %v83
    %v90 = vld [vmem:[#allocation2] sm:$0xff]
    %v92 = vlaneseq
    %v93 = vshrl.u32 %v92, 7
    %v94 = vsub.s32 0, %v93
    %v95 = vrot.slane %v90, %v94
    %v96 = vlaneseq
    %v97 = vshrl.u32 %v96, 7
    %v98 = vsub.s32 1, %v97
    %v99 = vrot.slane %v90, %v98
    %v100 = vlaneseq
    %v101 = vshrl.u32 %v100, 7
    %v102 = vsub.s32 2, %v101
    %v103 = vrot.slane %v90, %v102
    %v104 = vlaneseq
    %v105 = vshrl.u32 %v104, 7
    %v106 = vsub.s32 3, %v105
    %v107 = vrot.slane %v90, %v106
    %v108 = vlaneseq
    %v109 = vshrl.u32 %v108, 7
    %v110 = vsub.s32 4, %v109
    %v111 = vrot.slane %v90, %v110
    %v112 = vlaneseq
    %v113 = vshrl.u32 %v112, 7
    %v114 = vsub.s32 5, %v113
    %v115 = vrot.slane %v90, %v114
    %v116 = vlaneseq
    %v117 = vshrl.u32 %v116, 7
    %v118 = vsub.s32 6, %v117
    %v119 = vrot.slane %v90, %v118
    %v120 = vlaneseq
    %v121 = vshrl.u32 %v120, 7
    %v122 = vsub.s32 7, %v121
    %v123 = vrot.slane %v90, %v122
    %v136 = vunpack.c.l.b16 %v85
    %v137 = vunpack.c.h.b16 %v85
    %v138 = vunpack.c.l.b16 %v86
    %v139 = vunpack.c.h.b16 %v86
    %v140 = vunpack.c.l.b16 %v87
    %v141 = vunpack.c.h.b16 %v87
    %v142 = vunpack.c.l.b16 %v88
    %v143 = vunpack.c.h.b16 %v88
    %v144 = vpack.c.b16 %v136, %v136
    %v145 = vpack.c.b16 %v137, %v137
    %v146 = vpack.c.b16 %v138, %v138
    %v147 = vpack.c.b16 %v139, %v139
    %v148 = vpack.c.b16 %v140, %v140
    %v149 = vpack.c.b16 %v141, %v141
    %v150 = vpack.c.b16 %v142, %v142
    %v151 = vpack.c.b16 %v143, %v143
    %vm152 = vcmask 64512
    %v154 = vsel %vm152, %v89, 0
    %vm156 = vcmask 1043456
    %v158 = vsel %vm156, %v144, 0
    %v161 = vsel %vm156, %v145, 0
    %v164 = vsel %vm156, %v146, 0
    %v167 = vsel %vm156, %v147, 0
    %v170 = vsel %vm156, %v148, 0
    %v173 = vsel %vm156, %v149, 0
    %v176 = vsel %vm156, %v150, 0
    %v179 = vsel %vm156, %v151, 0
    %181 = vmatprep.subr.bf16.mxu0 0
    %182 = vmatpush1.bf16.msra.mxu0 0
    %183 = vmatprep.subr.bf16.mxu0 0
    %184 = vmatpush1.bf16.msra.mxu0 0
    %185 = vmatprep.subr.bf16.mxu0 0
    %186 = vmatpush1.bf16.msra.mxu0 0
    %187 = vmatprep.subr.bf16.mxu0 0
    %188 = vmatpush1.bf16.msra.mxu0 0
    %189 = vmatprep.subr.bf16.mxu0 0
    %190 = vmatpush1.bf16.msra.mxu0 0
    %191 = vmatprep.subr.bf16.mxu0 0
    %192 = vmatpush1.bf16.msra.mxu0 0
    %193 = vmatprep.subr.bf16.mxu0 0
    %194 = vmatpush1.bf16.msra.mxu0 0
    %195 = vmatprep.subr.bf16.mxu0 %v161
    %196 = vmatpush1.bf16.msra.mxu0 %v158
    %197 = vmatprep.subr.bf16.mxu0 0
    %198 = vmatpush2.bf16.msra.mxu0 0
    %199 = vmatprep.subr.bf16.mxu0 0
    %200 = vmatpush2.bf16.msra.mxu0 0
    %201 = vmatprep.subr.bf16.mxu0 0
    %202 = vmatpush2.bf16.msra.mxu0 0
    %203 = vmatprep.subr.bf16.mxu0 0
    %204 = vmatpush2.bf16.msra.mxu0 0
    %205 = vmatprep.subr.bf16.mxu0 0
    %206 = vmatpush2.bf16.msra.mxu0 0
    %207 = vmatprep.subr.bf16.mxu0 0
    %208 = vmatpush2.bf16.msra.mxu0 0
    %209 = vmatprep.subr.bf16.mxu0 0
    %210 = vmatpush2.bf16.msra.mxu0 0
    %211 = vmatprep.subr.bf16.mxu0 0
    %212 = vmatpush2.bf16.msra.mxu0 0
    %213 = vmatprep.mubr.bf16.mxu0 0
    %214 = vmatmul.mubr.bf16.gmra.mxu0 %v154
    %v215 = vpop.f32.mrf.mxu0
    %v216 = vadd.f32 %v95, %v215
    %v217 = vpop.f32.mrf.mxu0
    %v218 = vadd.f32 %v99, %v217
    %v219 = vpop.f32.mrf.mxu0
    %v220 = vadd.f32 %v95, %v219
    %v221 = vpop.f32.mrf.mxu0
    %v222 = vadd.f32 %v99, %v221
    %223 = vdwg.mxu0
    %224 = vmatprep.subr.bf16.mxu0 0
    %225 = vmatpush1.bf16.msra.mxu0 0
    %226 = vmatprep.subr.bf16.mxu0 0
    %227 = vmatpush1.bf16.msra.mxu0 0
    %228 = vmatprep.subr.bf16.mxu0 0
    %229 = vmatpush1.bf16.msra.mxu0 0
    %230 = vmatprep.subr.bf16.mxu0 0
    %231 = vmatpush1.bf16.msra.mxu0 0
    %232 = vmatprep.subr.bf16.mxu0 0
    %233 = vmatpush1.bf16.msra.mxu0 0
    %234 = vmatprep.subr.bf16.mxu0 0
    %235 = vmatpush1.bf16.msra.mxu0 0
    %236 = vmatprep.subr.bf16.mxu0 0
    %237 = vmatpush1.bf16.msra.mxu0 0
    %238 = vmatprep.subr.bf16.mxu0 %v167
    %239 = vmatpush1.bf16.msra.mxu0 %v164
    %240 = vmatprep.subr.bf16.mxu0 0
    %241 = vmatpush2.bf16.msra.mxu0 0
    %242 = vmatprep.subr.bf16.mxu0 0
    %243 = vmatpush2.bf16.msra.mxu0 0
    %244 = vmatprep.subr.bf16.mxu0 0
    %245 = vmatpush2.bf16.msra.mxu0 0
    %246 = vmatprep.subr.bf16.mxu0 0
    %247 = vmatpush2.bf16.msra.mxu0 0
    %248 = vmatprep.subr.bf16.mxu0 0
    %249 = vmatpush2.bf16.msra.mxu0 0
    %250 = vmatprep.subr.bf16.mxu0 0
    %251 = vmatpush2.bf16.msra.mxu0 0
    %252 = vmatprep.subr.bf16.mxu0 0
    %253 = vmatpush2.bf16.msra.mxu0 0
    %254 = vmatprep.subr.bf16.mxu0 0
    %255 = vmatpush2.bf16.msra.mxu0 0
    %256 = vmatprep.mubr.bf16.mxu0 0
    %257 = vmatmul.mubr.bf16.gmra.mxu0 %v154
    %v258 = vpop.f32.mrf.mxu0
    %v259 = vadd.f32 %v103, %v258
    %v260 = vpop.f32.mrf.mxu0
    %v261 = vadd.f32 %v107, %v260
    %v262 = vpop.f32.mrf.mxu0
    %v263 = vadd.f32 %v103, %v262
    %v264 = vpop.f32.mrf.mxu0
    %v265 = vadd.f32 %v107, %v264
    %266 = vdwg.mxu0
    %267 = vmatprep.subr.bf16.mxu0 0
    %268 = vmatpush1.bf16.msra.mxu0 0
    %269 = vmatprep.subr.bf16.mxu0 0
    %270 = vmatpush1.bf16.msra.mxu0 0
    %271 = vmatprep.subr.bf16.mxu0 0
    %272 = vmatpush1.bf16.msra.mxu0 0
    %273 = vmatprep.subr.bf16.mxu0 0
    %274 = vmatpush1.bf16.msra.mxu0 0
    %275 = vmatprep.subr.bf16.mxu0 0
    %276 = vmatpush1.bf16.msra.mxu0 0
    %277 = vmatprep.subr.bf16.mxu0 0
    %278 = vmatpush1.bf16.msra.mxu0 0
    %279 = vmatprep.subr.bf16.mxu0 0
    %280 = vmatpush1.bf16.msra.mxu0 0
    %281 = vmatprep.subr.bf16.mxu0 %v173
    %282 = vmatpush1.bf16.msra.mxu0 %v170
    %283 = vmatprep.subr.bf16.mxu0 0
    %284 = vmatpush2.bf16.msra.mxu0 0
    %285 = vmatprep.subr.bf16.mxu0 0
    %286 = vmatpush2.bf16.msra.mxu0 0
    %287 = vmatprep.subr.bf16.mxu0 0
    %288 = vmatpush2.bf16.msra.mxu0 0
    %289 = vmatprep.subr.bf16.mxu0 0
    %290 = vmatpush2.bf16.msra.mxu0 0
    %291 = vmatprep.subr.bf16.mxu0 0
    %292 = vmatpush2.bf16.msra.mxu0 0
    %293 = vmatprep.subr.bf16.mxu0 0
    %294 = vmatpush2.bf16.msra.mxu0 0
    %295 = vmatprep.subr.bf16.mxu0 0
    %296 = vmatpush2.bf16.msra.mxu0 0
    %297 = vmatprep.subr.bf16.mxu0 0
    %298 = vmatpush2.bf16.msra.mxu0 0
    %299 = vmatprep.mubr.bf16.mxu0 0
    %300 = vmatmul.mubr.bf16.gmra.mxu0 %v154
    %v301 = vpop.f32.mrf.mxu0
    %v302 = vadd.f32 %v111, %v301
    %v303 = vpop.f32.mrf.mxu0
    %v304 = vadd.f32 %v115, %v303
    %v305 = vpop.f32.mrf.mxu0
    %v306 = vadd.f32 %v111, %v305
    %v307 = vpop.f32.mrf.mxu0
    %v308 = vadd.f32 %v115, %v307
    %309 = vdwg.mxu0
    %310 = vmatprep.subr.bf16.mxu0 0
    %311 = vmatpush1.bf16.msra.mxu0 0
    %312 = vmatprep.subr.bf16.mxu0 0
    %313 = vmatpush1.bf16.msra.mxu0 0
    %314 = vmatprep.subr.bf16.mxu0 0
    %315 = vmatpush1.bf16.msra.mxu0 0
    %316 = vmatprep.subr.bf16.mxu0 0
    %317 = vmatpush1.bf16.msra.mxu0 0
    %318 = vmatprep.subr.bf16.mxu0 0
    %319 = vmatpush1.bf16.msra.mxu0 0
    %320 = vmatprep.subr.bf16.mxu0 0
    %321 = vmatpush1.bf16.msra.mxu0 0
    %322 = vmatprep.subr.bf16.mxu0 0
    %323 = vmatpush1.bf16.msra.mxu0 0
    %324 = vmatprep.subr.bf16.mxu0 %v179
    %325 = vmatpush1.bf16.msra.mxu0 %v176
    %326 = vmatprep.subr.bf16.mxu0 0
    %327 = vmatpush2.bf16.msra.mxu0 0
    %328 = vmatprep.subr.bf16.mxu0 0
    %329 = vmatpush2.bf16.msra.mxu0 0
    %330 = vmatprep.subr.bf16.mxu0 0
    %331 = vmatpush2.bf16.msra.mxu0 0
    %332 = vmatprep.subr.bf16.mxu0 0
    %333 = vmatpush2.bf16.msra.mxu0 0
    %334 = vmatprep.subr.bf16.mxu0 0
    %335 = vmatpush2.bf16.msra.mxu0 0
    %336 = vmatprep.subr.bf16.mxu0 0
    %337 = vmatpush2.bf16.msra.mxu0 0
    %338 = vmatprep.subr.bf16.mxu0 0
    %339 = vmatpush2.bf16.msra.mxu0 0
    %340 = vmatprep.subr.bf16.mxu0 0
    %341 = vmatpush2.bf16.msra.mxu0 0
    %342 = vmatprep.mubr.bf16.mxu0 0
    %343 = vmatmul.mubr.bf16.gmra.mxu0 %v154
    %v344 = vpop.f32.mrf.mxu0
    %v345 = vadd.f32 %v119, %v344
    %v346 = vpop.f32.mrf.mxu0
    %v347 = vadd.f32 %v123, %v346
    %v348 = vpop.f32.mrf.mxu0
    %v349 = vadd.f32 %v119, %v348
    %v350 = vpop.f32.mrf.mxu0
    %v351 = vadd.f32 %v123, %v350
    %352 = vdwg.mxu0
    %v353 = vmul.f32 %v216, 0.01
    %v354 = vmul.f32 %v218, 0.01
    %v355 = vmul.f32 %v259, 0.01
    %v356 = vmul.f32 %v261, 0.01
    %v357 = vmul.f32 %v302, 0.01
    %v358 = vmul.f32 %v304, 0.01
    %v359 = vmul.f32 %v345, 0.01
    %v360 = vmul.f32 %v347, 0.01
    %v361 = vmul.f32 %v220, 0.01
    %v362 = vmul.f32 %v222, 0.01
    %v363 = vmul.f32 %v263, 0.01
    %v364 = vmul.f32 %v265, 0.01
    %v365 = vmul.f32 %v306, 0.01
    %v366 = vmul.f32 %v308, 0.01
    %v367 = vmul.f32 %v349, 0.01
    %v368 = vmul.f32 %v351, 0.01
    %v369 = vmax.f32 %v216, %v353
    %v370 = vmax.f32 %v218, %v354
    %v371 = vmax.f32 %v259, %v355
    %v372 = vmax.f32 %v261, %v356
    %v373 = vmax.f32 %v302, %v357
    %v374 = vmax.f32 %v304, %v358
    %v375 = vmax.f32 %v345, %v359
    %v376 = vmax.f32 %v347, %v360
    %v377 = vmax.f32 %v220, %v361
    %v378 = vmax.f32 %v222, %v362
    %v379 = vmax.f32 %v263, %v363
    %v380 = vmax.f32 %v265, %v364
    %v381 = vmax.f32 %v306, %v365
    %v382 = vmax.f32 %v308, %v366
    %v383 = vmax.f32 %v349, %v367
    %v384 = vmax.f32 %v351, %v368
    %v385 = vld [vmem:[#allocation4] sm:$0xff]
    %v386 = vld [vmem:[#allocation4 + $0x8] sm:$0xff]
    %v387 = vld [vmem:[#allocation4 + $0x10] sm:$0xff]
    %v388 = vld [vmem:[#allocation4 + $0x18] sm:$0xff]
    %v389 = vld [vmem:[#allocation4 + $0x20] sm:$0xff]
    %v390 = vld [vmem:[#allocation4 + $0x28] sm:$0xff]
    %v391 = vld [vmem:[#allocation4 + $0x30] sm:$0xff]
    %v392 = vld [vmem:[#allocation4 + $0x38] sm:$0xff]
    %v393 = vld [vmem:[#allocation4 + $0x40] sm:$0xff]
    %v394 = vld [vmem:[#allocation4 + $0x48] sm:$0xff]
    %v395 = vld [vmem:[#allocation4 + $0x50] sm:$0xff]
    %v396 = vld [vmem:[#allocation4 + $0x58] sm:$0xff]
    %v397 = vld [vmem:[#allocation4 + $0x60] sm:$0xff]
    %v398 = vld [vmem:[#allocation4 + $0x68] sm:$0xff]
    %v399 = vld [vmem:[#allocation4 + $0x70] sm:$0xff]
    %v400 = vld [vmem:[#allocation4 + $0x78] sm:$0xff]
    %v401 = vld [vmem:[#allocation4 + $0x80] sm:$0xff]
    %v402 = vld [vmem:[#allocation4 + $0x88] sm:$0xff]
    %v403 = vld [vmem:[#allocation4 + $0x90] sm:$0xff]
    %v404 = vld [vmem:[#allocation4 + $0x98] sm:$0xff]
    %v405 = vld [vmem:[#allocation4 + $0xa0] sm:$0xff]
    %v406 = vld [vmem:[#allocation4 + $0xa8] sm:$0xff]
    %v407 = vld [vmem:[#allocation4 + $0xb0] sm:$0xff]
    %v408 = vld [vmem:[#allocation4 + $0xb8] sm:$0xff]
    %v409 = vld [vmem:[#allocation4 + $0xc0] sm:$0xff]
    %v410 = vld [vmem:[#allocation4 + $0xc8] sm:$0xff]
    %v411 = vld [vmem:[#allocation4 + $0xd0] sm:$0xff]
    %v412 = vld [vmem:[#allocation4 + $0xd8] sm:$0xff]
    %v413 = vld [vmem:[#allocation4 + $0xe0] sm:$0xff]
    %v414 = vld [vmem:[#allocation4 + $0xe8] sm:$0xff]
    %v415 = vld [vmem:[#allocation4 + $0xf0] sm:$0xff]
    %v416 = vld [vmem:[#allocation4 + $0xf8] sm:$0xff]
    %v417 = vld [vmem:[#allocation4 + $0x100] sm:$0xff]
    %v418 = vld [vmem:[#allocation4 + $0x108] sm:$0xff]
    %v419 = vld [vmem:[#allocation4 + $0x110] sm:$0xff]
    %v420 = vld [vmem:[#allocation4 + $0x118] sm:$0xff]
    %v421 = vld [vmem:[#allocation4 + $0x120] sm:$0xff]
    %v422 = vld [vmem:[#allocation4 + $0x128] sm:$0xff]
    %v423 = vld [vmem:[#allocation4 + $0x130] sm:$0xff]
    %v424 = vld [vmem:[#allocation4 + $0x138] sm:$0xff]
    %v425 = vld [vmem:[#allocation4 + $0x140] sm:$0xff]
    %v426 = vld [vmem:[#allocation4 + $0x148] sm:$0xff]
    %v427 = vld [vmem:[#allocation4 + $0x150] sm:$0xff]
    %v428 = vld [vmem:[#allocation4 + $0x158] sm:$0xff]
    %v429 = vld [vmem:[#allocation4 + $0x160] sm:$0xff]
    %v430 = vld [vmem:[#allocation4 + $0x168] sm:$0xff]
    %v431 = vld [vmem:[#allocation4 + $0x170] sm:$0xff]
    %v432 = vld [vmem:[#allocation4 + $0x178] sm:$0xff]
    %v433 = vld [vmem:[#allocation4 + $0x180] sm:$0xff]
    %v434 = vld [vmem:[#allocation4 + $0x188] sm:$0xff]
    %v435 = vld [vmem:[#allocation4 + $0x190] sm:$0xff]
    %v436 = vld [vmem:[#allocation4 + $0x198] sm:$0xff]
    %v437 = vld [vmem:[#allocation4 + $0x1a0] sm:$0xff]
    %v438 = vld [vmem:[#allocation4 + $0x1a8] sm:$0xff]
    %v439 = vld [vmem:[#allocation4 + $0x1b0] sm:$0xff]
    %v440 = vld [vmem:[#allocation4 + $0x1b8] sm:$0xff]
    %v441 = vld [vmem:[#allocation4 + $0x1c0] sm:$0xff]
    %v442 = vld [vmem:[#allocation4 + $0x1c8] sm:$0xff]
    %v443 = vld [vmem:[#allocation4 + $0x1d0] sm:$0xff]
    %v444 = vld [vmem:[#allocation4 + $0x1d8] sm:$0xff]
    %v445 = vld [vmem:[#allocation4 + $0x1e0] sm:$0xff]
    %v446 = vld [vmem:[#allocation4 + $0x1e8] sm:$0xff]
    %v447 = vld [vmem:[#allocation4 + $0x1f0] sm:$0xff]
    %v448 = vld [vmem:[#allocation4 + $0x1f8] sm:$0xff]
    %v449 = vld [vmem:[#allocation4 + $0x200] sm:$0xff]
    %v450 = vld [vmem:[#allocation4 + $0x208] sm:$0xff]
    %v451 = vld [vmem:[#allocation4 + $0x210] sm:$0xff]
    %v452 = vld [vmem:[#allocation4 + $0x218] sm:$0xff]
    %v453 = vld [vmem:[#allocation4 + $0x220] sm:$0xff]
    %v454 = vld [vmem:[#allocation4 + $0x228] sm:$0xff]
    %v455 = vld [vmem:[#allocation4 + $0x230] sm:$0xff]
    %v456 = vld [vmem:[#allocation4 + $0x238] sm:$0xff]
    %v457 = vld [vmem:[#allocation4 + $0x240] sm:$0xff]
    %v458 = vld [vmem:[#allocation4 + $0x248] sm:$0xff]
    %v459 = vld [vmem:[#allocation4 + $0x250] sm:$0xff]
    %v460 = vld [vmem:[#allocation4 + $0x258] sm:$0xff]
    %v461 = vld [vmem:[#allocation4 + $0x260] sm:$0xff]
    %v462 = vld [vmem:[#allocation4 + $0x268] sm:$0xff]
    %v463 = vld [vmem:[#allocation4 + $0x270] sm:$0xff]
    %v464 = vld [vmem:[#allocation4 + $0x278] sm:$0xff]
    %v465 = vld [vmem:[#allocation4 + $0x280] sm:$0xff]
    %v466 = vld [vmem:[#allocation4 + $0x288] sm:$0xff]
    %v467 = vld [vmem:[#allocation4 + $0x290] sm:$0xff]
    %v468 = vld [vmem:[#allocation4 + $0x298] sm:$0xff]
    %v469 = vld [vmem:[#allocation4 + $0x2a0] sm:$0xff]
    %v470 = vld [vmem:[#allocation4 + $0x2a8] sm:$0xff]
    %v471 = vld [vmem:[#allocation4 + $0x2b0] sm:$0xff]
    %v472 = vld [vmem:[#allocation4 + $0x2b8] sm:$0xff]
    %v473 = vld [vmem:[#allocation4 + $0x2c0] sm:$0xff]
    %v474 = vld [vmem:[#allocation4 + $0x2c8] sm:$0xff]
    %v475 = vld [vmem:[#allocation4 + $0x2d0] sm:$0xff]
    %v476 = vld [vmem:[#allocation4 + $0x2d8] sm:$0xff]
    %v477 = vld [vmem:[#allocation4 + $0x2e0] sm:$0xff]
    %v478 = vld [vmem:[#allocation4 + $0x2e8] sm:$0xff]
    %v479 = vld [vmem:[#allocation4 + $0x2f0] sm:$0xff]
    %v480 = vld [vmem:[#allocation4 + $0x2f8] sm:$0xff]
    %v481 = vld [vmem:[#allocation4 + $0x300] sm:$0xff]
    %v482 = vld [vmem:[#allocation4 + $0x308] sm:$0xff]
    %v483 = vld [vmem:[#allocation4 + $0x310] sm:$0xff]
    %v484 = vld [vmem:[#allocation4 + $0x318] sm:$0xff]
    %v485 = vld [vmem:[#allocation4 + $0x320] sm:$0xff]
    %v486 = vld [vmem:[#allocation4 + $0x328] sm:$0xff]
    %v487 = vld [vmem:[#allocation4 + $0x330] sm:$0xff]
    %v488 = vld [vmem:[#allocation4 + $0x338] sm:$0xff]
    %v489 = vld [vmem:[#allocation4 + $0x340] sm:$0xff]
    %v490 = vld [vmem:[#allocation4 + $0x348] sm:$0xff]
    %v491 = vld [vmem:[#allocation4 + $0x350] sm:$0xff]
    %v492 = vld [vmem:[#allocation4 + $0x358] sm:$0xff]
    %v493 = vld [vmem:[#allocation4 + $0x360] sm:$0xff]
    %v494 = vld [vmem:[#allocation4 + $0x368] sm:$0xff]
    %v495 = vld [vmem:[#allocation4 + $0x370] sm:$0xff]
    %v496 = vld [vmem:[#allocation4 + $0x378] sm:$0xff]
    %v497 = vld [vmem:[#allocation4 + $0x380] sm:$0xff]
    %v498 = vld [vmem:[#allocation4 + $0x388] sm:$0xff]
    %v499 = vld [vmem:[#allocation4 + $0x390] sm:$0xff]
    %v500 = vld [vmem:[#allocation4 + $0x398] sm:$0xff]
    %v501 = vld [vmem:[#allocation4 + $0x3a0] sm:$0xff]
    %v502 = vld [vmem:[#allocation4 + $0x3a8] sm:$0xff]
    %v503 = vld [vmem:[#allocation4 + $0x3b0] sm:$0xff]
    %v504 = vld [vmem:[#allocation4 + $0x3b8] sm:$0xff]
    %v505 = vld [vmem:[#allocation4 + $0x3c0] sm:$0xff]
    %v506 = vld [vmem:[#allocation4 + $0x3c8] sm:$0xff]
    %v507 = vld [vmem:[#allocation4 + $0x3d0] sm:$0xff]
    %v508 = vld [vmem:[#allocation4 + $0x3d8] sm:$0xff]
    %v509 = vld [vmem:[#allocation4 + $0x3e0] sm:$0xff]
    %v510 = vld [vmem:[#allocation4 + $0x3e8] sm:$0xff]
    %v511 = vld [vmem:[#allocation4 + $0x3f0] sm:$0xff]
    %v512 = vld [vmem:[#allocation4 + $0x3f8] sm:$0xff]
    %v513 = vld [vmem:[#allocation4 + $0x400] sm:$0xff]
    %v514 = vld [vmem:[#allocation4 + $0x408] sm:$0xff]
    %v515 = vld [vmem:[#allocation4 + $0x410] sm:$0xff]
    %v516 = vld [vmem:[#allocation4 + $0x418] sm:$0xff]
    %v517 = vld [vmem:[#allocation4 + $0x420] sm:$0xff]
    %v518 = vld [vmem:[#allocation4 + $0x428] sm:$0xff]
    %v519 = vld [vmem:[#allocation4 + $0x430] sm:$0xff]
    %v520 = vld [vmem:[#allocation4 + $0x438] sm:$0xff]
    %v521 = vld [vmem:[#allocation4 + $0x440] sm:$0xff]
    %v522 = vld [vmem:[#allocation4 + $0x448] sm:$0xff]
    %v523 = vld [vmem:[#allocation4 + $0x450] sm:$0xff]
    %v524 = vld [vmem:[#allocation4 + $0x458] sm:$0xff]
    %v525 = vld [vmem:[#allocation4 + $0x460] sm:$0xff]
    %v526 = vld [vmem:[#allocation4 + $0x468] sm:$0xff]
    %v527 = vld [vmem:[#allocation4 + $0x470] sm:$0xff]
    %v528 = vld [vmem:[#allocation4 + $0x478] sm:$0xff]
    %v529 = vld [vmem:[#allocation4 + $0x480] sm:$0xff]
    %v530 = vld [vmem:[#allocation4 + $0x488] sm:$0xff]
    %v531 = vld [vmem:[#allocation4 + $0x490] sm:$0xff]
    %v532 = vld [vmem:[#allocation4 + $0x498] sm:$0xff]
    %v533 = vld [vmem:[#allocation4 + $0x4a0] sm:$0xff]
    %v534 = vld [vmem:[#allocation4 + $0x4a8] sm:$0xff]
    %v535 = vld [vmem:[#allocation4 + $0x4b0] sm:$0xff]
    %v536 = vld [vmem:[#allocation4 + $0x4b8] sm:$0xff]
    %v537 = vld [vmem:[#allocation4 + $0x4c0] sm:$0xff]
    %v538 = vld [vmem:[#allocation4 + $0x4c8] sm:$0xff]
    %v539 = vld [vmem:[#allocation4 + $0x4d0] sm:$0xff]
    %v540 = vld [vmem:[#allocation4 + $0x4d8] sm:$0xff]
    %v541 = vld [vmem:[#allocation4 + $0x4e0] sm:$0xff]
    %v542 = vld [vmem:[#allocation4 + $0x4e8] sm:$0xff]
    %v543 = vld [vmem:[#allocation4 + $0x4f0] sm:$0xff]
    %v544 = vld [vmem:[#allocation4 + $0x4f8] sm:$0xff]
    %v545 = vld [vmem:[#allocation4 + $0x500] sm:$0xff]
    %v546 = vld [vmem:[#allocation4 + $0x508] sm:$0xff]
    %v547 = vld [vmem:[#allocation4 + $0x510] sm:$0xff]
    %v548 = vld [vmem:[#allocation4 + $0x518] sm:$0xff]
    %v549 = vld [vmem:[#allocation4 + $0x520] sm:$0xff]
    %v550 = vld [vmem:[#allocation4 + $0x528] sm:$0xff]
    %v551 = vld [vmem:[#allocation4 + $0x530] sm:$0xff]
    %v552 = vld [vmem:[#allocation4 + $0x538] sm:$0xff]
    %v553 = vld [vmem:[#allocation4 + $0x540] sm:$0xff]
    %v554 = vld [vmem:[#allocation4 + $0x548] sm:$0xff]
    %v555 = vld [vmem:[#allocation4 + $0x550] sm:$0xff]
    %v556 = vld [vmem:[#allocation4 + $0x558] sm:$0xff]
    %v557 = vld [vmem:[#allocation4 + $0x560] sm:$0xff]
    %v558 = vld [vmem:[#allocation4 + $0x568] sm:$0xff]
    %v559 = vld [vmem:[#allocation4 + $0x570] sm:$0xff]
    %v560 = vld [vmem:[#allocation4 + $0x578] sm:$0xff]
    %v561 = vld [vmem:[#allocation4 + $0x580] sm:$0xff]
    %v562 = vld [vmem:[#allocation4 + $0x588] sm:$0xff]
    %v563 = vld [vmem:[#allocation4 + $0x590] sm:$0xff]
    %v564 = vld [vmem:[#allocation4 + $0x598] sm:$0xff]
    %v565 = vld [vmem:[#allocation4 + $0x5a0] sm:$0xff]
    %v566 = vld [vmem:[#allocation4 + $0x5a8] sm:$0xff]
    %v567 = vld [vmem:[#allocation4 + $0x5b0] sm:$0xff]
    %v568 = vld [vmem:[#allocation4 + $0x5b8] sm:$0xff]
    %v569 = vld [vmem:[#allocation4 + $0x5c0] sm:$0xff]
    %v570 = vld [vmem:[#allocation4 + $0x5c8] sm:$0xff]
    %v571 = vld [vmem:[#allocation4 + $0x5d0] sm:$0xff]
    %v572 = vld [vmem:[#allocation4 + $0x5d8] sm:$0xff]
    %v573 = vld [vmem:[#allocation4 + $0x5e0] sm:$0xff]
    %v574 = vld [vmem:[#allocation4 + $0x5e8] sm:$0xff]
    %v575 = vld [vmem:[#allocation4 + $0x5f0] sm:$0xff]
    %v576 = vld [vmem:[#allocation4 + $0x5f8] sm:$0xff]
    %v577 = vld [vmem:[#allocation4 + $0x600] sm:$0xff]
    %v578 = vld [vmem:[#allocation4 + $0x608] sm:$0xff]
    %v579 = vld [vmem:[#allocation4 + $0x610] sm:$0xff]
    %v580 = vld [vmem:[#allocation4 + $0x618] sm:$0xff]
    %v581 = vld [vmem:[#allocation4 + $0x620] sm:$0xff]
    %v582 = vld [vmem:[#allocation4 + $0x628] sm:$0xff]
    %v583 = vld [vmem:[#allocation4 + $0x630] sm:$0xff]
    %v584 = vld [vmem:[#allocation4 + $0x638] sm:$0xff]
    %v585 = vld [vmem:[#allocation4 + $0x640] sm:$0xff]
    %v586 = vld [vmem:[#allocation4 + $0x648] sm:$0xff]
    %v587 = vld [vmem:[#allocation4 + $0x650] sm:$0xff]
    %v588 = vld [vmem:[#allocation4 + $0x658] sm:$0xff]
    %v589 = vld [vmem:[#allocation4 + $0x660] sm:$0xff]
    %v590 = vld [vmem:[#allocation4 + $0x668] sm:$0xff]
    %v591 = vld [vmem:[#allocation4 + $0x670] sm:$0xff]
    %v592 = vld [vmem:[#allocation4 + $0x678] sm:$0xff]
    %v593 = vld [vmem:[#allocation4 + $0x680] sm:$0xff]
    %v594 = vld [vmem:[#allocation4 + $0x688] sm:$0xff]
    %v595 = vld [vmem:[#allocation4 + $0x690] sm:$0xff]
    %v596 = vld [vmem:[#allocation4 + $0x698] sm:$0xff]
    %v597 = vld [vmem:[#allocation4 + $0x6a0] sm:$0xff]
    %v598 = vld [vmem:[#allocation4 + $0x6a8] sm:$0xff]
    %v599 = vld [vmem:[#allocation4 + $0x6b0] sm:$0xff]
    %v600 = vld [vmem:[#allocation4 + $0x6b8] sm:$0xff]
    %v601 = vld [vmem:[#allocation4 + $0x6c0] sm:$0xff]
    %v602 = vld [vmem:[#allocation4 + $0x6c8] sm:$0xff]
    %v603 = vld [vmem:[#allocation4 + $0x6d0] sm:$0xff]
    %v604 = vld [vmem:[#allocation4 + $0x6d8] sm:$0xff]
    %v605 = vld [vmem:[#allocation4 + $0x6e0] sm:$0xff]
    %v606 = vld [vmem:[#allocation4 + $0x6e8] sm:$0xff]
    %v607 = vld [vmem:[#allocation4 + $0x6f0] sm:$0xff]
    %v608 = vld [vmem:[#allocation4 + $0x6f8] sm:$0xff]
    %v609 = vld [vmem:[#allocation4 + $0x700] sm:$0xff]
    %v610 = vld [vmem:[#allocation4 + $0x708] sm:$0xff]
    %v611 = vld [vmem:[#allocation4 + $0x710] sm:$0xff]
    %v612 = vld [vmem:[#allocation4 + $0x718] sm:$0xff]
    %v613 = vld [vmem:[#allocation4 + $0x720] sm:$0xff]
    %v614 = vld [vmem:[#allocation4 + $0x728] sm:$0xff]
    %v615 = vld [vmem:[#allocation4 + $0x730] sm:$0xff]
    %v616 = vld [vmem:[#allocation4 + $0x738] sm:$0xff]
    %v617 = vld [vmem:[#allocation4 + $0x740] sm:$0xff]
    %v618 = vld [vmem:[#allocation4 + $0x748] sm:$0xff]
    %v619 = vld [vmem:[#allocation4 + $0x750] sm:$0xff]
    %v620 = vld [vmem:[#allocation4 + $0x758] sm:$0xff]
    %v621 = vld [vmem:[#allocation4 + $0x760] sm:$0xff]
    %v622 = vld [vmem:[#allocation4 + $0x768] sm:$0xff]
    %v623 = vld [vmem:[#allocation4 + $0x770] sm:$0xff]
    %v624 = vld [vmem:[#allocation4 + $0x778] sm:$0xff]
    %v625 = vld [vmem:[#allocation4 + $0x780] sm:$0xff]
    %v626 = vld [vmem:[#allocation4 + $0x788] sm:$0xff]
    %v627 = vld [vmem:[#allocation4 + $0x790] sm:$0xff]
    %v628 = vld [vmem:[#allocation4 + $0x798] sm:$0xff]
    %v629 = vld [vmem:[#allocation4 + $0x7a0] sm:$0xff]
    %v630 = vld [vmem:[#allocation4 + $0x7a8] sm:$0xff]
    %v631 = vld [vmem:[#allocation4 + $0x7b0] sm:$0xff]
    %v632 = vld [vmem:[#allocation4 + $0x7b8] sm:$0xff]
    %v633 = vld [vmem:[#allocation4 + $0x7c0] sm:$0xff]
    %v634 = vld [vmem:[#allocation4 + $0x7c8] sm:$0xff]
    %v635 = vld [vmem:[#allocation4 + $0x7d0] sm:$0xff]
    %v636 = vld [vmem:[#allocation4 + $0x7d8] sm:$0xff]
    %v637 = vld [vmem:[#allocation4 + $0x7e0] sm:$0xff]
    %v638 = vld [vmem:[#allocation4 + $0x7e8] sm:$0xff]
    %v639 = vld [vmem:[#allocation4 + $0x7f0] sm:$0xff]
    %v640 = vld [vmem:[#allocation4 + $0x7f8] sm:$0xff]
    %v641 = vunpack.c.l.s8.bf16 %v385
    %v642 = vunpack.c.l.s8.bf16 %v386
    %v643 = vunpack.c.l.s8.bf16 %v387
    %v644 = vunpack.c.l.s8.bf16 %v388
    %v645 = vunpack.c.l.s8.bf16 %v389
    %v646 = vunpack.c.l.s8.bf16 %v390
    %v647 = vunpack.c.l.s8.bf16 %v391
    %v648 = vunpack.c.l.s8.bf16 %v392
    %v649 = vunpack.c.h.s8.bf16 %v385
    %v650 = vunpack.c.h.s8.bf16 %v386
    %v651 = vunpack.c.h.s8.bf16 %v387
    %v652 = vunpack.c.h.s8.bf16 %v388
    %v653 = vunpack.c.h.s8.bf16 %v389
    %v654 = vunpack.c.h.s8.bf16 %v390
    %v655 = vunpack.c.h.s8.bf16 %v391
    %v656 = vunpack.c.h.s8.bf16 %v392
    %v657 = vunpack.c.l.s8.bf16 %v393
    %v658 = vunpack.c.l.s8.bf16 %v394
    %v659 = vunpack.c.l.s8.bf16 %v395
    %v660 = vunpack.c.l.s8.bf16 %v396
    %v661 = vunpack.c.l.s8.bf16 %v397
    %v662 = vunpack.c.l.s8.bf16 %v398
    %v663 = vunpack.c.l.s8.bf16 %v399
    %v664 = vunpack.c.l.s8.bf16 %v400
    %v665 = vunpack.c.h.s8.bf16 %v393
    %v666 = vunpack.c.h.s8.bf16 %v394
    %v667 = vunpack.c.h.s8.bf16 %v395
    %v668 = vunpack.c.h.s8.bf16 %v396
    %v669 = vunpack.c.h.s8.bf16 %v397
    %v670 = vunpack.c.h.s8.bf16 %v398
    %v671 = vunpack.c.h.s8.bf16 %v399
    %v672 = vunpack.c.h.s8.bf16 %v400
    %v673 = vunpack.c.l.s8.bf16 %v401
    %v674 = vunpack.c.l.s8.bf16 %v402
    %v675 = vunpack.c.l.s8.bf16 %v403
    %v676 = vunpack.c.l.s8.bf16 %v404
    %v677 = vunpack.c.l.s8.bf16 %v405
    %v678 = vunpack.c.l.s8.bf16 %v406
    %v679 = vunpack.c.l.s8.bf16 %v407
    %v680 = vunpack.c.l.s8.bf16 %v408
    %v681 = vunpack.c.h.s8.bf16 %v401
    %v682 = vunpack.c.h.s8.bf16 %v402
    %v683 = vunpack.c.h.s8.bf16 %v403
    %v684 = vunpack.c.h.s8.bf16 %v404
    %v685 = vunpack.c.h.s8.bf16 %v405
    %v686 = vunpack.c.h.s8.bf16 %v406
    %v687 = vunpack.c.h.s8.bf16 %v407
    %v688 = vunpack.c.h.s8.bf16 %v408
    %v689 = vunpack.c.l.s8.bf16 %v409
    %v690 = vunpack.c.l.s8.bf16 %v410
    %v691 = vunpack.c.l.s8.bf16 %v411
    %v692 = vunpack.c.l.s8.bf16 %v412
    %v693 = vunpack.c.l.s8.bf16 %v413
    %v694 = vunpack.c.l.s8.bf16 %v414
    %v695 = vunpack.c.l.s8.bf16 %v415
    %v696 = vunpack.c.l.s8.bf16 %v416
    %v697 = vunpack.c.h.s8.bf16 %v409
    %v698 = vunpack.c.h.s8.bf16 %v410
    %v699 = vunpack.c.h.s8.bf16 %v411
    %v700 = vunpack.c.h.s8.bf16 %v412
    %v701 = vunpack.c.h.s8.bf16 %v413
    %v702 = vunpack.c.h.s8.bf16 %v414
    %v703 = vunpack.c.h.s8.bf16 %v415
    %v704 = vunpack.c.h.s8.bf16 %v416
    %v705 = vunpack.c.l.s8.bf16 %v417
    %v706 = vunpack.c.l.s8.bf16 %v418
    %v707 = vunpack.c.l.s8.bf16 %v419
    %v708 = vunpack.c.l.s8.bf16 %v420
    %v709 = vunpack.c.l.s8.bf16 %v421
    %v710 = vunpack.c.l.s8.bf16 %v422
    %v711 = vunpack.c.l.s8.bf16 %v423
    %v712 = vunpack.c.l.s8.bf16 %v424
    %v713 = vunpack.c.h.s8.bf16 %v417
    %v714 = vunpack.c.h.s8.bf16 %v418
    %v715 = vunpack.c.h.s8.bf16 %v419
    %v716 = vunpack.c.h.s8.bf16 %v420
    %v717 = vunpack.c.h.s8.bf16 %v421
    %v718 = vunpack.c.h.s8.bf16 %v422
    %v719 = vunpack.c.h.s8.bf16 %v423
    %v720 = vunpack.c.h.s8.bf16 %v424
    %v721 = vunpack.c.l.s8.bf16 %v425
    %v722 = vunpack.c.l.s8.bf16 %v426
    %v723 = vunpack.c.l.s8.bf16 %v427
    %v724 = vunpack.c.l.s8.bf16 %v428
    %v725 = vunpack.c.l.s8.bf16 %v429
    %v726 = vunpack.c.l.s8.bf16 %v430
    %v727 = vunpack.c.l.s8.bf16 %v431
    %v728 = vunpack.c.l.s8.bf16 %v432
    %v729 = vunpack.c.h.s8.bf16 %v425
    %v730 = vunpack.c.h.s8.bf16 %v426
    %v731 = vunpack.c.h.s8.bf16 %v427
    %v732 = vunpack.c.h.s8.bf16 %v428
    %v733 = vunpack.c.h.s8.bf16 %v429
    %v734 = vunpack.c.h.s8.bf16 %v430
    %v735 = vunpack.c.h.s8.bf16 %v431
    %v736 = vunpack.c.h.s8.bf16 %v432
    %v737 = vunpack.c.l.s8.bf16 %v433
    %v738 = vunpack.c.l.s8.bf16 %v434
    %v739 = vunpack.c.l.s8.bf16 %v435
    %v740 = vunpack.c.l.s8.bf16 %v436
    %v741 = vunpack.c.l.s8.bf16 %v437
    %v742 = vunpack.c.l.s8.bf16 %v438
    %v743 = vunpack.c.l.s8.bf16 %v439
    %v744 = vunpack.c.l.s8.bf16 %v440
    %v745 = vunpack.c.h.s8.bf16 %v433
    %v746 = vunpack.c.h.s8.bf16 %v434
    %v747 = vunpack.c.h.s8.bf16 %v435
    %v748 = vunpack.c.h.s8.bf16 %v436
    %v749 = vunpack.c.h.s8.bf16 %v437
    %v750 = vunpack.c.h.s8.bf16 %v438
    %v751 = vunpack.c.h.s8.bf16 %v439
    %v752 = vunpack.c.h.s8.bf16 %v440
    %v753 = vunpack.c.l.s8.bf16 %v441
    %v754 = vunpack.c.l.s8.bf16 %v442
    %v755 = vunpack.c.l.s8.bf16 %v443
    %v756 = vunpack.c.l.s8.bf16 %v444
    %v757 = vunpack.c.l.s8.bf16 %v445
    %v758 = vunpack.c.l.s8.bf16 %v446
    %v759 = vunpack.c.l.s8.bf16 %v447
    %v760 = vunpack.c.l.s8.bf16 %v448
    %v761 = vunpack.c.h.s8.bf16 %v441
    %v762 = vunpack.c.h.s8.bf16 %v442
    %v763 = vunpack.c.h.s8.bf16 %v443
    %v764 = vunpack.c.h.s8.bf16 %v444
    %v765 = vunpack.c.h.s8.bf16 %v445
    %v766 = vunpack.c.h.s8.bf16 %v446
    %v767 = vunpack.c.h.s8.bf16 %v447
    %v768 = vunpack.c.h.s8.bf16 %v448
    %v769 = vunpack.c.l.s8.bf16 %v449
    %v770 = vunpack.c.l.s8.bf16 %v450
    %v771 = vunpack.c.l.s8.bf16 %v451
    %v772 = vunpack.c.l.s8.bf16 %v452
    %v773 = vunpack.c.l.s8.bf16 %v453
    %v774 = vunpack.c.l.s8.bf16 %v454
    %v775 = vunpack.c.l.s8.bf16 %v455
    %v776 = vunpack.c.l.s8.bf16 %v456
    %v777 = vunpack.c.h.s8.bf16 %v449
    %v778 = vunpack.c.h.s8.bf16 %v450
    %v779 = vunpack.c.h.s8.bf16 %v451
    %v780 = vunpack.c.h.s8.bf16 %v452
    %v781 = vunpack.c.h.s8.bf16 %v453
    %v782 = vunpack.c.h.s8.bf16 %v454
    %v783 = vunpack.c.h.s8.bf16 %v455
    %v784 = vunpack.c.h.s8.bf16 %v456
    %v785 = vunpack.c.l.s8.bf16 %v457
    %v786 = vunpack.c.l.s8.bf16 %v458
    %v787 = vunpack.c.l.s8.bf16 %v459
    %v788 = vunpack.c.l.s8.bf16 %v460
    %v789 = vunpack.c.l.s8.bf16 %v461
    %v790 = vunpack.c.l.s8.bf16 %v462
    %v791 = vunpack.c.l.s8.bf16 %v463
    %v792 = vunpack.c.l.s8.bf16 %v464
    %v793 = vunpack.c.h.s8.bf16 %v457
    %v794 = vunpack.c.h.s8.bf16 %v458
    %v795 = vunpack.c.h.s8.bf16 %v459
    %v796 = vunpack.c.h.s8.bf16 %v460
    %v797 = vunpack.c.h.s8.bf16 %v461
    %v798 = vunpack.c.h.s8.bf16 %v462
    %v799 = vunpack.c.h.s8.bf16 %v463
    %v800 = vunpack.c.h.s8.bf16 %v464
    %v801 = vunpack.c.l.s8.bf16 %v465
    %v802 = vunpack.c.l.s8.bf16 %v466
    %v803 = vunpack.c.l.s8.bf16 %v467
    %v804 = vunpack.c.l.s8.bf16 %v468
    %v805 = vunpack.c.l.s8.bf16 %v469
    %v806 = vunpack.c.l.s8.bf16 %v470
    %v807 = vunpack.c.l.s8.bf16 %v471
    %v808 = vunpack.c.l.s8.bf16 %v472
    %v809 = vunpack.c.h.s8.bf16 %v465
    %v810 = vunpack.c.h.s8.bf16 %v466
    %v811 = vunpack.c.h.s8.bf16 %v467
    %v812 = vunpack.c.h.s8.bf16 %v468
    %v813 = vunpack.c.h.s8.bf16 %v469
    %v814 = vunpack.c.h.s8.bf16 %v470
    %v815 = vunpack.c.h.s8.bf16 %v471
    %v816 = vunpack.c.h.s8.bf16 %v472
    %v817 = vunpack.c.l.s8.bf16 %v473
    %v818 = vunpack.c.l.s8.bf16 %v474
    %v819 = vunpack.c.l.s8.bf16 %v475
    %v820 = vunpack.c.l.s8.bf16 %v476
    %v821 = vunpack.c.l.s8.bf16 %v477
    %v822 = vunpack.c.l.s8.bf16 %v478
    %v823 = vunpack.c.l.s8.bf16 %v479
    %v824 = vunpack.c.l.s8.bf16 %v480
    %v825 = vunpack.c.h.s8.bf16 %v473
    %v826 = vunpack.c.h.s8.bf16 %v474
    %v827 = vunpack.c.h.s8.bf16 %v475
    %v828 = vunpack.c.h.s8.bf16 %v476
    %v829 = vunpack.c.h.s8.bf16 %v477
    %v830 = vunpack.c.h.s8.bf16 %v478
    %v831 = vunpack.c.h.s8.bf16 %v479
    %v832 = vunpack.c.h.s8.bf16 %v480
    %v833 = vunpack.c.l.s8.bf16 %v481
    %v834 = vunpack.c.l.s8.bf16 %v482
    %v835 = vunpack.c.l.s8.bf16 %v483
    %v836 = vunpack.c.l.s8.bf16 %v484
    %v837 = vunpack.c.l.s8.bf16 %v485
    %v838 = vunpack.c.l.s8.bf16 %v486
    %v839 = vunpack.c.l.s8.bf16 %v487
    %v840 = vunpack.c.l.s8.bf16 %v488
    %v841 = vunpack.c.h.s8.bf16 %v481
    %v842 = vunpack.c.h.s8.bf16 %v482
    %v843 = vunpack.c.h.s8.bf16 %v483
    %v844 = vunpack.c.h.s8.bf16 %v484
    %v845 = vunpack.c.h.s8.bf16 %v485
    %v846 = vunpack.c.h.s8.bf16 %v486
    %v847 = vunpack.c.h.s8.bf16 %v487
    %v848 = vunpack.c.h.s8.bf16 %v488
    %v849 = vunpack.c.l.s8.bf16 %v489
    %v850 = vunpack.c.l.s8.bf16 %v490
    %v851 = vunpack.c.l.s8.bf16 %v491
    %v852 = vunpack.c.l.s8.bf16 %v492
    %v853 = vunpack.c.l.s8.bf16 %v493
    %v854 = vunpack.c.l.s8.bf16 %v494
    %v855 = vunpack.c.l.s8.bf16 %v495
    %v856 = vunpack.c.l.s8.bf16 %v496
    %v857 = vunpack.c.h.s8.bf16 %v489
    %v858 = vunpack.c.h.s8.bf16 %v490
    %v859 = vunpack.c.h.s8.bf16 %v491
    %v860 = vunpack.c.h.s8.bf16 %v492
    %v861 = vunpack.c.h.s8.bf16 %v493
    %v862 = vunpack.c.h.s8.bf16 %v494
    %v863 = vunpack.c.h.s8.bf16 %v495
    %v864 = vunpack.c.h.s8.bf16 %v496
    %v865 = vunpack.c.l.s8.bf16 %v497
    %v866 = vunpack.c.l.s8.bf16 %v498
    %v867 = vunpack.c.l.s8.bf16 %v499
    %v868 = vunpack.c.l.s8.bf16 %v500
    %v869 = vunpack.c.l.s8.bf16 %v501
    %v870 = vunpack.c.l.s8.bf16 %v502
    %v871 = vunpack.c.l.s8.bf16 %v503
    %v872 = vunpack.c.l.s8.bf16 %v504
    %v873 = vunpack.c.h.s8.bf16 %v497
    %v874 = vunpack.c.h.s8.bf16 %v498
    %v875 = vunpack.c.h.s8.bf16 %v499
    %v876 = vunpack.c.h.s8.bf16 %v500
    %v877 = vunpack.c.h.s8.bf16 %v501
    %v878 = vunpack.c.h.s8.bf16 %v502
    %v879 = vunpack.c.h.s8.bf16 %v503
    %v880 = vunpack.c.h.s8.bf16 %v504
    %v881 = vunpack.c.l.s8.bf16 %v505
    %v882 = vunpack.c.l.s8.bf16 %v506
    %v883 = vunpack.c.l.s8.bf16 %v507
    %v884 = vunpack.c.l.s8.bf16 %v508
    %v885 = vunpack.c.l.s8.bf16 %v509
    %v886 = vunpack.c.l.s8.bf16 %v510
    %v887 = vunpack.c.l.s8.bf16 %v511
    %v888 = vunpack.c.l.s8.bf16 %v512
    %v889 = vunpack.c.h.s8.bf16 %v505
    %v890 = vunpack.c.h.s8.bf16 %v506
    %v891 = vunpack.c.h.s8.bf16 %v507
    %v892 = vunpack.c.h.s8.bf16 %v508
    %v893 = vunpack.c.h.s8.bf16 %v509
    %v894 = vunpack.c.h.s8.bf16 %v510
    %v895 = vunpack.c.h.s8.bf16 %v511
    %v896 = vunpack.c.h.s8.bf16 %v512
    %v897 = vunpack.c.l.s8.bf16 %v513
    %v898 = vunpack.c.l.s8.bf16 %v514
    %v899 = vunpack.c.l.s8.bf16 %v515
    %v900 = vunpack.c.l.s8.bf16 %v516
    %v901 = vunpack.c.l.s8.bf16 %v517
    %v902 = vunpack.c.l.s8.bf16 %v518
    %v903 = vunpack.c.l.s8.bf16 %v519
    %v904 = vunpack.c.l.s8.bf16 %v520
    %v905 = vunpack.c.h.s8.bf16 %v513
    %v906 = vunpack.c.h.s8.bf16 %v514
    %v907 = vunpack.c.h.s8.bf16 %v515
    %v908 = vunpack.c.h.s8.bf16 %v516
    %v909 = vunpack.c.h.s8.bf16 %v517
    %v910 = vunpack.c.h.s8.bf16 %v518
    %v911 = vunpack.c.h.s8.bf16 %v519
    %v912 = vunpack.c.h.s8.bf16 %v520
    %v913 = vunpack.c.l.s8.bf16 %v521
    %v914 = vunpack.c.l.s8.bf16 %v522
    %v915 = vunpack.c.l.s8.bf16 %v523
    %v916 = vunpack.c.l.s8.bf16 %v524
    %v917 = vunpack.c.l.s8.bf16 %v525
    %v918 = vunpack.c.l.s8.bf16 %v526
    %v919 = vunpack.c.l.s8.bf16 %v527
    %v920 = vunpack.c.l.s8.bf16 %v528
    %v921 = vunpack.c.h.s8.bf16 %v521
    %v922 = vunpack.c.h.s8.bf16 %v522
    %v923 = vunpack.c.h.s8.bf16 %v523
    %v924 = vunpack.c.h.s8.bf16 %v524
    %v925 = vunpack.c.h.s8.bf16 %v525
    %v926 = vunpack.c.h.s8.bf16 %v526
    %v927 = vunpack.c.h.s8.bf16 %v527
    %v928 = vunpack.c.h.s8.bf16 %v528
    %v929 = vunpack.c.l.s8.bf16 %v529
    %v930 = vunpack.c.l.s8.bf16 %v530
    %v931 = vunpack.c.l.s8.bf16 %v531
    %v932 = vunpack.c.l.s8.bf16 %v532
    %v933 = vunpack.c.l.s8.bf16 %v533
    %v934 = vunpack.c.l.s8.bf16 %v534
    %v935 = vunpack.c.l.s8.bf16 %v535
    %v936 = vunpack.c.l.s8.bf16 %v536
    %v937 = vunpack.c.h.s8.bf16 %v529
    %v938 = vunpack.c.h.s8.bf16 %v530
    %v939 = vunpack.c.h.s8.bf16 %v531
    %v940 = vunpack.c.h.s8.bf16 %v532
    %v941 = vunpack.c.h.s8.bf16 %v533
    %v942 = vunpack.c.h.s8.bf16 %v534
    %v943 = vunpack.c.h.s8.bf16 %v535
    %v944 = vunpack.c.h.s8.bf16 %v536
    %v945 = vunpack.c.l.s8.bf16 %v537
    %v946 = vunpack.c.l.s8.bf16 %v538
    %v947 = vunpack.c.l.s8.bf16 %v539
    %v948 = vunpack.c.l.s8.bf16 %v540
    %v949 = vunpack.c.l.s8.bf16 %v541
    %v950 = vunpack.c.l.s8.bf16 %v542
    %v951 = vunpack.c.l.s8.bf16 %v543
    %v952 = vunpack.c.l.s8.bf16 %v544
    %v953 = vunpack.c.h.s8.bf16 %v537
    %v954 = vunpack.c.h.s8.bf16 %v538
    %v955 = vunpack.c.h.s8.bf16 %v539
    %v956 = vunpack.c.h.s8.bf16 %v540
    %v957 = vunpack.c.h.s8.bf16 %v541
    %v958 = vunpack.c.h.s8.bf16 %v542
    %v959 = vunpack.c.h.s8.bf16 %v543
    %v960 = vunpack.c.h.s8.bf16 %v544
    %v961 = vunpack.c.l.s8.bf16 %v545
    %v962 = vunpack.c.l.s8.bf16 %v546
    %v963 = vunpack.c.l.s8.bf16 %v547
    %v964 = vunpack.c.l.s8.bf16 %v548
    %v965 = vunpack.c.l.s8.bf16 %v549
    %v966 = vunpack.c.l.s8.bf16 %v550
    %v967 = vunpack.c.l.s8.bf16 %v551
    %v968 = vunpack.c.l.s8.bf16 %v552
    %v969 = vunpack.c.h.s8.bf16 %v545
    %v970 = vunpack.c.h.s8.bf16 %v546
    %v971 = vunpack.c.h.s8.bf16 %v547
    %v972 = vunpack.c.h.s8.bf16 %v548
    %v973 = vunpack.c.h.s8.bf16 %v549
    %v974 = vunpack.c.h.s8.bf16 %v550
    %v975 = vunpack.c.h.s8.bf16 %v551
    %v976 = vunpack.c.h.s8.bf16 %v552
    %v977 = vunpack.c.l.s8.bf16 %v553
    %v978 = vunpack.c.l.s8.bf16 %v554
    %v979 = vunpack.c.l.s8.bf16 %v555
    %v980 = vunpack.c.l.s8.bf16 %v556
    %v981 = vunpack.c.l.s8.bf16 %v557
    %v982 = vunpack.c.l.s8.bf16 %v558
    %v983 = vunpack.c.l.s8.bf16 %v559
    %v984 = vunpack.c.l.s8.bf16 %v560
    %v985 = vunpack.c.h.s8.bf16 %v553
    %v986 = vunpack.c.h.s8.bf16 %v554
    %v987 = vunpack.c.h.s8.bf16 %v555
    %v988 = vunpack.c.h.s8.bf16 %v556
    %v989 = vunpack.c.h.s8.bf16 %v557
    %v990 = vunpack.c.h.s8.bf16 %v558
    %v991 = vunpack.c.h.s8.bf16 %v559
    %v992 = vunpack.c.h.s8.bf16 %v560
    %v993 = vunpack.c.l.s8.bf16 %v561
    %v994 = vunpack.c.l.s8.bf16 %v562
    %v995 = vunpack.c.l.s8.bf16 %v563
    %v996 = vunpack.c.l.s8.bf16 %v564
    %v997 = vunpack.c.l.s8.bf16 %v565
    %v998 = vunpack.c.l.s8.bf16 %v566
    %v999 = vunpack.c.l.s8.bf16 %v567
    %v1000 = vunpack.c.l.s8.bf16 %v568
    %v1001 = vunpack.c.h.s8.bf16 %v561
    %v1002 = vunpack.c.h.s8.bf16 %v562
    %v1003 = vunpack.c.h.s8.bf16 %v563
    %v1004 = vunpack.c.h.s8.bf16 %v564
    %v1005 = vunpack.c.h.s8.bf16 %v565
    %v1006 = vunpack.c.h.s8.bf16 %v566
    %v1007 = vunpack.c.h.s8.bf16 %v567
    %v1008 = vunpack.c.h.s8.bf16 %v568
    %v1009 = vunpack.c.l.s8.bf16 %v569
    %v1010 = vunpack.c.l.s8.bf16 %v570
    %v1011 = vunpack.c.l.s8.bf16 %v571
    %v1012 = vunpack.c.l.s8.bf16 %v572
    %v1013 = vunpack.c.l.s8.bf16 %v573
    %v1014 = vunpack.c.l.s8.bf16 %v574
    %v1015 = vunpack.c.l.s8.bf16 %v575
    %v1016 = vunpack.c.l.s8.bf16 %v576
    %v1017 = vunpack.c.h.s8.bf16 %v569
    %v1018 = vunpack.c.h.s8.bf16 %v570
    %v1019 = vunpack.c.h.s8.bf16 %v571
    %v1020 = vunpack.c.h.s8.bf16 %v572
    %v1021 = vunpack.c.h.s8.bf16 %v573
    %v1022 = vunpack.c.h.s8.bf16 %v574
    %v1023 = vunpack.c.h.s8.bf16 %v575
    %v1024 = vunpack.c.h.s8.bf16 %v576
    %v1025 = vunpack.c.l.s8.bf16 %v577
    %v1026 = vunpack.c.l.s8.bf16 %v578
    %v1027 = vunpack.c.l.s8.bf16 %v579
    %v1028 = vunpack.c.l.s8.bf16 %v580
    %v1029 = vunpack.c.l.s8.bf16 %v581
    %v1030 = vunpack.c.l.s8.bf16 %v582
    %v1031 = vunpack.c.l.s8.bf16 %v583
    %v1032 = vunpack.c.l.s8.bf16 %v584
    %v1033 = vunpack.c.h.s8.bf16 %v577
    %v1034 = vunpack.c.h.s8.bf16 %v578
    %v1035 = vunpack.c.h.s8.bf16 %v579
    %v1036 = vunpack.c.h.s8.bf16 %v580
    %v1037 = vunpack.c.h.s8.bf16 %v581
    %v1038 = vunpack.c.h.s8.bf16 %v582
    %v1039 = vunpack.c.h.s8.bf16 %v583
    %v1040 = vunpack.c.h.s8.bf16 %v584
    %v1041 = vunpack.c.l.s8.bf16 %v585
    %v1042 = vunpack.c.l.s8.bf16 %v586
    %v1043 = vunpack.c.l.s8.bf16 %v587
    %v1044 = vunpack.c.l.s8.bf16 %v588
    %v1045 = vunpack.c.l.s8.bf16 %v589
    %v1046 = vunpack.c.l.s8.bf16 %v590
    %v1047 = vunpack.c.l.s8.bf16 %v591
    %v1048 = vunpack.c.l.s8.bf16 %v592
    %v1049 = vunpack.c.h.s8.bf16 %v585
    %v1050 = vunpack.c.h.s8.bf16 %v586
    %v1051 = vunpack.c.h.s8.bf16 %v587
    %v1052 = vunpack.c.h.s8.bf16 %v588
    %v1053 = vunpack.c.h.s8.bf16 %v589
    %v1054 = vunpack.c.h.s8.bf16 %v590
    %v1055 = vunpack.c.h.s8.bf16 %v591
    %v1056 = vunpack.c.h.s8.bf16 %v592
    %v1057 = vunpack.c.l.s8.bf16 %v593
    %v1058 = vunpack.c.l.s8.bf16 %v594
    %v1059 = vunpack.c.l.s8.bf16 %v595
    %v1060 = vunpack.c.l.s8.bf16 %v596
    %v1061 = vunpack.c.l.s8.bf16 %v597
    %v1062 = vunpack.c.l.s8.bf16 %v598
    %v1063 = vunpack.c.l.s8.bf16 %v599
    %v1064 = vunpack.c.l.s8.bf16 %v600
    %v1065 = vunpack.c.h.s8.bf16 %v593
    %v1066 = vunpack.c.h.s8.bf16 %v594
    %v1067 = vunpack.c.h.s8.bf16 %v595
    %v1068 = vunpack.c.h.s8.bf16 %v596
    %v1069 = vunpack.c.h.s8.bf16 %v597
    %v1070 = vunpack.c.h.s8.bf16 %v598
    %v1071 = vunpack.c.h.s8.bf16 %v599
    %v1072 = vunpack.c.h.s8.bf16 %v600
    %v1073 = vunpack.c.l.s8.bf16 %v601
    %v1074 = vunpack.c.l.s8.bf16 %v602
    %v1075 = vunpack.c.l.s8.bf16 %v603
    %v1076 = vunpack.c.l.s8.bf16 %v604
    %v1077 = vunpack.c.l.s8.bf16 %v605
    %v1078 = vunpack.c.l.s8.bf16 %v606
    %v1079 = vunpack.c.l.s8.bf16 %v607
    %v1080 = vunpack.c.l.s8.bf16 %v608
    %v1081 = vunpack.c.h.s8.bf16 %v601
    %v1082 = vunpack.c.h.s8.bf16 %v602
    %v1083 = vunpack.c.h.s8.bf16 %v603
    %v1084 = vunpack.c.h.s8.bf16 %v604
    %v1085 = vunpack.c.h.s8.bf16 %v605
    %v1086 = vunpack.c.h.s8.bf16 %v606
    %v1087 = vunpack.c.h.s8.bf16 %v607
    %v1088 = vunpack.c.h.s8.bf16 %v608
    %v1089 = vunpack.c.l.s8.bf16 %v609
    %v1090 = vunpack.c.l.s8.bf16 %v610
    %v1091 = vunpack.c.l.s8.bf16 %v611
    %v1092 = vunpack.c.l.s8.bf16 %v612
    %v1093 = vunpack.c.l.s8.bf16 %v613
    %v1094 = vunpack.c.l.s8.bf16 %v614
    %v1095 = vunpack.c.l.s8.bf16 %v615
    %v1096 = vunpack.c.l.s8.bf16 %v616
    %v1097 = vunpack.c.h.s8.bf16 %v609
    %v1098 = vunpack.c.h.s8.bf16 %v610
    %v1099 = vunpack.c.h.s8.bf16 %v611
    %v1100 = vunpack.c.h.s8.bf16 %v612
    %v1101 = vunpack.c.h.s8.bf16 %v613
    %v1102 = vunpack.c.h.s8.bf16 %v614
    %v1103 = vunpack.c.h.s8.bf16 %v615
    %v1104 = vunpack.c.h.s8.bf16 %v616
    %v1105 = vunpack.c.l.s8.bf16 %v617
    %v1106 = vunpack.c.l.s8.bf16 %v618
    %v1107 = vunpack.c.l.s8.bf16 %v619
    %v1108 = vunpack.c.l.s8.bf16 %v620
    %v1109 = vunpack.c.l.s8.bf16 %v621
    %v1110 = vunpack.c.l.s8.bf16 %v622
    %v1111 = vunpack.c.l.s8.bf16 %v623
    %v1112 = vunpack.c.l.s8.bf16 %v624
    %v1113 = vunpack.c.h.s8.bf16 %v617
    %v1114 = vunpack.c.h.s8.bf16 %v618
    %v1115 = vunpack.c.h.s8.bf16 %v619
    %v1116 = vunpack.c.h.s8.bf16 %v620
    %v1117 = vunpack.c.h.s8.bf16 %v621
    %v1118 = vunpack.c.h.s8.bf16 %v622
    %v1119 = vunpack.c.h.s8.bf16 %v623
    %v1120 = vunpack.c.h.s8.bf16 %v624
    %v1121 = vunpack.c.l.s8.bf16 %v625
    %v1122 = vunpack.c.l.s8.bf16 %v626
    %v1123 = vunpack.c.l.s8.bf16 %v627
    %v1124 = vunpack.c.l.s8.bf16 %v628
    %v1125 = vunpack.c.l.s8.bf16 %v629
    %v1126 = vunpack.c.l.s8.bf16 %v630
    %v1127 = vunpack.c.l.s8.bf16 %v631
    %v1128 = vunpack.c.l.s8.bf16 %v632
    %v1129 = vunpack.c.h.s8.bf16 %v625
    %v1130 = vunpack.c.h.s8.bf16 %v626
    %v1131 = vunpack.c.h.s8.bf16 %v627
    %v1132 = vunpack.c.h.s8.bf16 %v628
    %v1133 = vunpack.c.h.s8.bf16 %v629
    %v1134 = vunpack.c.h.s8.bf16 %v630
    %v1135 = vunpack.c.h.s8.bf16 %v631
    %v1136 = vunpack.c.h.s8.bf16 %v632
    %v1137 = vunpack.c.l.s8.bf16 %v633
    %v1138 = vunpack.c.l.s8.bf16 %v634
    %v1139 = vunpack.c.l.s8.bf16 %v635
    %v1140 = vunpack.c.l.s8.bf16 %v636
    %v1141 = vunpack.c.l.s8.bf16 %v637
    %v1142 = vunpack.c.l.s8.bf16 %v638
    %v1143 = vunpack.c.l.s8.bf16 %v639
    %v1144 = vunpack.c.l.s8.bf16 %v640
    %v1145 = vunpack.c.h.s8.bf16 %v633
    %v1146 = vunpack.c.h.s8.bf16 %v634
    %v1147 = vunpack.c.h.s8.bf16 %v635
    %v1148 = vunpack.c.h.s8.bf16 %v636
    %v1149 = vunpack.c.h.s8.bf16 %v637
    %v1150 = vunpack.c.h.s8.bf16 %v638
    %v1151 = vunpack.c.h.s8.bf16 %v639
    %v1152 = vunpack.c.h.s8.bf16 %v640
    %v1153 = vpack.c.bf16 %v377, %v369
    %v1154 = vpack.c.bf16 %v378, %v370
    %v1155 = vpack.c.bf16 %v379, %v371
    %v1156 = vpack.c.bf16 %v380, %v372
    %v1157 = vpack.c.bf16 %v381, %v373
    %v1158 = vpack.c.bf16 %v382, %v374
    %v1159 = vpack.c.bf16 %v383, %v375
    %v1160 = vpack.c.bf16 %v384, %v376
    %1161 = vmatprep.subr.bf16.mxu0 %v698
    %1162 = vmatpush1.bf16.msra.mxu0 %v697
    %1163 = vmatprep.subr.bf16.mxu0 %v690
    %1164 = vmatpush1.bf16.msra.mxu0 %v689
    %1165 = vmatprep.subr.bf16.mxu0 %v682
    %1166 = vmatpush1.bf16.msra.mxu0 %v681
    %1167 = vmatprep.subr.bf16.mxu0 %v674
    %1168 = vmatpush1.bf16.msra.mxu0 %v673
    %1169 = vmatprep.subr.bf16.mxu0 %v666
    %1170 = vmatpush1.bf16.msra.mxu0 %v665
    %1171 = vmatprep.subr.bf16.mxu0 %v658
    %1172 = vmatpush1.bf16.msra.mxu0 %v657
    %1173 = vmatprep.subr.bf16.mxu0 %v650
    %1174 = vmatpush1.bf16.msra.mxu0 %v649
    %1175 = vmatprep.subr.bf16.mxu0 %v642
    %1176 = vmatpush1.bf16.msra.mxu0 %v641
    %1177 = vmatprep.subr.bf16.mxu0 %v762
    %1178 = vmatpush2.bf16.msra.mxu0 %v761
    %1179 = vmatprep.subr.bf16.mxu0 %v754
    %1180 = vmatpush2.bf16.msra.mxu0 %v753
    %1181 = vmatprep.subr.bf16.mxu0 %v746
    %1182 = vmatpush2.bf16.msra.mxu0 %v745
    %1183 = vmatprep.subr.bf16.mxu0 %v738
    %1184 = vmatpush2.bf16.msra.mxu0 %v737
    %1185 = vmatprep.subr.bf16.mxu0 %v730
    %1186 = vmatpush2.bf16.msra.mxu0 %v729
    %1187 = vmatprep.subr.bf16.mxu0 %v722
    %1188 = vmatpush2.bf16.msra.mxu0 %v721
    %1189 = vmatprep.subr.bf16.mxu0 %v714
    %1190 = vmatpush2.bf16.msra.mxu0 %v713
    %1191 = vmatprep.subr.bf16.mxu0 %v706
    %1192 = vmatpush2.bf16.msra.mxu0 %v705
    %1193 = vmatprep.mubr.bf16.mxu0 %v1154
    %1194 = vmatmul.mubr.bf16.gmra.mxu0 %v1153
    %v1195 = vpop.f32.mrf.mxu0
    %v1196 = vadd.f32 0.0, %v1195
    %v1197 = vpop.f32.mrf.mxu0
    %v1198 = vadd.f32 0.0, %v1197
    %v1199 = vpop.f32.mrf.mxu0
    %v1200 = vadd.f32 0.0, %v1199
    %v1201 = vpop.f32.mrf.mxu0
    %v1202 = vadd.f32 0.0, %v1201
    %1203 = vdwg.mxu0
    %1204 = vmatprep.subr.bf16.mxu0 %v826
    %1205 = vmatpush1.bf16.msra.mxu0 %v825
    %1206 = vmatprep.subr.bf16.mxu0 %v818
    %1207 = vmatpush1.bf16.msra.mxu0 %v817
    %1208 = vmatprep.subr.bf16.mxu0 %v810
    %1209 = vmatpush1.bf16.msra.mxu0 %v809
    %1210 = vmatprep.subr.bf16.mxu0 %v802
    %1211 = vmatpush1.bf16.msra.mxu0 %v801
    %1212 = vmatprep.subr.bf16.mxu0 %v794
    %1213 = vmatpush1.bf16.msra.mxu0 %v793
    %1214 = vmatprep.subr.bf16.mxu0 %v786
    %1215 = vmatpush1.bf16.msra.mxu0 %v785
    %1216 = vmatprep.subr.bf16.mxu0 %v778
    %1217 = vmatpush1.bf16.msra.mxu0 %v777
    %1218 = vmatprep.subr.bf16.mxu0 %v770
    %1219 = vmatpush1.bf16.msra.mxu0 %v769
    %1220 = vmatprep.subr.bf16.mxu0 %v890
    %1221 = vmatpush2.bf16.msra.mxu0 %v889
    %1222 = vmatprep.subr.bf16.mxu0 %v882
    %1223 = vmatpush2.bf16.msra.mxu0 %v881
    %1224 = vmatprep.subr.bf16.mxu0 %v874
    %1225 = vmatpush2.bf16.msra.mxu0 %v873
    %1226 = vmatprep.subr.bf16.mxu0 %v866
    %1227 = vmatpush2.bf16.msra.mxu0 %v865
    %1228 = vmatprep.subr.bf16.mxu0 %v858
    %1229 = vmatpush2.bf16.msra.mxu0 %v857
    %1230 = vmatprep.subr.bf16.mxu0 %v850
    %1231 = vmatpush2.bf16.msra.mxu0 %v849
    %1232 = vmatprep.subr.bf16.mxu0 %v842
    %1233 = vmatpush2.bf16.msra.mxu0 %v841
    %1234 = vmatprep.subr.bf16.mxu0 %v834
    %1235 = vmatpush2.bf16.msra.mxu0 %v833
    %1236 = vmatprep.mubr.bf16.mxu0 %v1156
    %1237 = vmatmul.mubr.bf16.gmra.mxu0 %v1155
    %v1238 = vpop.f32.mrf.mxu0
    %v1239 = vadd.f32 %v1196, %v1238
    %v1240 = vpop.f32.mrf.mxu0
    %v1241 = vadd.f32 %v1198, %v1240
    %v1242 = vpop.f32.mrf.mxu0
    %v1243 = vadd.f32 %v1200, %v1242
    %v1244 = vpop.f32.mrf.mxu0
    %v1245 = vadd.f32 %v1202, %v1244
    %1246 = vdwg.mxu0
    %1247 = vmatprep.subr.bf16.mxu0 %v954
    %1248 = vmatpush1.bf16.msra.mxu0 %v953
    %1249 = vmatprep.subr.bf16.mxu0 %v946
    %1250 = vmatpush1.bf16.msra.mxu0 %v945
    %1251 = vmatprep.subr.bf16.mxu0 %v938
    %1252 = vmatpush1.bf16.msra.mxu0 %v937
    %1253 = vmatprep.subr.bf16.mxu0 %v930
    %1254 = vmatpush1.bf16.msra.mxu0 %v929
    %1255 = vmatprep.subr.bf16.mxu0 %v922
    %1256 = vmatpush1.bf16.msra.mxu0 %v921
    %1257 = vmatprep.subr.bf16.mxu0 %v914
    %1258 = vmatpush1.bf16.msra.mxu0 %v913
    %1259 = vmatprep.subr.bf16.mxu0 %v906
    %1260 = vmatpush1.bf16.msra.mxu0 %v905
    %1261 = vmatprep.subr.bf16.mxu0 %v898
    %1262 = vmatpush1.bf16.msra.mxu0 %v897
    %1263 = vmatprep.subr.bf16.mxu0 %v1018
    %1264 = vmatpush2.bf16.msra.mxu0 %v1017
    %1265 = vmatprep.subr.bf16.mxu0 %v1010
    %1266 = vmatpush2.bf16.msra.mxu0 %v1009
    %1267 = vmatprep.subr.bf16.mxu0 %v1002
    %1268 = vmatpush2.bf16.msra.mxu0 %v1001
    %1269 = vmatprep.subr.bf16.mxu0 %v994
    %1270 = vmatpush2.bf16.msra.mxu0 %v993
    %1271 = vmatprep.subr.bf16.mxu0 %v986
    %1272 = vmatpush2.bf16.msra.mxu0 %v985
    %1273 = vmatprep.subr.bf16.mxu0 %v978
    %1274 = vmatpush2.bf16.msra.mxu0 %v977
    %1275 = vmatprep.subr.bf16.mxu0 %v970
    %1276 = vmatpush2.bf16.msra.mxu0 %v969
    %1277 = vmatprep.subr.bf16.mxu0 %v962
    %1278 = vmatpush2.bf16.msra.mxu0 %v961
    %1279 = vmatprep.mubr.bf16.mxu0 %v1158
    %1280 = vmatmul.mubr.bf16.gmra.mxu0 %v1157
    %v1281 = vpop.f32.mrf.mxu0
    %v1282 = vadd.f32 %v1239, %v1281
    %v1283 = vpop.f32.mrf.mxu0
    %v1284 = vadd.f32 %v1241, %v1283
    %v1285 = vpop.f32.mrf.mxu0
    %v1286 = vadd.f32 %v1243, %v1285
    %v1287 = vpop.f32.mrf.mxu0
    %v1288 = vadd.f32 %v1245, %v1287
    %1289 = vdwg.mxu0
    %1290 = vmatprep.subr.bf16.mxu0 %v1082
    %1291 = vmatpush1.bf16.msra.mxu0 %v1081
    %1292 = vmatprep.subr.bf16.mxu0 %v1074
    %1293 = vmatpush1.bf16.msra.mxu0 %v1073
    %1294 = vmatprep.subr.bf16.mxu0 %v1066
    %1295 = vmatpush1.bf16.msra.mxu0 %v1065
    %1296 = vmatprep.subr.bf16.mxu0 %v1058
    %1297 = vmatpush1.bf16.msra.mxu0 %v1057
    %1298 = vmatprep.subr.bf16.mxu0 %v1050
    %1299 = vmatpush1.bf16.msra.mxu0 %v1049
    %1300 = vmatprep.subr.bf16.mxu0 %v1042
    %1301 = vmatpush1.bf16.msra.mxu0 %v1041
    %1302 = vmatprep.subr.bf16.mxu0 %v1034
    %1303 = vmatpush1.bf16.msra.mxu0 %v1033
    %1304 = vmatprep.subr.bf16.mxu0 %v1026
    %1305 = vmatpush1.bf16.msra.mxu0 %v1025
    %1306 = vmatprep.subr.bf16.mxu0 %v1146
    %1307 = vmatpush2.bf16.msra.mxu0 %v1145
    %1308 = vmatprep.subr.bf16.mxu0 %v1138
    %1309 = vmatpush2.bf16.msra.mxu0 %v1137
    %1310 = vmatprep.subr.bf16.mxu0 %v1130
    %1311 = vmatpush2.bf16.msra.mxu0 %v1129
    %1312 = vmatprep.subr.bf16.mxu0 %v1122
    %1313 = vmatpush2.bf16.msra.mxu0 %v1121
    %1314 = vmatprep.subr.bf16.mxu0 %v1114
    %1315 = vmatpush2.bf16.msra.mxu0 %v1113
    %1316 = vmatprep.subr.bf16.mxu0 %v1106
    %1317 = vmatpush2.bf16.msra.mxu0 %v1105
    %1318 = vmatprep.subr.bf16.mxu0 %v1098
    %1319 = vmatpush2.bf16.msra.mxu0 %v1097
    %1320 = vmatprep.subr.bf16.mxu0 %v1090
    %1321 = vmatpush2.bf16.msra.mxu0 %v1089
    %1322 = vmatprep.mubr.bf16.mxu0 %v1160
    %1323 = vmatmul.mubr.bf16.gmra.mxu0 %v1159
    %v1324 = vpop.f32.mrf.mxu0
    %v1325 = vadd.f32 %v1282, %v1324
    %v1326 = vpop.f32.mrf.mxu0
    %v1327 = vadd.f32 %v1284, %v1326
    %v1328 = vpop.f32.mrf.mxu0
    %v1329 = vadd.f32 %v1286, %v1328
    %v1330 = vpop.f32.mrf.mxu0
    %v1331 = vadd.f32 %v1288, %v1330
    %1332 = vdwg.mxu0
    %1333 = vmatprep.subr.bf16.mxu0 %v700
    %1334 = vmatpush1.bf16.msra.mxu0 %v699
    %1335 = vmatprep.subr.bf16.mxu0 %v692
    %1336 = vmatpush1.bf16.msra.mxu0 %v691
    %1337 = vmatprep.subr.bf16.mxu0 %v684
    %1338 = vmatpush1.bf16.msra.mxu0 %v683
    %1339 = vmatprep.subr.bf16.mxu0 %v676
    %1340 = vmatpush1.bf16.msra.mxu0 %v675
    %1341 = vmatprep.subr.bf16.mxu0 %v668
    %1342 = vmatpush1.bf16.msra.mxu0 %v667
    %1343 = vmatprep.subr.bf16.mxu0 %v660
    %1344 = vmatpush1.bf16.msra.mxu0 %v659
    %1345 = vmatprep.subr.bf16.mxu0 %v652
    %1346 = vmatpush1.bf16.msra.mxu0 %v651
    %1347 = vmatprep.subr.bf16.mxu0 %v644
    %1348 = vmatpush1.bf16.msra.mxu0 %v643
    %1349 = vmatprep.subr.bf16.mxu0 %v764
    %1350 = vmatpush2.bf16.msra.mxu0 %v763
    %1351 = vmatprep.subr.bf16.mxu0 %v756
    %1352 = vmatpush2.bf16.msra.mxu0 %v755
    %1353 = vmatprep.subr.bf16.mxu0 %v748
    %1354 = vmatpush2.bf16.msra.mxu0 %v747
    %1355 = vmatprep.subr.bf16.mxu0 %v740
    %1356 = vmatpush2.bf16.msra.mxu0 %v739
    %1357 = vmatprep.subr.bf16.mxu0 %v732
    %1358 = vmatpush2.bf16.msra.mxu0 %v731
    %1359 = vmatprep.subr.bf16.mxu0 %v724
    %1360 = vmatpush2.bf16.msra.mxu0 %v723
    %1361 = vmatprep.subr.bf16.mxu0 %v716
    %1362 = vmatpush2.bf16.msra.mxu0 %v715
    %1363 = vmatprep.subr.bf16.mxu0 %v708
    %1364 = vmatpush2.bf16.msra.mxu0 %v707
    %1365 = vmatprep.mubr.bf16.mxu0 %v1154
    %1366 = vmatmul.mubr.bf16.gmra.mxu0 %v1153
    %v1367 = vpop.f32.mrf.mxu0
    %v1368 = vadd.f32 0.0, %v1367
    %v1369 = vpop.f32.mrf.mxu0
    %v1370 = vadd.f32 0.0, %v1369
    %v1371 = vpop.f32.mrf.mxu0
    %v1372 = vadd.f32 0.0, %v1371
    %v1373 = vpop.f32.mrf.mxu0
    %v1374 = vadd.f32 0.0, %v1373
    %1375 = vdwg.mxu0
    %1376 = vmatprep.subr.bf16.mxu0 %v828
    %1377 = vmatpush1.bf16.msra.mxu0 %v827
    %1378 = vmatprep.subr.bf16.mxu0 %v820
    %1379 = vmatpush1.bf16.msra.mxu0 %v819
    %1380 = vmatprep.subr.bf16.mxu0 %v812
    %1381 = vmatpush1.bf16.msra.mxu0 %v811
    %1382 = vmatprep.subr.bf16.mxu0 %v804
    %1383 = vmatpush1.bf16.msra.mxu0 %v803
    %1384 = vmatprep.subr.bf16.mxu0 %v796
    %1385 = vmatpush1.bf16.msra.mxu0 %v795
    %1386 = vmatprep.subr.bf16.mxu0 %v788
    %1387 = vmatpush1.bf16.msra.mxu0 %v787
    %1388 = vmatprep.subr.bf16.mxu0 %v780
    %1389 = vmatpush1.bf16.msra.mxu0 %v779
    %1390 = vmatprep.subr.bf16.mxu0 %v772
    %1391 = vmatpush1.bf16.msra.mxu0 %v771
    %1392 = vmatprep.subr.bf16.mxu0 %v892
    %1393 = vmatpush2.bf16.msra.mxu0 %v891
    %1394 = vmatprep.subr.bf16.mxu0 %v884
    %1395 = vmatpush2.bf16.msra.mxu0 %v883
    %1396 = vmatprep.subr.bf16.mxu0 %v876
    %1397 = vmatpush2.bf16.msra.mxu0 %v875
    %1398 = vmatprep.subr.bf16.mxu0 %v868
    %1399 = vmatpush2.bf16.msra.mxu0 %v867
    %1400 = vmatprep.subr.bf16.mxu0 %v860
    %1401 = vmatpush2.bf16.msra.mxu0 %v859
    %1402 = vmatprep.subr.bf16.mxu0 %v852
    %1403 = vmatpush2.bf16.msra.mxu0 %v851
    %1404 = vmatprep.subr.bf16.mxu0 %v844
    %1405 = vmatpush2.bf16.msra.mxu0 %v843
    %1406 = vmatprep.subr.bf16.mxu0 %v836
    %1407 = vmatpush2.bf16.msra.mxu0 %v835
    %1408 = vmatprep.mubr.bf16.mxu0 %v1156
    %1409 = vmatmul.mubr.bf16.gmra.mxu0 %v1155
    %v1410 = vpop.f32.mrf.mxu0
    %v1411 = vadd.f32 %v1368, %v1410
    %v1412 = vpop.f32.mrf.mxu0
    %v1413 = vadd.f32 %v1370, %v1412
    %v1414 = vpop.f32.mrf.mxu0
    %v1415 = vadd.f32 %v1372, %v1414
    %v1416 = vpop.f32.mrf.mxu0
    %v1417 = vadd.f32 %v1374, %v1416
    %1418 = vdwg.mxu0
    %1419 = vmatprep.subr.bf16.mxu0 %v956
    %1420 = vmatpush1.bf16.msra.mxu0 %v955
    %1421 = vmatprep.subr.bf16.mxu0 %v948
    %1422 = vmatpush1.bf16.msra.mxu0 %v947
    %1423 = vmatprep.subr.bf16.mxu0 %v940
    %1424 = vmatpush1.bf16.msra.mxu0 %v939
    %1425 = vmatprep.subr.bf16.mxu0 %v932
    %1426 = vmatpush1.bf16.msra.mxu0 %v931
    %1427 = vmatprep.subr.bf16.mxu0 %v924
    %1428 = vmatpush1.bf16.msra.mxu0 %v923
    %1429 = vmatprep.subr.bf16.mxu0 %v916
    %1430 = vmatpush1.bf16.msra.mxu0 %v915
    %1431 = vmatprep.subr.bf16.mxu0 %v908
    %1432 = vmatpush1.bf16.msra.mxu0 %v907
    %1433 = vmatprep.subr.bf16.mxu0 %v900
    %1434 = vmatpush1.bf16.msra.mxu0 %v899
    %1435 = vmatprep.subr.bf16.mxu0 %v1020
    %1436 = vmatpush2.bf16.msra.mxu0 %v1019
    %1437 = vmatprep.subr.bf16.mxu0 %v1012
    %1438 = vmatpush2.bf16.msra.mxu0 %v1011
    %1439 = vmatprep.subr.bf16.mxu0 %v1004
    %1440 = vmatpush2.bf16.msra.mxu0 %v1003
    %1441 = vmatprep.subr.bf16.mxu0 %v996
    %1442 = vmatpush2.bf16.msra.mxu0 %v995
    %1443 = vmatprep.subr.bf16.mxu0 %v988
    %1444 = vmatpush2.bf16.msra.mxu0 %v987
    %1445 = vmatprep.subr.bf16.mxu0 %v980
    %1446 = vmatpush2.bf16.msra.mxu0 %v979
    %1447 = vmatprep.subr.bf16.mxu0 %v972
    %1448 = vmatpush2.bf16.msra.mxu0 %v971
    %1449 = vmatprep.subr.bf16.mxu0 %v964
    %1450 = vmatpush2.bf16.msra.mxu0 %v963
    %1451 = vmatprep.mubr.bf16.mxu0 %v1158
    %1452 = vmatmul.mubr.bf16.gmra.mxu0 %v1157
    %v1453 = vpop.f32.mrf.mxu0
    %v1454 = vadd.f32 %v1411, %v1453
    %v1455 = vpop.f32.mrf.mxu0
    %v1456 = vadd.f32 %v1413, %v1455
    %v1457 = vpop.f32.mrf.mxu0
    %v1458 = vadd.f32 %v1415, %v1457
    %v1459 = vpop.f32.mrf.mxu0
    %v1460 = vadd.f32 %v1417, %v1459
    %1461 = vdwg.mxu0
    %1462 = vmatprep.subr.bf16.mxu0 %v1084
    %1463 = vmatpush1.bf16.msra.mxu0 %v1083
    %1464 = vmatprep.subr.bf16.mxu0 %v1076
    %1465 = vmatpush1.bf16.msra.mxu0 %v1075
    %1466 = vmatprep.subr.bf16.mxu0 %v1068
    %1467 = vmatpush1.bf16.msra.mxu0 %v1067
    %1468 = vmatprep.subr.bf16.mxu0 %v1060
    %1469 = vmatpush1.bf16.msra.mxu0 %v1059
    %1470 = vmatprep.subr.bf16.mxu0 %v1052
    %1471 = vmatpush1.bf16.msra.mxu0 %v1051
    %1472 = vmatprep.subr.bf16.mxu0 %v1044
    %1473 = vmatpush1.bf16.msra.mxu0 %v1043
    %1474 = vmatprep.subr.bf16.mxu0 %v1036
    %1475 = vmatpush1.bf16.msra.mxu0 %v1035
    %1476 = vmatprep.subr.bf16.mxu0 %v1028
    %1477 = vmatpush1.bf16.msra.mxu0 %v1027
    %1478 = vmatprep.subr.bf16.mxu0 %v1148
    %1479 = vmatpush2.bf16.msra.mxu0 %v1147
    %1480 = vmatprep.subr.bf16.mxu0 %v1140
    %1481 = vmatpush2.bf16.msra.mxu0 %v1139
    %1482 = vmatprep.subr.bf16.mxu0 %v1132
    %1483 = vmatpush2.bf16.msra.mxu0 %v1131
    %1484 = vmatprep.subr.bf16.mxu0 %v1124
    %1485 = vmatpush2.bf16.msra.mxu0 %v1123
    %1486 = vmatprep.subr.bf16.mxu0 %v1116
    %1487 = vmatpush2.bf16.msra.mxu0 %v1115
    %1488 = vmatprep.subr.bf16.mxu0 %v1108
    %1489 = vmatpush2.bf16.msra.mxu0 %v1107
    %1490 = vmatprep.subr.bf16.mxu0 %v1100
    %1491 = vmatpush2.bf16.msra.mxu0 %v1099
    %1492 = vmatprep.subr.bf16.mxu0 %v1092
    %1493 = vmatpush2.bf16.msra.mxu0 %v1091
    %1494 = vmatprep.mubr.bf16.mxu0 %v1160
    %1495 = vmatmul.mubr.bf16.gmra.mxu0 %v1159
    %v1496 = vpop.f32.mrf.mxu0
    %v1497 = vadd.f32 %v1454, %v1496
    %v1498 = vpop.f32.mrf.mxu0
    %v1499 = vadd.f32 %v1456, %v1498
    %v1500 = vpop.f32.mrf.mxu0
    %v1501 = vadd.f32 %v1458, %v1500
    %v1502 = vpop.f32.mrf.mxu0
    %v1503 = vadd.f32 %v1460, %v1502
    %1504 = vdwg.mxu0
    %1505 = vmatprep.subr.bf16.mxu0 %v702
    %1506 = vmatpush1.bf16.msra.mxu0 %v701
    %1507 = vmatprep.subr.bf16.mxu0 %v694
    %1508 = vmatpush1.bf16.msra.mxu0 %v693
    %1509 = vmatprep.subr.bf16.mxu0 %v686
    %1510 = vmatpush1.bf16.msra.mxu0 %v685
    %1511 = vmatprep.subr.bf16.mxu0 %v678
    %1512 = vmatpush1.bf16.msra.mxu0 %v677
    %1513 = vmatprep.subr.bf16.mxu0 %v670
    %1514 = vmatpush1.bf16.msra.mxu0 %v669
    %1515 = vmatprep.subr.bf16.mxu0 %v662
    %1516 = vmatpush1.bf16.msra.mxu0 %v661
    %1517 = vmatprep.subr.bf16.mxu0 %v654
    %1518 = vmatpush1.bf16.msra.mxu0 %v653
    %1519 = vmatprep.subr.bf16.mxu0 %v646
    %1520 = vmatpush1.bf16.msra.mxu0 %v645
    %1521 = vmatprep.subr.bf16.mxu0 %v766
    %1522 = vmatpush2.bf16.msra.mxu0 %v765
    %1523 = vmatprep.subr.bf16.mxu0 %v758
    %1524 = vmatpush2.bf16.msra.mxu0 %v757
    %1525 = vmatprep.subr.bf16.mxu0 %v750
    %1526 = vmatpush2.bf16.msra.mxu0 %v749
    %1527 = vmatprep.subr.bf16.mxu0 %v742
    %1528 = vmatpush2.bf16.msra.mxu0 %v741
    %1529 = vmatprep.subr.bf16.mxu0 %v734
    %1530 = vmatpush2.bf16.msra.mxu0 %v733
    %1531 = vmatprep.subr.bf16.mxu0 %v726
    %1532 = vmatpush2.bf16.msra.mxu0 %v725
    %1533 = vmatprep.subr.bf16.mxu0 %v718
    %1534 = vmatpush2.bf16.msra.mxu0 %v717
    %1535 = vmatprep.subr.bf16.mxu0 %v710
    %1536 = vmatpush2.bf16.msra.mxu0 %v709
    %1537 = vmatprep.mubr.bf16.mxu0 %v1154
    %1538 = vmatmul.mubr.bf16.gmra.mxu0 %v1153
    %v1539 = vpop.f32.mrf.mxu0
    %v1540 = vadd.f32 0.0, %v1539
    %v1541 = vpop.f32.mrf.mxu0
    %v1542 = vadd.f32 0.0, %v1541
    %v1543 = vpop.f32.mrf.mxu0
    %v1544 = vadd.f32 0.0, %v1543
    %v1545 = vpop.f32.mrf.mxu0
    %v1546 = vadd.f32 0.0, %v1545
    %1547 = vdwg.mxu0
    %1548 = vmatprep.subr.bf16.mxu0 %v830
    %1549 = vmatpush1.bf16.msra.mxu0 %v829
    %1550 = vmatprep.subr.bf16.mxu0 %v822
    %1551 = vmatpush1.bf16.msra.mxu0 %v821
    %1552 = vmatprep.subr.bf16.mxu0 %v814
    %1553 = vmatpush1.bf16.msra.mxu0 %v813
    %1554 = vmatprep.subr.bf16.mxu0 %v806
    %1555 = vmatpush1.bf16.msra.mxu0 %v805
    %1556 = vmatprep.subr.bf16.mxu0 %v798
    %1557 = vmatpush1.bf16.msra.mxu0 %v797
    %1558 = vmatprep.subr.bf16.mxu0 %v790
    %1559 = vmatpush1.bf16.msra.mxu0 %v789
    %1560 = vmatprep.subr.bf16.mxu0 %v782
    %1561 = vmatpush1.bf16.msra.mxu0 %v781
    %1562 = vmatprep.subr.bf16.mxu0 %v774
    %1563 = vmatpush1.bf16.msra.mxu0 %v773
    %1564 = vmatprep.subr.bf16.mxu0 %v894
    %1565 = vmatpush2.bf16.msra.mxu0 %v893
    %1566 = vmatprep.subr.bf16.mxu0 %v886
    %1567 = vmatpush2.bf16.msra.mxu0 %v885
    %1568 = vmatprep.subr.bf16.mxu0 %v878
    %1569 = vmatpush2.bf16.msra.mxu0 %v877
    %1570 = vmatprep.subr.bf16.mxu0 %v870
    %1571 = vmatpush2.bf16.msra.mxu0 %v869
    %1572 = vmatprep.subr.bf16.mxu0 %v862
    %1573 = vmatpush2.bf16.msra.mxu0 %v861
    %1574 = vmatprep.subr.bf16.mxu0 %v854
    %1575 = vmatpush2.bf16.msra.mxu0 %v853
    %1576 = vmatprep.subr.bf16.mxu0 %v846
    %1577 = vmatpush2.bf16.msra.mxu0 %v845
    %1578 = vmatprep.subr.bf16.mxu0 %v838
    %1579 = vmatpush2.bf16.msra.mxu0 %v837
    %1580 = vmatprep.mubr.bf16.mxu0 %v1156
    %1581 = vmatmul.mubr.bf16.gmra.mxu0 %v1155
    %v1582 = vpop.f32.mrf.mxu0
    %v1583 = vadd.f32 %v1540, %v1582
    %v1584 = vpop.f32.mrf.mxu0
    %v1585 = vadd.f32 %v1542, %v1584
    %v1586 = vpop.f32.mrf.mxu0
    %v1587 = vadd.f32 %v1544, %v1586
    %v1588 = vpop.f32.mrf.mxu0
    %v1589 = vadd.f32 %v1546, %v1588
    %1590 = vdwg.mxu0
    %1591 = vmatprep.subr.bf16.mxu0 %v958
    %1592 = vmatpush1.bf16.msra.mxu0 %v957
    %1593 = vmatprep.subr.bf16.mxu0 %v950
    %1594 = vmatpush1.bf16.msra.mxu0 %v949
    %1595 = vmatprep.subr.bf16.mxu0 %v942
    %1596 = vmatpush1.bf16.msra.mxu0 %v941
    %1597 = vmatprep.subr.bf16.mxu0 %v934
    %1598 = vmatpush1.bf16.msra.mxu0 %v933
    %1599 = vmatprep.subr.bf16.mxu0 %v926
    %1600 = vmatpush1.bf16.msra.mxu0 %v925
    %1601 = vmatprep.subr.bf16.mxu0 %v918
    %1602 = vmatpush1.bf16.msra.mxu0 %v917
    %1603 = vmatprep.subr.bf16.mxu0 %v910
    %1604 = vmatpush1.bf16.msra.mxu0 %v909
    %1605 = vmatprep.subr.bf16.mxu0 %v902
    %1606 = vmatpush1.bf16.msra.mxu0 %v901
    %1607 = vmatprep.subr.bf16.mxu0 %v1022
    %1608 = vmatpush2.bf16.msra.mxu0 %v1021
    %1609 = vmatprep.subr.bf16.mxu0 %v1014
    %1610 = vmatpush2.bf16.msra.mxu0 %v1013
    %1611 = vmatprep.subr.bf16.mxu0 %v1006
    %1612 = vmatpush2.bf16.msra.mxu0 %v1005
    %1613 = vmatprep.subr.bf16.mxu0 %v998
    %1614 = vmatpush2.bf16.msra.mxu0 %v997
    %1615 = vmatprep.subr.bf16.mxu0 %v990
    %1616 = vmatpush2.bf16.msra.mxu0 %v989
    %1617 = vmatprep.subr.bf16.mxu0 %v982
    %1618 = vmatpush2.bf16.msra.mxu0 %v981
    %1619 = vmatprep.subr.bf16.mxu0 %v974
    %1620 = vmatpush2.bf16.msra.mxu0 %v973
    %1621 = vmatprep.subr.bf16.mxu0 %v966
    %1622 = vmatpush2.bf16.msra.mxu0 %v965
    %1623 = vmatprep.mubr.bf16.mxu0 %v1158
    %1624 = vmatmul.mubr.bf16.gmra.mxu0 %v1157
    %v1625 = vpop.f32.mrf.mxu0
    %v1626 = vadd.f32 %v1583, %v1625
    %v1627 = vpop.f32.mrf.mxu0
    %v1628 = vadd.f32 %v1585, %v1627
    %v1629 = vpop.f32.mrf.mxu0
    %v1630 = vadd.f32 %v1587, %v1629
    %v1631 = vpop.f32.mrf.mxu0
    %v1632 = vadd.f32 %v1589, %v1631
    %1633 = vdwg.mxu0
    %1634 = vmatprep.subr.bf16.mxu0 %v1086
    %1635 = vmatpush1.bf16.msra.mxu0 %v1085
    %1636 = vmatprep.subr.bf16.mxu0 %v1078
    %1637 = vmatpush1.bf16.msra.mxu0 %v1077
    %1638 = vmatprep.subr.bf16.mxu0 %v1070
    %1639 = vmatpush1.bf16.msra.mxu0 %v1069
    %1640 = vmatprep.subr.bf16.mxu0 %v1062
    %1641 = vmatpush1.bf16.msra.mxu0 %v1061
    %1642 = vmatprep.subr.bf16.mxu0 %v1054
    %1643 = vmatpush1.bf16.msra.mxu0 %v1053
    %1644 = vmatprep.subr.bf16.mxu0 %v1046
    %1645 = vmatpush1.bf16.msra.mxu0 %v1045
    %1646 = vmatprep.subr.bf16.mxu0 %v1038
    %1647 = vmatpush1.bf16.msra.mxu0 %v1037
    %1648 = vmatprep.subr.bf16.mxu0 %v1030
    %1649 = vmatpush1.bf16.msra.mxu0 %v1029
    %1650 = vmatprep.subr.bf16.mxu0 %v1150
    %1651 = vmatpush2.bf16.msra.mxu0 %v1149
    %1652 = vmatprep.subr.bf16.mxu0 %v1142
    %1653 = vmatpush2.bf16.msra.mxu0 %v1141
    %1654 = vmatprep.subr.bf16.mxu0 %v1134
    %1655 = vmatpush2.bf16.msra.mxu0 %v1133
    %1656 = vmatprep.subr.bf16.mxu0 %v1126
    %1657 = vmatpush2.bf16.msra.mxu0 %v1125
    %1658 = vmatprep.subr.bf16.mxu0 %v1118
    %1659 = vmatpush2.bf16.msra.mxu0 %v1117
    %1660 = vmatprep.subr.bf16.mxu0 %v1110
    %1661 = vmatpush2.bf16.msra.mxu0 %v1109
    %1662 = vmatprep.subr.bf16.mxu0 %v1102
    %1663 = vmatpush2.bf16.msra.mxu0 %v1101
    %1664 = vmatprep.subr.bf16.mxu0 %v1094
    %1665 = vmatpush2.bf16.msra.mxu0 %v1093
    %1666 = vmatprep.mubr.bf16.mxu0 %v1160
    %1667 = vmatmul.mubr.bf16.gmra.mxu0 %v1159
    %v1668 = vpop.f32.mrf.mxu0
    %v1669 = vadd.f32 %v1626, %v1668
    %v1670 = vpop.f32.mrf.mxu0
    %v1671 = vadd.f32 %v1628, %v1670
    %v1672 = vpop.f32.mrf.mxu0
    %v1673 = vadd.f32 %v1630, %v1672
    %v1674 = vpop.f32.mrf.mxu0
    %v1675 = vadd.f32 %v1632, %v1674
    %1676 = vdwg.mxu0
    %1677 = vmatprep.subr.bf16.mxu0 %v704
    %1678 = vmatpush1.bf16.msra.mxu0 %v703
    %1679 = vmatprep.subr.bf16.mxu0 %v696
    %1680 = vmatpush1.bf16.msra.mxu0 %v695
    %1681 = vmatprep.subr.bf16.mxu0 %v688
    %1682 = vmatpush1.bf16.msra.mxu0 %v687
    %1683 = vmatprep.subr.bf16.mxu0 %v680
    %1684 = vmatpush1.bf16.msra.mxu0 %v679
    %1685 = vmatprep.subr.bf16.mxu0 %v672
    %1686 = vmatpush1.bf16.msra.mxu0 %v671
    %1687 = vmatprep.subr.bf16.mxu0 %v664
    %1688 = vmatpush1.bf16.msra.mxu0 %v663
    %1689 = vmatprep.subr.bf16.mxu0 %v656
    %1690 = vmatpush1.bf16.msra.mxu0 %v655
    %1691 = vmatprep.subr.bf16.mxu0 %v648
    %1692 = vmatpush1.bf16.msra.mxu0 %v647
    %1693 = vmatprep.subr.bf16.mxu0 %v768
    %1694 = vmatpush2.bf16.msra.mxu0 %v767
    %1695 = vmatprep.subr.bf16.mxu0 %v760
    %1696 = vmatpush2.bf16.msra.mxu0 %v759
    %1697 = vmatprep.subr.bf16.mxu0 %v752
    %1698 = vmatpush2.bf16.msra.mxu0 %v751
    %1699 = vmatprep.subr.bf16.mxu0 %v744
    %1700 = vmatpush2.bf16.msra.mxu0 %v743
    %1701 = vmatprep.subr.bf16.mxu0 %v736
    %1702 = vmatpush2.bf16.msra.mxu0 %v735
    %1703 = vmatprep.subr.bf16.mxu0 %v728
    %1704 = vmatpush2.bf16.msra.mxu0 %v727
    %1705 = vmatprep.subr.bf16.mxu0 %v720
    %1706 = vmatpush2.bf16.msra.mxu0 %v719
    %1707 = vmatprep.subr.bf16.mxu0 %v712
    %1708 = vmatpush2.bf16.msra.mxu0 %v711
    %1709 = vmatprep.mubr.bf16.mxu0 %v1154
    %1710 = vmatmul.mubr.bf16.gmra.mxu0 %v1153
    %v1711 = vpop.f32.mrf.mxu0
    %v1712 = vadd.f32 0.0, %v1711
    %v1713 = vpop.f32.mrf.mxu0
    %v1714 = vadd.f32 0.0, %v1713
    %v1715 = vpop.f32.mrf.mxu0
    %v1716 = vadd.f32 0.0, %v1715
    %v1717 = vpop.f32.mrf.mxu0
    %v1718 = vadd.f32 0.0, %v1717
    %1719 = vdwg.mxu0
    %1720 = vmatprep.subr.bf16.mxu0 %v832
    %1721 = vmatpush1.bf16.msra.mxu0 %v831
    %1722 = vmatprep.subr.bf16.mxu0 %v824
    %1723 = vmatpush1.bf16.msra.mxu0 %v823
    %1724 = vmatprep.subr.bf16.mxu0 %v816
    %1725 = vmatpush1.bf16.msra.mxu0 %v815
    %1726 = vmatprep.subr.bf16.mxu0 %v808
    %1727 = vmatpush1.bf16.msra.mxu0 %v807
    %1728 = vmatprep.subr.bf16.mxu0 %v800
    %1729 = vmatpush1.bf16.msra.mxu0 %v799
    %1730 = vmatprep.subr.bf16.mxu0 %v792
    %1731 = vmatpush1.bf16.msra.mxu0 %v791
    %1732 = vmatprep.subr.bf16.mxu0 %v784
    %1733 = vmatpush1.bf16.msra.mxu0 %v783
    %1734 = vmatprep.subr.bf16.mxu0 %v776
    %1735 = vmatpush1.bf16.msra.mxu0 %v775
    %1736 = vmatprep.subr.bf16.mxu0 %v896
    %1737 = vmatpush2.bf16.msra.mxu0 %v895
    %1738 = vmatprep.subr.bf16.mxu0 %v888
    %1739 = vmatpush2.bf16.msra.mxu0 %v887
    %1740 = vmatprep.subr.bf16.mxu0 %v880
    %1741 = vmatpush2.bf16.msra.mxu0 %v879
    %1742 = vmatprep.subr.bf16.mxu0 %v872
    %1743 = vmatpush2.bf16.msra.mxu0 %v871
    %1744 = vmatprep.subr.bf16.mxu0 %v864
    %1745 = vmatpush2.bf16.msra.mxu0 %v863
    %1746 = vmatprep.subr.bf16.mxu0 %v856
    %1747 = vmatpush2.bf16.msra.mxu0 %v855
    %1748 = vmatprep.subr.bf16.mxu0 %v848
    %1749 = vmatpush2.bf16.msra.mxu0 %v847
    %1750 = vmatprep.subr.bf16.mxu0 %v840
    %1751 = vmatpush2.bf16.msra.mxu0 %v839
    %1752 = vmatprep.mubr.bf16.mxu0 %v1156
    %1753 = vmatmul.mubr.bf16.gmra.mxu0 %v1155
    %v1754 = vpop.f32.mrf.mxu0
    %v1755 = vadd.f32 %v1712, %v1754
    %v1756 = vpop.f32.mrf.mxu0
    %v1757 = vadd.f32 %v1714, %v1756
    %v1758 = vpop.f32.mrf.mxu0
    %v1759 = vadd.f32 %v1716, %v1758
    %v1760 = vpop.f32.mrf.mxu0
    %v1761 = vadd.f32 %v1718, %v1760
    %1762 = vdwg.mxu0
    %1763 = vmatprep.subr.bf16.mxu0 %v960
    %1764 = vmatpush1.bf16.msra.mxu0 %v959
    %1765 = vmatprep.subr.bf16.mxu0 %v952
    %1766 = vmatpush1.bf16.msra.mxu0 %v951
    %1767 = vmatprep.subr.bf16.mxu0 %v944
    %1768 = vmatpush1.bf16.msra.mxu0 %v943
    %1769 = vmatprep.subr.bf16.mxu0 %v936
    %1770 = vmatpush1.bf16.msra.mxu0 %v935
    %1771 = vmatprep.subr.bf16.mxu0 %v928
    %1772 = vmatpush1.bf16.msra.mxu0 %v927
    %1773 = vmatprep.subr.bf16.mxu0 %v920
    %1774 = vmatpush1.bf16.msra.mxu0 %v919
    %1775 = vmatprep.subr.bf16.mxu0 %v912
    %1776 = vmatpush1.bf16.msra.mxu0 %v911
    %1777 = vmatprep.subr.bf16.mxu0 %v904
    %1778 = vmatpush1.bf16.msra.mxu0 %v903
    %1779 = vmatprep.subr.bf16.mxu0 %v1024
    %1780 = vmatpush2.bf16.msra.mxu0 %v1023
    %1781 = vmatprep.subr.bf16.mxu0 %v1016
    %1782 = vmatpush2.bf16.msra.mxu0 %v1015
    %1783 = vmatprep.subr.bf16.mxu0 %v1008
    %1784 = vmatpush2.bf16.msra.mxu0 %v1007
    %1785 = vmatprep.subr.bf16.mxu0 %v1000
    %1786 = vmatpush2.bf16.msra.mxu0 %v999
    %1787 = vmatprep.subr.bf16.mxu0 %v992
    %1788 = vmatpush2.bf16.msra.mxu0 %v991
    %1789 = vmatprep.subr.bf16.mxu0 %v984
    %1790 = vmatpush2.bf16.msra.mxu0 %v983
    %1791 = vmatprep.subr.bf16.mxu0 %v976
    %1792 = vmatpush2.bf16.msra.mxu0 %v975
    %1793 = vmatprep.subr.bf16.mxu0 %v968
    %1794 = vmatpush2.bf16.msra.mxu0 %v967
    %1795 = vmatprep.mubr.bf16.mxu0 %v1158
    %1796 = vmatmul.mubr.bf16.gmra.mxu0 %v1157
    %v1797 = vpop.f32.mrf.mxu0
    %v1798 = vadd.f32 %v1755, %v1797
    %v1799 = vpop.f32.mrf.mxu0
    %v1800 = vadd.f32 %v1757, %v1799
    %v1801 = vpop.f32.mrf.mxu0
    %v1802 = vadd.f32 %v1759, %v1801
    %v1803 = vpop.f32.mrf.mxu0
    %v1804 = vadd.f32 %v1761, %v1803
    %1805 = vdwg.mxu0
    %1806 = vmatprep.subr.bf16.mxu0 %v1088
    %1807 = vmatpush1.bf16.msra.mxu0 %v1087
    %1808 = vmatprep.subr.bf16.mxu0 %v1080
    %1809 = vmatpush1.bf16.msra.mxu0 %v1079
    %1810 = vmatprep.subr.bf16.mxu0 %v1072
    %1811 = vmatpush1.bf16.msra.mxu0 %v1071
    %1812 = vmatprep.subr.bf16.mxu0 %v1064
    %1813 = vmatpush1.bf16.msra.mxu0 %v1063
    %1814 = vmatprep.subr.bf16.mxu0 %v1056
    %1815 = vmatpush1.bf16.msra.mxu0 %v1055
    %1816 = vmatprep.subr.bf16.mxu0 %v1048
    %1817 = vmatpush1.bf16.msra.mxu0 %v1047
    %1818 = vmatprep.subr.bf16.mxu0 %v1040
    %1819 = vmatpush1.bf16.msra.mxu0 %v1039
    %1820 = vmatprep.subr.bf16.mxu0 %v1032
    %1821 = vmatpush1.bf16.msra.mxu0 %v1031
    %1822 = vmatprep.subr.bf16.mxu0 %v1152
    %1823 = vmatpush2.bf16.msra.mxu0 %v1151
    %1824 = vmatprep.subr.bf16.mxu0 %v1144
    %1825 = vmatpush2.bf16.msra.mxu0 %v1143
    %1826 = vmatprep.subr.bf16.mxu0 %v1136
    %1827 = vmatpush2.bf16.msra.mxu0 %v1135
    %1828 = vmatprep.subr.bf16.mxu0 %v1128
    %1829 = vmatpush2.bf16.msra.mxu0 %v1127
    %1830 = vmatprep.subr.bf16.mxu0 %v1120
    %1831 = vmatpush2.bf16.msra.mxu0 %v1119
    %1832 = vmatprep.subr.bf16.mxu0 %v1112
    %1833 = vmatpush2.bf16.msra.mxu0 %v1111
    %1834 = vmatprep.subr.bf16.mxu0 %v1104
    %1835 = vmatpush2.bf16.msra.mxu0 %v1103
    %1836 = vmatprep.subr.bf16.mxu0 %v1096
    %1837 = vmatpush2.bf16.msra.mxu0 %v1095
    %1838 = vmatprep.mubr.bf16.mxu0 %v1160
    %1839 = vmatmul.mubr.bf16.gmra.mxu0 %v1159
    %v1840 = vpop.f32.mrf.mxu0
    %v1841 = vadd.f32 %v1798, %v1840
    %v1842 = vpop.f32.mrf.mxu0
    %v1843 = vadd.f32 %v1800, %v1842
    %v1844 = vpop.f32.mrf.mxu0
    %v1845 = vadd.f32 %v1802, %v1844
    %v1846 = vpop.f32.mrf.mxu0
    %v1847 = vadd.f32 %v1804, %v1846
    %1848 = vdwg.mxu0
    %v1849 = vld [vmem:[#allocation2 + $0x8] sm:$0xff]
    %v1851 = vlaneseq
    %v1852 = vshrl.u32 %v1851, 7
    %v1853 = vsub.s32 0, %v1852
    %v1854 = vrot.slane %v1849, %v1853
    %v1855 = vlaneseq
    %v1856 = vshrl.u32 %v1855, 7
    %v1857 = vsub.s32 1, %v1856
    %v1858 = vrot.slane %v1849, %v1857
    %v1859 = vlaneseq
    %v1860 = vshrl.u32 %v1859, 7
    %v1861 = vsub.s32 2, %v1860
    %v1862 = vrot.slane %v1849, %v1861
    %v1863 = vlaneseq
    %v1864 = vshrl.u32 %v1863, 7
    %v1865 = vsub.s32 3, %v1864
    %v1866 = vrot.slane %v1849, %v1865
    %v1867 = vlaneseq
    %v1868 = vshrl.u32 %v1867, 7
    %v1869 = vsub.s32 4, %v1868
    %v1870 = vrot.slane %v1849, %v1869
    %v1871 = vlaneseq
    %v1872 = vshrl.u32 %v1871, 7
    %v1873 = vsub.s32 5, %v1872
    %v1874 = vrot.slane %v1849, %v1873
    %v1875 = vlaneseq
    %v1876 = vshrl.u32 %v1875, 7
    %v1877 = vsub.s32 6, %v1876
    %v1878 = vrot.slane %v1849, %v1877
    %v1879 = vlaneseq
    %v1880 = vshrl.u32 %v1879, 7
    %v1881 = vsub.s32 7, %v1880
    %v1882 = vrot.slane %v1849, %v1881
    %v1891 = vmul.f32 %v1325, %v1854
    %v1892 = vmul.f32 %v1327, %v1858
    %v1893 = vmul.f32 %v1497, %v1862
    %v1894 = vmul.f32 %v1499, %v1866
    %v1895 = vmul.f32 %v1669, %v1870
    %v1896 = vmul.f32 %v1671, %v1874
    %v1897 = vmul.f32 %v1841, %v1878
    %v1898 = vmul.f32 %v1843, %v1882
    %v1899 = vmul.f32 %v1329, %v1854
    %v1900 = vmul.f32 %v1331, %v1858
    %v1901 = vmul.f32 %v1501, %v1862
    %v1902 = vmul.f32 %v1503, %v1866
    %v1903 = vmul.f32 %v1673, %v1870
    %v1904 = vmul.f32 %v1675, %v1874
    %v1905 = vmul.f32 %v1845, %v1878
    %v1906 = vmul.f32 %v1847, %v1882
    %v1907 = vld [vmem:[#allocation2 + $0x10] sm:$0xff]
    %v1909 = vlaneseq
    %v1910 = vshrl.u32 %v1909, 7
    %v1911 = vsub.s32 0, %v1910
    %v1912 = vrot.slane %v1907, %v1911
    %v1913 = vlaneseq
    %v1914 = vshrl.u32 %v1913, 7
    %v1915 = vsub.s32 1, %v1914
    %v1916 = vrot.slane %v1907, %v1915
    %v1917 = vlaneseq
    %v1918 = vshrl.u32 %v1917, 7
    %v1919 = vsub.s32 2, %v1918
    %v1920 = vrot.slane %v1907, %v1919
    %v1921 = vlaneseq
    %v1922 = vshrl.u32 %v1921, 7
    %v1923 = vsub.s32 3, %v1922
    %v1924 = vrot.slane %v1907, %v1923
    %v1925 = vlaneseq
    %v1926 = vshrl.u32 %v1925, 7
    %v1927 = vsub.s32 4, %v1926
    %v1928 = vrot.slane %v1907, %v1927
    %v1929 = vlaneseq
    %v1930 = vshrl.u32 %v1929, 7
    %v1931 = vsub.s32 5, %v1930
    %v1932 = vrot.slane %v1907, %v1931
    %v1933 = vlaneseq
    %v1934 = vshrl.u32 %v1933, 7
    %v1935 = vsub.s32 6, %v1934
    %v1936 = vrot.slane %v1907, %v1935
    %v1937 = vlaneseq
    %v1938 = vshrl.u32 %v1937, 7
    %v1939 = vsub.s32 7, %v1938
    %v1940 = vrot.slane %v1907, %v1939
    %v1949 = vadd.f32 %v1891, %v1912
    %v1950 = vadd.f32 %v1892, %v1916
    %v1951 = vadd.f32 %v1893, %v1920
    %v1952 = vadd.f32 %v1894, %v1924
    %v1953 = vadd.f32 %v1895, %v1928
    %v1954 = vadd.f32 %v1896, %v1932
    %v1955 = vadd.f32 %v1897, %v1936
    %v1956 = vadd.f32 %v1898, %v1940
    %v1957 = vadd.f32 %v1899, %v1912
    %v1958 = vadd.f32 %v1900, %v1916
    %v1959 = vadd.f32 %v1901, %v1920
    %v1960 = vadd.f32 %v1902, %v1924
    %v1961 = vadd.f32 %v1903, %v1928
    %v1962 = vadd.f32 %v1904, %v1932
    %v1963 = vadd.f32 %v1905, %v1936
    %v1964 = vadd.f32 %v1906, %v1940
    %v1965 = vmul.f32 %v1949, 0.01
    %v1966 = vmul.f32 %v1950, 0.01
    %v1967 = vmul.f32 %v1951, 0.01
    %v1968 = vmul.f32 %v1952, 0.01
    %v1969 = vmul.f32 %v1953, 0.01
    %v1970 = vmul.f32 %v1954, 0.01
    %v1971 = vmul.f32 %v1955, 0.01
    %v1972 = vmul.f32 %v1956, 0.01
    %v1973 = vmul.f32 %v1957, 0.01
    %v1974 = vmul.f32 %v1958, 0.01
    %v1975 = vmul.f32 %v1959, 0.01
    %v1976 = vmul.f32 %v1960, 0.01
    %v1977 = vmul.f32 %v1961, 0.01
    %v1978 = vmul.f32 %v1962, 0.01
    %v1979 = vmul.f32 %v1963, 0.01
    %v1980 = vmul.f32 %v1964, 0.01
    %v1981 = vmax.f32 %v1949, %v1965
    %v1982 = vmax.f32 %v1950, %v1966
    %v1983 = vmax.f32 %v1951, %v1967
    %v1984 = vmax.f32 %v1952, %v1968
    %v1985 = vmax.f32 %v1953, %v1969
    %v1986 = vmax.f32 %v1954, %v1970
    %v1987 = vmax.f32 %v1955, %v1971
    %v1988 = vmax.f32 %v1956, %v1972
    %v1989 = vmax.f32 %v1957, %v1973
    %v1990 = vmax.f32 %v1958, %v1974
    %v1991 = vmax.f32 %v1959, %v1975
    %v1992 = vmax.f32 %v1960, %v1976
    %v1993 = vmax.f32 %v1961, %v1977
    %v1994 = vmax.f32 %v1962, %v1978
    %v1995 = vmax.f32 %v1963, %v1979
    %v1996 = vmax.f32 %v1964, %v1980
    %v1997 = vsub.f32 %v1981, %v1989
    %v1998 = vsub.f32 %v1982, %v1990
    %v1999 = vsub.f32 %v1983, %v1991
    %v2000 = vsub.f32 %v1984, %v1992
    %v2001 = vsub.f32 %v1985, %v1993
    %v2002 = vsub.f32 %v1986, %v1994
    %v2003 = vsub.f32 %v1987, %v1995
    %v2004 = vsub.f32 %v1988, %v1996
    %v2005 = vand.u32 2147483647, %v1997
    %v2006 = vand.u32 2147483647, %v1998
    %v2007 = vand.u32 2147483647, %v1999
    %v2008 = vand.u32 2147483647, %v2000
    %v2009 = vand.u32 2147483647, %v2001
    %v2010 = vand.u32 2147483647, %v2002
    %v2011 = vand.u32 2147483647, %v2003
    %v2012 = vand.u32 2147483647, %v2004
    %v2013 = vld [vmem:[#allocation2 + $0x18] sm:$0xff]
    %v2015 = vlaneseq
    %v2016 = vshrl.u32 %v2015, 7
    %v2017 = vsub.s32 0, %v2016
    %v2018 = vrot.slane %v2013, %v2017
    %v2019 = vlaneseq
    %v2020 = vshrl.u32 %v2019, 7
    %v2021 = vsub.s32 1, %v2020
    %v2022 = vrot.slane %v2013, %v2021
    %v2023 = vlaneseq
    %v2024 = vshrl.u32 %v2023, 7
    %v2025 = vsub.s32 2, %v2024
    %v2026 = vrot.slane %v2013, %v2025
    %v2027 = vlaneseq
    %v2028 = vshrl.u32 %v2027, 7
    %v2029 = vsub.s32 3, %v2028
    %v2030 = vrot.slane %v2013, %v2029
    %v2031 = vlaneseq
    %v2032 = vshrl.u32 %v2031, 7
    %v2033 = vsub.s32 4, %v2032
    %v2034 = vrot.slane %v2013, %v2033
    %v2035 = vlaneseq
    %v2036 = vshrl.u32 %v2035, 7
    %v2037 = vsub.s32 5, %v2036
    %v2038 = vrot.slane %v2013, %v2037
    %v2039 = vlaneseq
    %v2040 = vshrl.u32 %v2039, 7
    %v2041 = vsub.s32 6, %v2040
    %v2042 = vrot.slane %v2013, %v2041
    %v2043 = vlaneseq
    %v2044 = vshrl.u32 %v2043, 7
    %v2045 = vsub.s32 7, %v2044
    %v2046 = vrot.slane %v2013, %v2045
    %v2055 = vmul.f32 %v2005, %v2018
    %v2056 = vmul.f32 %v2006, %v2022
    %v2057 = vmul.f32 %v2007, %v2026
    %v2058 = vmul.f32 %v2008, %v2030
    %v2059 = vmul.f32 %v2009, %v2034
    %v2060 = vmul.f32 %v2010, %v2038
    %v2061 = vmul.f32 %v2011, %v2042
    %v2062 = vmul.f32 %v2012, %v2046
    %v2063 = vld [vmem:[#allocation2 + $0x20] sm:$0xff]
    %v2065 = vlaneseq
    %v2066 = vshrl.u32 %v2065, 7
    %v2067 = vsub.s32 0, %v2066
    %v2068 = vrot.slane %v2063, %v2067
    %v2069 = vlaneseq
    %v2070 = vshrl.u32 %v2069, 7
    %v2071 = vsub.s32 1, %v2070
    %v2072 = vrot.slane %v2063, %v2071
    %v2073 = vlaneseq
    %v2074 = vshrl.u32 %v2073, 7
    %v2075 = vsub.s32 2, %v2074
    %v2076 = vrot.slane %v2063, %v2075
    %v2077 = vlaneseq
    %v2078 = vshrl.u32 %v2077, 7
    %v2079 = vsub.s32 3, %v2078
    %v2080 = vrot.slane %v2063, %v2079
    %v2081 = vlaneseq
    %v2082 = vshrl.u32 %v2081, 7
    %v2083 = vsub.s32 4, %v2082
    %v2084 = vrot.slane %v2063, %v2083
    %v2085 = vlaneseq
    %v2086 = vshrl.u32 %v2085, 7
    %v2087 = vsub.s32 5, %v2086
    %v2088 = vrot.slane %v2063, %v2087
    %v2089 = vlaneseq
    %v2090 = vshrl.u32 %v2089, 7
    %v2091 = vsub.s32 6, %v2090
    %v2092 = vrot.slane %v2063, %v2091
    %v2093 = vlaneseq
    %v2094 = vshrl.u32 %v2093, 7
    %v2095 = vsub.s32 7, %v2094
    %v2096 = vrot.slane %v2063, %v2095
    %v2105 = vadd.f32 %v2055, %v2068
    %v2106 = vadd.f32 %v2056, %v2072
    %v2107 = vadd.f32 %v2057, %v2076
    %v2108 = vadd.f32 %v2058, %v2080
    %v2109 = vadd.f32 %v2059, %v2084
    %v2110 = vadd.f32 %v2060, %v2088
    %v2111 = vadd.f32 %v2061, %v2092
    %v2112 = vadd.f32 %v2062, %v2096
    %v2113 = vmul.f32 %v2105, 0.01
    %v2114 = vmul.f32 %v2106, 0.01
    %v2115 = vmul.f32 %v2107, 0.01
    %v2116 = vmul.f32 %v2108, 0.01
    %v2117 = vmul.f32 %v2109, 0.01
    %v2118 = vmul.f32 %v2110, 0.01
    %v2119 = vmul.f32 %v2111, 0.01
    %v2120 = vmul.f32 %v2112, 0.01
    %v2121 = vmax.f32 %v2105, %v2113
    %v2122 = vmax.f32 %v2106, %v2114
    %v2123 = vmax.f32 %v2107, %v2115
    %v2124 = vmax.f32 %v2108, %v2116
    %v2125 = vmax.f32 %v2109, %v2117
    %v2126 = vmax.f32 %v2110, %v2118
    %v2127 = vmax.f32 %v2111, %v2119
    %v2128 = vmax.f32 %v2112, %v2120
    %v2129 = vld [vmem:[%s1] sm:$0xff]
    %v2130 = vld [vmem:[%s6] sm:$0xff]
    %v2131 = vpack.c.bf16 %v2129, %v2129
    %v2132 = vld [vmem:[#allocation2 + $0x28] sm:$0xf]
    %v2134 = vlaneseq
    %v2135 = vshrl.u32 %v2134, 7
    %v2136 = vsub.s32 0, %v2135
    %v2137 = vrot.slane %v2132, %v2136
    %v2138 = vlaneseq
    %v2139 = vshrl.u32 %v2138, 7
    %v2140 = vsub.s32 1, %v2139
    %v2141 = vrot.slane %v2132, %v2140
    %v2142 = vlaneseq
    %v2143 = vshrl.u32 %v2142, 7
    %v2144 = vsub.s32 2, %v2143
    %v2145 = vrot.slane %v2132, %v2144
    %v2146 = vlaneseq
    %v2147 = vshrl.u32 %v2146, 7
    %v2148 = vsub.s32 3, %v2147
    %v2149 = vrot.slane %v2132, %v2148
    %v2155 = vcombine.high %v2130, %v2130
    %v2157 = vunpack.c.l.s4 1983009808
    %v2158 = vunpack.c.0.s8 %v2157
    %v2159 = vlaneseq
    %v2160 = vshrl.u32 %v2159, 7
    %v2161 = vsub.s32 %v2158, %v2160
    %v2162 = vrot.slane %v2130, %v2161
    %v2164 = vunpack.c.l.s4 1983009808
    %v2165 = vunpack.c.0.s8 %v2164
    %v2166 = vlaneseq
    %v2167 = vshrl.u32 %v2166, 7
    %v2168 = vsub.s32 %v2165, %v2167
    %v2169 = vrot.slane %v2155, %v2168
    %v2170 = vcombine.high %v2162, %v2162
    %v2171 = vcombine.high %v2169, %v2169
    %vm2172 = vcmask 23552
    %v2174 = vsel %vm2172, %v2131, 0
    %vm2176 = vcmask 1040384
    %vm2177 = vcmask 1041408
    %v2178 = vsel %vm2176, 4294967295, 65535
    %v2179 = vsel %vm2177, %v2178, 0
    %v2181 = vand.u32 %v2162, %v2179
    %v2184 = vand.u32 %v2170, %v2179
    %v2187 = vand.u32 %v2169, %v2179
    %v2190 = vand.u32 %v2171, %v2179
    %2192 = vmatprep.subr.bf16.mxu0 0
    %2193 = vmatpush1.bf16.msra.mxu0 0
    %2194 = vmatprep.subr.bf16.mxu0 0
    %2195 = vmatpush1.bf16.msra.mxu0 0
    %2196 = vmatprep.subr.bf16.mxu0 0
    %2197 = vmatpush1.bf16.msra.mxu0 0
    %2198 = vmatprep.subr.bf16.mxu0 0
    %2199 = vmatpush1.bf16.msra.mxu0 0
    %2200 = vmatprep.subr.bf16.mxu0 0
    %2201 = vmatpush1.bf16.msra.mxu0 0
    %2202 = vmatprep.subr.bf16.mxu0 0
    %2203 = vmatpush1.bf16.msra.mxu0 0
    %2204 = vmatprep.subr.bf16.mxu0 0
    %2205 = vmatpush1.bf16.msra.mxu0 0
    %2206 = vmatprep.subr.bf16.mxu0 %v2184
    %2207 = vmatpush1.bf16.msra.mxu0 %v2181
    %2208 = vmatprep.subr.bf16.mxu0 0
    %2209 = vmatpush2.bf16.msra.mxu0 0
    %2210 = vmatprep.subr.bf16.mxu0 0
    %2211 = vmatpush2.bf16.msra.mxu0 0
    %2212 = vmatprep.subr.bf16.mxu0 0
    %2213 = vmatpush2.bf16.msra.mxu0 0
    %2214 = vmatprep.subr.bf16.mxu0 0
    %2215 = vmatpush2.bf16.msra.mxu0 0
    %2216 = vmatprep.subr.bf16.mxu0 0
    %2217 = vmatpush2.bf16.msra.mxu0 0
    %2218 = vmatprep.subr.bf16.mxu0 0
    %2219 = vmatpush2.bf16.msra.mxu0 0
    %2220 = vmatprep.subr.bf16.mxu0 0
    %2221 = vmatpush2.bf16.msra.mxu0 0
    %2222 = vmatprep.subr.bf16.mxu0 0
    %2223 = vmatpush2.bf16.msra.mxu0 0
    %2224 = vmatprep.mubr.bf16.mxu0 0
    %2225 = vmatmul.mubr.bf16.gmra.mxu0 %v2174
    %v2226 = vpop.f32.mrf.mxu0
    %v2227 = vadd.f32 %v2137, %v2226
    %v2228 = vpop.f32.mrf.mxu0
    %v2229 = vadd.f32 %v2141, %v2228
    %v2230 = vpop.f32.mrf.mxu0
    %v2231 = vpop.f32.mrf.mxu0
    %2232 = vdwg.mxu0
    %2233 = vmatprep.subr.bf16.mxu0 0
    %2234 = vmatpush1.bf16.msra.mxu0 0
    %2235 = vmatprep.subr.bf16.mxu0 0
    %2236 = vmatpush1.bf16.msra.mxu0 0
    %2237 = vmatprep.subr.bf16.mxu0 0
    %2238 = vmatpush1.bf16.msra.mxu0 0
    %2239 = vmatprep.subr.bf16.mxu0 0
    %2240 = vmatpush1.bf16.msra.mxu0 0
    %2241 = vmatprep.subr.bf16.mxu0 0
    %2242 = vmatpush1.bf16.msra.mxu0 0
    %2243 = vmatprep.subr.bf16.mxu0 0
    %2244 = vmatpush1.bf16.msra.mxu0 0
    %2245 = vmatprep.subr.bf16.mxu0 0
    %2246 = vmatpush1.bf16.msra.mxu0 0
    %2247 = vmatprep.subr.bf16.mxu0 %v2190
    %2248 = vmatpush1.bf16.msra.mxu0 %v2187
    %2249 = vmatprep.subr.bf16.mxu0 0
    %2250 = vmatpush2.bf16.msra.mxu0 0
    %2251 = vmatprep.subr.bf16.mxu0 0
    %2252 = vmatpush2.bf16.msra.mxu0 0
    %2253 = vmatprep.subr.bf16.mxu0 0
    %2254 = vmatpush2.bf16.msra.mxu0 0
    %2255 = vmatprep.subr.bf16.mxu0 0
    %2256 = vmatpush2.bf16.msra.mxu0 0
    %2257 = vmatprep.subr.bf16.mxu0 0
    %2258 = vmatpush2.bf16.msra.mxu0 0
    %2259 = vmatprep.subr.bf16.mxu0 0
    %2260 = vmatpush2.bf16.msra.mxu0 0
    %2261 = vmatprep.subr.bf16.mxu0 0
    %2262 = vmatpush2.bf16.msra.mxu0 0
    %2263 = vmatprep.subr.bf16.mxu0 0
    %2264 = vmatpush2.bf16.msra.mxu0 0
    %2265 = vmatprep.mubr.bf16.mxu0 0
    %2266 = vmatmul.mubr.bf16.gmra.mxu0 %v2174
    %v2267 = vpop.f32.mrf.mxu0
    %v2268 = vadd.f32 %v2145, %v2267
    %v2269 = vpop.f32.mrf.mxu0
    %v2270 = vadd.f32 %v2149, %v2269
    %v2271 = vpop.f32.mrf.mxu0
    %v2272 = vpop.f32.mrf.mxu0
    %2273 = vdwg.mxu0
    %v2274 = vmul.f32 %v2227, 0.01
    %v2275 = vmul.f32 %v2229, 0.01
    %v2276 = vmul.f32 %v2268, 0.01
    %v2277 = vmul.f32 %v2270, 0.01
    %v2278 = vmax.f32 %v2227, %v2274
    %v2279 = vmax.f32 %v2229, %v2275
    %v2280 = vmax.f32 %v2268, %v2276
    %v2281 = vmax.f32 %v2270, %v2277
    %v2282 = vld [vmem:[#allocation7] sm:$0xff]
    %v2283 = vld [vmem:[#allocation7 + $0x8] sm:$0xff]
    %v2284 = vld [vmem:[#allocation7 + $0x10] sm:$0xff]
    %v2285 = vld [vmem:[#allocation7 + $0x18] sm:$0xff]
    %v2286 = vld [vmem:[#allocation7 + $0x20] sm:$0xff]
    %v2287 = vld [vmem:[#allocation7 + $0x28] sm:$0xff]
    %v2288 = vld [vmem:[#allocation7 + $0x30] sm:$0xff]
    %v2289 = vld [vmem:[#allocation7 + $0x38] sm:$0xff]
    %v2290 = vld [vmem:[#allocation7 + $0x40] sm:$0xff]
    %v2291 = vld [vmem:[#allocation7 + $0x48] sm:$0xff]
    %v2292 = vld [vmem:[#allocation7 + $0x50] sm:$0xff]
    %v2293 = vld [vmem:[#allocation7 + $0x58] sm:$0xff]
    %v2294 = vld [vmem:[#allocation7 + $0x60] sm:$0xff]
    %v2295 = vld [vmem:[#allocation7 + $0x68] sm:$0xff]
    %v2296 = vld [vmem:[#allocation7 + $0x70] sm:$0xff]
    %v2297 = vld [vmem:[#allocation7 + $0x78] sm:$0xff]
    %v2298 = vld [vmem:[#allocation7 + $0x80] sm:$0xff]
    %v2299 = vld [vmem:[#allocation7 + $0x88] sm:$0xff]
    %v2300 = vld [vmem:[#allocation7 + $0x90] sm:$0xff]
    %v2301 = vld [vmem:[#allocation7 + $0x98] sm:$0xff]
    %v2302 = vld [vmem:[#allocation7 + $0xa0] sm:$0xff]
    %v2303 = vld [vmem:[#allocation7 + $0xa8] sm:$0xff]
    %v2304 = vld [vmem:[#allocation7 + $0xb0] sm:$0xff]
    %v2305 = vld [vmem:[#allocation7 + $0xb8] sm:$0xff]
    %v2306 = vld [vmem:[#allocation7 + $0xc0] sm:$0xff]
    %v2307 = vld [vmem:[#allocation7 + $0xc8] sm:$0xff]
    %v2308 = vld [vmem:[#allocation7 + $0xd0] sm:$0xff]
    %v2309 = vld [vmem:[#allocation7 + $0xd8] sm:$0xff]
    %v2310 = vld [vmem:[#allocation7 + $0xe0] sm:$0xff]
    %v2311 = vld [vmem:[#allocation7 + $0xe8] sm:$0xff]
    %v2312 = vld [vmem:[#allocation7 + $0xf0] sm:$0xff]
    %v2313 = vld [vmem:[#allocation7 + $0xf8] sm:$0xff]
    %v2314 = vld [vmem:[#allocation7 + $0x100] sm:$0xff]
    %v2315 = vld [vmem:[#allocation7 + $0x108] sm:$0xff]
    %v2316 = vld [vmem:[#allocation7 + $0x110] sm:$0xff]
    %v2317 = vld [vmem:[#allocation7 + $0x118] sm:$0xff]
    %v2318 = vld [vmem:[#allocation7 + $0x120] sm:$0xff]
    %v2319 = vld [vmem:[#allocation7 + $0x128] sm:$0xff]
    %v2320 = vld [vmem:[#allocation7 + $0x130] sm:$0xff]
    %v2321 = vld [vmem:[#allocation7 + $0x138] sm:$0xff]
    %v2322 = vld [vmem:[#allocation7 + $0x140] sm:$0xff]
    %v2323 = vld [vmem:[#allocation7 + $0x148] sm:$0xff]
    %v2324 = vld [vmem:[#allocation7 + $0x150] sm:$0xff]
    %v2325 = vld [vmem:[#allocation7 + $0x158] sm:$0xff]
    %v2326 = vld [vmem:[#allocation7 + $0x160] sm:$0xff]
    %v2327 = vld [vmem:[#allocation7 + $0x168] sm:$0xff]
    %v2328 = vld [vmem:[#allocation7 + $0x170] sm:$0xff]
    %v2329 = vld [vmem:[#allocation7 + $0x178] sm:$0xff]
    %v2330 = vld [vmem:[#allocation7 + $0x180] sm:$0xff]
    %v2331 = vld [vmem:[#allocation7 + $0x188] sm:$0xff]
    %v2332 = vld [vmem:[#allocation7 + $0x190] sm:$0xff]
    %v2333 = vld [vmem:[#allocation7 + $0x198] sm:$0xff]
    %v2334 = vld [vmem:[#allocation7 + $0x1a0] sm:$0xff]
    %v2335 = vld [vmem:[#allocation7 + $0x1a8] sm:$0xff]
    %v2336 = vld [vmem:[#allocation7 + $0x1b0] sm:$0xff]
    %v2337 = vld [vmem:[#allocation7 + $0x1b8] sm:$0xff]
    %v2338 = vld [vmem:[#allocation7 + $0x1c0] sm:$0xff]
    %v2339 = vld [vmem:[#allocation7 + $0x1c8] sm:$0xff]
    %v2340 = vld [vmem:[#allocation7 + $0x1d0] sm:$0xff]
    %v2341 = vld [vmem:[#allocation7 + $0x1d8] sm:$0xff]
    %v2342 = vld [vmem:[#allocation7 + $0x1e0] sm:$0xff]
    %v2343 = vld [vmem:[#allocation7 + $0x1e8] sm:$0xff]
    %v2344 = vld [vmem:[#allocation7 + $0x1f0] sm:$0xff]
    %v2345 = vld [vmem:[#allocation7 + $0x1f8] sm:$0xff]
    %v2346 = vunpack.c.l.s8.bf16 %v2282
    %v2347 = vunpack.c.l.s8.bf16 %v2283
    %v2348 = vunpack.c.l.s8.bf16 %v2284
    %v2349 = vunpack.c.l.s8.bf16 %v2285
    %v2350 = vunpack.c.h.s8.bf16 %v2282
    %v2351 = vunpack.c.h.s8.bf16 %v2283
    %v2352 = vunpack.c.h.s8.bf16 %v2284
    %v2353 = vunpack.c.h.s8.bf16 %v2285
    %v2354 = vunpack.c.l.s8.bf16 %v2286
    %v2355 = vunpack.c.l.s8.bf16 %v2287
    %v2356 = vunpack.c.l.s8.bf16 %v2288
    %v2357 = vunpack.c.l.s8.bf16 %v2289
    %v2358 = vunpack.c.h.s8.bf16 %v2286
    %v2359 = vunpack.c.h.s8.bf16 %v2287
    %v2360 = vunpack.c.h.s8.bf16 %v2288
    %v2361 = vunpack.c.h.s8.bf16 %v2289
    %v2362 = vunpack.c.l.s8.bf16 %v2290
    %v2363 = vunpack.c.l.s8.bf16 %v2291
    %v2364 = vunpack.c.l.s8.bf16 %v2292
    %v2365 = vunpack.c.l.s8.bf16 %v2293
    %v2366 = vunpack.c.h.s8.bf16 %v2290
    %v2367 = vunpack.c.h.s8.bf16 %v2291
    %v2368 = vunpack.c.h.s8.bf16 %v2292
    %v2369 = vunpack.c.h.s8.bf16 %v2293
    %v2370 = vunpack.c.l.s8.bf16 %v2294
    %v2371 = vunpack.c.l.s8.bf16 %v2295
    %v2372 = vunpack.c.l.s8.bf16 %v2296
    %v2373 = vunpack.c.l.s8.bf16 %v2297
    %v2374 = vunpack.c.h.s8.bf16 %v2294
    %v2375 = vunpack.c.h.s8.bf16 %v2295
    %v2376 = vunpack.c.h.s8.bf16 %v2296
    %v2377 = vunpack.c.h.s8.bf16 %v2297
    %v2378 = vunpack.c.l.s8.bf16 %v2298
    %v2379 = vunpack.c.l.s8.bf16 %v2299
    %v2380 = vunpack.c.l.s8.bf16 %v2300
    %v2381 = vunpack.c.l.s8.bf16 %v2301
    %v2382 = vunpack.c.h.s8.bf16 %v2298
    %v2383 = vunpack.c.h.s8.bf16 %v2299
    %v2384 = vunpack.c.h.s8.bf16 %v2300
    %v2385 = vunpack.c.h.s8.bf16 %v2301
    %v2386 = vunpack.c.l.s8.bf16 %v2302
    %v2387 = vunpack.c.l.s8.bf16 %v2303
    %v2388 = vunpack.c.l.s8.bf16 %v2304
    %v2389 = vunpack.c.l.s8.bf16 %v2305
    %v2390 = vunpack.c.h.s8.bf16 %v2302
    %v2391 = vunpack.c.h.s8.bf16 %v2303
    %v2392 = vunpack.c.h.s8.bf16 %v2304
    %v2393 = vunpack.c.h.s8.bf16 %v2305
    %v2394 = vunpack.c.l.s8.bf16 %v2306
    %v2395 = vunpack.c.l.s8.bf16 %v2307
    %v2396 = vunpack.c.l.s8.bf16 %v2308
    %v2397 = vunpack.c.l.s8.bf16 %v2309
    %v2398 = vunpack.c.h.s8.bf16 %v2306
    %v2399 = vunpack.c.h.s8.bf16 %v2307
    %v2400 = vunpack.c.h.s8.bf16 %v2308
    %v2401 = vunpack.c.h.s8.bf16 %v2309
    %v2402 = vunpack.c.l.s8.bf16 %v2310
    %v2403 = vunpack.c.l.s8.bf16 %v2311
    %v2404 = vunpack.c.l.s8.bf16 %v2312
    %v2405 = vunpack.c.l.s8.bf16 %v2313
    %v2406 = vunpack.c.h.s8.bf16 %v2310
    %v2407 = vunpack.c.h.s8.bf16 %v2311
    %v2408 = vunpack.c.h.s8.bf16 %v2312
    %v2409 = vunpack.c.h.s8.bf16 %v2313
    %v2410 = vunpack.c.l.s8.bf16 %v2314
    %v2411 = vunpack.c.l.s8.bf16 %v2315
    %v2412 = vunpack.c.l.s8.bf16 %v2316
    %v2413 = vunpack.c.l.s8.bf16 %v2317
    %v2414 = vunpack.c.h.s8.bf16 %v2314
    %v2415 = vunpack.c.h.s8.bf16 %v2315
    %v2416 = vunpack.c.h.s8.bf16 %v2316
    %v2417 = vunpack.c.h.s8.bf16 %v2317
    %v2418 = vunpack.c.l.s8.bf16 %v2318
    %v2419 = vunpack.c.l.s8.bf16 %v2319
    %v2420 = vunpack.c.l.s8.bf16 %v2320
    %v2421 = vunpack.c.l.s8.bf16 %v2321
    %v2422 = vunpack.c.h.s8.bf16 %v2318
    %v2423 = vunpack.c.h.s8.bf16 %v2319
    %v2424 = vunpack.c.h.s8.bf16 %v2320
    %v2425 = vunpack.c.h.s8.bf16 %v2321
    %v2426 = vunpack.c.l.s8.bf16 %v2322
    %v2427 = vunpack.c.l.s8.bf16 %v2323
    %v2428 = vunpack.c.l.s8.bf16 %v2324
    %v2429 = vunpack.c.l.s8.bf16 %v2325
    %v2430 = vunpack.c.h.s8.bf16 %v2322
    %v2431 = vunpack.c.h.s8.bf16 %v2323
    %v2432 = vunpack.c.h.s8.bf16 %v2324
    %v2433 = vunpack.c.h.s8.bf16 %v2325
    %v2434 = vunpack.c.l.s8.bf16 %v2326
    %v2435 = vunpack.c.l.s8.bf16 %v2327
    %v2436 = vunpack.c.l.s8.bf16 %v2328
    %v2437 = vunpack.c.l.s8.bf16 %v2329
    %v2438 = vunpack.c.h.s8.bf16 %v2326
    %v2439 = vunpack.c.h.s8.bf16 %v2327
    %v2440 = vunpack.c.h.s8.bf16 %v2328
    %v2441 = vunpack.c.h.s8.bf16 %v2329
    %v2442 = vunpack.c.l.s8.bf16 %v2330
    %v2443 = vunpack.c.l.s8.bf16 %v2331
    %v2444 = vunpack.c.l.s8.bf16 %v2332
    %v2445 = vunpack.c.l.s8.bf16 %v2333
    %v2446 = vunpack.c.h.s8.bf16 %v2330
    %v2447 = vunpack.c.h.s8.bf16 %v2331
    %v2448 = vunpack.c.h.s8.bf16 %v2332
    %v2449 = vunpack.c.h.s8.bf16 %v2333
    %v2450 = vunpack.c.l.s8.bf16 %v2334
    %v2451 = vunpack.c.l.s8.bf16 %v2335
    %v2452 = vunpack.c.l.s8.bf16 %v2336
    %v2453 = vunpack.c.l.s8.bf16 %v2337
    %v2454 = vunpack.c.h.s8.bf16 %v2334
    %v2455 = vunpack.c.h.s8.bf16 %v2335
    %v2456 = vunpack.c.h.s8.bf16 %v2336
    %v2457 = vunpack.c.h.s8.bf16 %v2337
    %v2458 = vunpack.c.l.s8.bf16 %v2338
    %v2459 = vunpack.c.l.s8.bf16 %v2339
    %v2460 = vunpack.c.l.s8.bf16 %v2340
    %v2461 = vunpack.c.l.s8.bf16 %v2341
    %v2462 = vunpack.c.h.s8.bf16 %v2338
    %v2463 = vunpack.c.h.s8.bf16 %v2339
    %v2464 = vunpack.c.h.s8.bf16 %v2340
    %v2465 = vunpack.c.h.s8.bf16 %v2341
    %v2466 = vunpack.c.l.s8.bf16 %v2342
    %v2467 = vunpack.c.l.s8.bf16 %v2343
    %v2468 = vunpack.c.l.s8.bf16 %v2344
    %v2469 = vunpack.c.l.s8.bf16 %v2345
    %v2470 = vunpack.c.h.s8.bf16 %v2342
    %v2471 = vunpack.c.h.s8.bf16 %v2343
    %v2472 = vunpack.c.h.s8.bf16 %v2344
    %v2473 = vunpack.c.h.s8.bf16 %v2345
    %v2474 = vpack.c.bf16 %v2278, %v2278
    %v2475 = vpack.c.bf16 %v2279, %v2279
    %v2476 = vpack.c.bf16 %v2280, %v2280
    %v2477 = vpack.c.bf16 %v2281, %v2281
    %2478 = vmatprep.subr.bf16.mxu0 %v2375
    %2479 = vmatpush1.bf16.msra.mxu0 %v2374
    %2480 = vmatprep.subr.bf16.mxu0 %v2371
    %2481 = vmatpush1.bf16.msra.mxu0 %v2370
    %2482 = vmatprep.subr.bf16.mxu0 %v2367
    %2483 = vmatpush1.bf16.msra.mxu0 %v2366
    %2484 = vmatprep.subr.bf16.mxu0 %v2363
    %2485 = vmatpush1.bf16.msra.mxu0 %v2362
    %2486 = vmatprep.subr.bf16.mxu0 %v2359
    %2487 = vmatpush1.bf16.msra.mxu0 %v2358
    %2488 = vmatprep.subr.bf16.mxu0 %v2355
    %2489 = vmatpush1.bf16.msra.mxu0 %v2354
    %2490 = vmatprep.subr.bf16.mxu0 %v2351
    %2491 = vmatpush1.bf16.msra.mxu0 %v2350
    %2492 = vmatprep.subr.bf16.mxu0 %v2347
    %2493 = vmatpush1.bf16.msra.mxu0 %v2346
    %2494 = vmatprep.subr.bf16.mxu0 %v2407
    %2495 = vmatpush2.bf16.msra.mxu0 %v2406
    %2496 = vmatprep.subr.bf16.mxu0 %v2403
    %2497 = vmatpush2.bf16.msra.mxu0 %v2402
    %2498 = vmatprep.subr.bf16.mxu0 %v2399
    %2499 = vmatpush2.bf16.msra.mxu0 %v2398
    %2500 = vmatprep.subr.bf16.mxu0 %v2395
    %2501 = vmatpush2.bf16.msra.mxu0 %v2394
    %2502 = vmatprep.subr.bf16.mxu0 %v2391
    %2503 = vmatpush2.bf16.msra.mxu0 %v2390
    %2504 = vmatprep.subr.bf16.mxu0 %v2387
    %2505 = vmatpush2.bf16.msra.mxu0 %v2386
    %2506 = vmatprep.subr.bf16.mxu0 %v2383
    %2507 = vmatpush2.bf16.msra.mxu0 %v2382
    %2508 = vmatprep.subr.bf16.mxu0 %v2379
    %2509 = vmatpush2.bf16.msra.mxu0 %v2378
    %2510 = vmatprep.mubr.bf16.mxu0 %v2475
    %2511 = vmatmul.mubr.bf16.gmra.mxu0 %v2474
    %v2512 = vpop.f32.mrf.mxu0
    %v2513 = vadd.f32 0.0, %v2512
    %v2514 = vpop.f32.mrf.mxu0
    %v2515 = vadd.f32 0.0, %v2514
    %v2516 = vpop.f32.mrf.mxu0
    %v2517 = vpop.f32.mrf.mxu0
    %2518 = vdwg.mxu0
    %2519 = vmatprep.subr.bf16.mxu0 %v2439
    %2520 = vmatpush1.bf16.msra.mxu0 %v2438
    %2521 = vmatprep.subr.bf16.mxu0 %v2435
    %2522 = vmatpush1.bf16.msra.mxu0 %v2434
    %2523 = vmatprep.subr.bf16.mxu0 %v2431
    %2524 = vmatpush1.bf16.msra.mxu0 %v2430
    %2525 = vmatprep.subr.bf16.mxu0 %v2427
    %2526 = vmatpush1.bf16.msra.mxu0 %v2426
    %2527 = vmatprep.subr.bf16.mxu0 %v2423
    %2528 = vmatpush1.bf16.msra.mxu0 %v2422
    %2529 = vmatprep.subr.bf16.mxu0 %v2419
    %2530 = vmatpush1.bf16.msra.mxu0 %v2418
    %2531 = vmatprep.subr.bf16.mxu0 %v2415
    %2532 = vmatpush1.bf16.msra.mxu0 %v2414
    %2533 = vmatprep.subr.bf16.mxu0 %v2411
    %2534 = vmatpush1.bf16.msra.mxu0 %v2410
    %2535 = vmatprep.subr.bf16.mxu0 %v2471
    %2536 = vmatpush2.bf16.msra.mxu0 %v2470
    %2537 = vmatprep.subr.bf16.mxu0 %v2467
    %2538 = vmatpush2.bf16.msra.mxu0 %v2466
    %2539 = vmatprep.subr.bf16.mxu0 %v2463
    %2540 = vmatpush2.bf16.msra.mxu0 %v2462
    %2541 = vmatprep.subr.bf16.mxu0 %v2459
    %2542 = vmatpush2.bf16.msra.mxu0 %v2458
    %2543 = vmatprep.subr.bf16.mxu0 %v2455
    %2544 = vmatpush2.bf16.msra.mxu0 %v2454
    %2545 = vmatprep.subr.bf16.mxu0 %v2451
    %2546 = vmatpush2.bf16.msra.mxu0 %v2450
    %2547 = vmatprep.subr.bf16.mxu0 %v2447
    %2548 = vmatpush2.bf16.msra.mxu0 %v2446
    %2549 = vmatprep.subr.bf16.mxu0 %v2443
    %2550 = vmatpush2.bf16.msra.mxu0 %v2442
    %2551 = vmatprep.mubr.bf16.mxu0 %v2477
    %2552 = vmatmul.mubr.bf16.gmra.mxu0 %v2476
    %v2553 = vpop.f32.mrf.mxu0
    %v2554 = vadd.f32 %v2513, %v2553
    %v2555 = vpop.f32.mrf.mxu0
    %v2556 = vadd.f32 %v2515, %v2555
    %v2557 = vpop.f32.mrf.mxu0
    %v2558 = vpop.f32.mrf.mxu0
    %2559 = vdwg.mxu0
    %2560 = vmatprep.subr.bf16.mxu0 %v2377
    %2561 = vmatpush1.bf16.msra.mxu0 %v2376
    %2562 = vmatprep.subr.bf16.mxu0 %v2373
    %2563 = vmatpush1.bf16.msra.mxu0 %v2372
    %2564 = vmatprep.subr.bf16.mxu0 %v2369
    %2565 = vmatpush1.bf16.msra.mxu0 %v2368
    %2566 = vmatprep.subr.bf16.mxu0 %v2365
    %2567 = vmatpush1.bf16.msra.mxu0 %v2364
    %2568 = vmatprep.subr.bf16.mxu0 %v2361
    %2569 = vmatpush1.bf16.msra.mxu0 %v2360
    %2570 = vmatprep.subr.bf16.mxu0 %v2357
    %2571 = vmatpush1.bf16.msra.mxu0 %v2356
    %2572 = vmatprep.subr.bf16.mxu0 %v2353
    %2573 = vmatpush1.bf16.msra.mxu0 %v2352
    %2574 = vmatprep.subr.bf16.mxu0 %v2349
    %2575 = vmatpush1.bf16.msra.mxu0 %v2348
    %2576 = vmatprep.subr.bf16.mxu0 %v2409
    %2577 = vmatpush2.bf16.msra.mxu0 %v2408
    %2578 = vmatprep.subr.bf16.mxu0 %v2405
    %2579 = vmatpush2.bf16.msra.mxu0 %v2404
    %2580 = vmatprep.subr.bf16.mxu0 %v2401
    %2581 = vmatpush2.bf16.msra.mxu0 %v2400
    %2582 = vmatprep.subr.bf16.mxu0 %v2397
    %2583 = vmatpush2.bf16.msra.mxu0 %v2396
    %2584 = vmatprep.subr.bf16.mxu0 %v2393
    %2585 = vmatpush2.bf16.msra.mxu0 %v2392
    %2586 = vmatprep.subr.bf16.mxu0 %v2389
    %2587 = vmatpush2.bf16.msra.mxu0 %v2388
    %2588 = vmatprep.subr.bf16.mxu0 %v2385
    %2589 = vmatpush2.bf16.msra.mxu0 %v2384
    %2590 = vmatprep.subr.bf16.mxu0 %v2381
    %2591 = vmatpush2.bf16.msra.mxu0 %v2380
    %2592 = vmatprep.mubr.bf16.mxu0 %v2475
    %2593 = vmatmul.mubr.bf16.gmra.mxu0 %v2474
    %v2594 = vpop.f32.mrf.mxu0
    %v2595 = vadd.f32 0.0, %v2594
    %v2596 = vpop.f32.mrf.mxu0
    %v2597 = vadd.f32 0.0, %v2596
    %v2598 = vpop.f32.mrf.mxu0
    %v2599 = vpop.f32.mrf.mxu0
    %2600 = vdwg.mxu0
    %2601 = vmatprep.subr.bf16.mxu0 %v2441
    %2602 = vmatpush1.bf16.msra.mxu0 %v2440
    %2603 = vmatprep.subr.bf16.mxu0 %v2437
    %2604 = vmatpush1.bf16.msra.mxu0 %v2436
    %2605 = vmatprep.subr.bf16.mxu0 %v2433
    %2606 = vmatpush1.bf16.msra.mxu0 %v2432
    %2607 = vmatprep.subr.bf16.mxu0 %v2429
    %2608 = vmatpush1.bf16.msra.mxu0 %v2428
    %2609 = vmatprep.subr.bf16.mxu0 %v2425
    %2610 = vmatpush1.bf16.msra.mxu0 %v2424
    %2611 = vmatprep.subr.bf16.mxu0 %v2421
    %2612 = vmatpush1.bf16.msra.mxu0 %v2420
    %2613 = vmatprep.subr.bf16.mxu0 %v2417
    %2614 = vmatpush1.bf16.msra.mxu0 %v2416
    %2615 = vmatprep.subr.bf16.mxu0 %v2413
    %2616 = vmatpush1.bf16.msra.mxu0 %v2412
    %2617 = vmatprep.subr.bf16.mxu0 %v2473
    %2618 = vmatpush2.bf16.msra.mxu0 %v2472
    %2619 = vmatprep.subr.bf16.mxu0 %v2469
    %2620 = vmatpush2.bf16.msra.mxu0 %v2468
    %2621 = vmatprep.subr.bf16.mxu0 %v2465
    %2622 = vmatpush2.bf16.msra.mxu0 %v2464
    %2623 = vmatprep.subr.bf16.mxu0 %v2461
    %2624 = vmatpush2.bf16.msra.mxu0 %v2460
    %2625 = vmatprep.subr.bf16.mxu0 %v2457
    %2626 = vmatpush2.bf16.msra.mxu0 %v2456
    %2627 = vmatprep.subr.bf16.mxu0 %v2453
    %2628 = vmatpush2.bf16.msra.mxu0 %v2452
    %2629 = vmatprep.subr.bf16.mxu0 %v2449
    %2630 = vmatpush2.bf16.msra.mxu0 %v2448
    %2631 = vmatprep.subr.bf16.mxu0 %v2445
    %2632 = vmatpush2.bf16.msra.mxu0 %v2444
    %2633 = vmatprep.mubr.bf16.mxu0 %v2477
    %2634 = vmatmul.mubr.bf16.gmra.mxu0 %v2476
    %v2635 = vpop.f32.mrf.mxu0
    %v2636 = vadd.f32 %v2595, %v2635
    %v2637 = vpop.f32.mrf.mxu0
    %v2638 = vadd.f32 %v2597, %v2637
    %v2639 = vpop.f32.mrf.mxu0
    %v2640 = vpop.f32.mrf.mxu0
    %2641 = vdwg.mxu0
    %v2642 = vld [vmem:[#allocation2 + $0x2c] sm:$0xf]
    %v2644 = vlaneseq
    %v2645 = vshrl.u32 %v2644, 7
    %v2646 = vsub.s32 0, %v2645
    %v2647 = vrot.slane %v2642, %v2646
    %v2648 = vlaneseq
    %v2649 = vshrl.u32 %v2648, 7
    %v2650 = vsub.s32 1, %v2649
    %v2651 = vrot.slane %v2642, %v2650
    %v2652 = vlaneseq
    %v2653 = vshrl.u32 %v2652, 7
    %v2654 = vsub.s32 2, %v2653
    %v2655 = vrot.slane %v2642, %v2654
    %v2656 = vlaneseq
    %v2657 = vshrl.u32 %v2656, 7
    %v2658 = vsub.s32 3, %v2657
    %v2659 = vrot.slane %v2642, %v2658
    %v2664 = vmul.f32 %v2554, %v2647
    %v2665 = vmul.f32 %v2556, %v2651
    %v2666 = vmul.f32 %v2636, %v2655
    %v2667 = vmul.f32 %v2638, %v2659
    %v2668 = vld [vmem:[#allocation2 + $0x30] sm:$0xf]
    %v2670 = vlaneseq
    %v2671 = vshrl.u32 %v2670, 7
    %v2672 = vsub.s32 0, %v2671
    %v2673 = vrot.slane %v2668, %v2672
    %v2674 = vlaneseq
    %v2675 = vshrl.u32 %v2674, 7
    %v2676 = vsub.s32 1, %v2675
    %v2677 = vrot.slane %v2668, %v2676
    %v2678 = vlaneseq
    %v2679 = vshrl.u32 %v2678, 7
    %v2680 = vsub.s32 2, %v2679
    %v2681 = vrot.slane %v2668, %v2680
    %v2682 = vlaneseq
    %v2683 = vshrl.u32 %v2682, 7
    %v2684 = vsub.s32 3, %v2683
    %v2685 = vrot.slane %v2668, %v2684
    %v2690 = vadd.f32 %v2664, %v2673
    %v2691 = vadd.f32 %v2665, %v2677
    %v2692 = vadd.f32 %v2666, %v2681
    %v2693 = vadd.f32 %v2667, %v2685
    %v2694 = vmul.f32 %v2690, 0.01
    %v2695 = vmul.f32 %v2691, 0.01
    %v2696 = vmul.f32 %v2692, 0.01
    %v2697 = vmul.f32 %v2693, 0.01
    %v2698 = vmax.f32 %v2690, %v2694
    %v2699 = vmax.f32 %v2691, %v2695
    %v2700 = vmax.f32 %v2692, %v2696
    %v2701 = vmax.f32 %v2693, %v2697
    %v2702 = vld [vmem:[#allocation6] sm:$0xff]
    %v2703 = vld [vmem:[#allocation6 + $0x8] sm:$0xff]
    %v2704 = vld [vmem:[#allocation6 + $0x10] sm:$0xff]
    %v2705 = vld [vmem:[#allocation6 + $0x18] sm:$0xff]
    %v2706 = vld [vmem:[#allocation6 + $0x20] sm:$0xff]
    %v2707 = vld [vmem:[#allocation6 + $0x28] sm:$0xff]
    %v2708 = vld [vmem:[#allocation6 + $0x30] sm:$0xff]
    %v2709 = vld [vmem:[#allocation6 + $0x38] sm:$0xff]
    %v2710 = vld [vmem:[#allocation6 + $0x40] sm:$0xff]
    %v2711 = vld [vmem:[#allocation6 + $0x48] sm:$0xff]
    %v2712 = vld [vmem:[#allocation6 + $0x50] sm:$0xff]
    %v2713 = vld [vmem:[#allocation6 + $0x58] sm:$0xff]
    %v2714 = vpack.c.bf16 %v2121, %v2121
    %v2715 = vpack.c.bf16 %v2122, %v2122
    %v2716 = vpack.c.bf16 %v2123, %v2123
    %v2717 = vpack.c.bf16 %v2124, %v2124
    %v2718 = vpack.c.bf16 %v2125, %v2125
    %v2719 = vpack.c.bf16 %v2126, %v2126
    %v2720 = vpack.c.bf16 %v2127, %v2127
    %v2721 = vpack.c.bf16 %v2128, %v2128
    %v2722 = vpack.c.bf16 %v2698, %v2698
    %v2723 = vpack.c.bf16 %v2699, %v2699
    %v2724 = vpack.c.bf16 %v2700, %v2700
    %v2725 = vpack.c.bf16 %v2701, %v2701
    %v2726 = vld [vmem:[#allocation2 + $0x34] sm:$0x1]
    %v2728 = vlaneseq
    %v2729 = vshrl.u32 %v2728, 7
    %v2730 = vsub.s32 0, %v2729
    %v2731 = vrot.slane %v2726, %v2730
    %v2745 = vunpack.c.l.b16 %v2702
    %v2746 = vunpack.c.h.b16 %v2702
    %v2747 = vunpack.c.l.b16 %v2703
    %v2748 = vunpack.c.h.b16 %v2703
    %v2749 = vunpack.c.l.b16 %v2704
    %v2750 = vunpack.c.h.b16 %v2704
    %v2751 = vunpack.c.l.b16 %v2705
    %v2752 = vunpack.c.h.b16 %v2705
    %v2753 = vunpack.c.l.b16 %v2706
    %v2754 = vunpack.c.h.b16 %v2706
    %v2755 = vunpack.c.l.b16 %v2707
    %v2756 = vunpack.c.h.b16 %v2707
    %v2757 = vunpack.c.l.b16 %v2708
    %v2758 = vunpack.c.h.b16 %v2708
    %v2759 = vunpack.c.l.b16 %v2709
    %v2760 = vunpack.c.h.b16 %v2709
    %v2761 = vunpack.c.l.b16 %v2710
    %v2762 = vunpack.c.h.b16 %v2710
    %v2763 = vunpack.c.l.b16 %v2711
    %v2764 = vunpack.c.h.b16 %v2711
    %v2765 = vunpack.c.l.b16 %v2712
    %v2766 = vunpack.c.h.b16 %v2712
    %v2767 = vunpack.c.l.b16 %v2713
    %v2768 = vunpack.c.h.b16 %v2713
    %v2769 = vpack.c.b16 %v2757, %v2745
    %v2770 = vpack.c.b16 %v2758, %v2746
    %v2771 = vpack.c.b16 %v2759, %v2747
    %v2772 = vpack.c.b16 %v2760, %v2748
    %v2773 = vpack.c.b16 %v2761, %v2749
    %v2774 = vpack.c.b16 %v2762, %v2750
    %v2775 = vpack.c.b16 %v2763, %v2751
    %v2776 = vpack.c.b16 %v2764, %v2752
    %v2777 = vpack.c.b16 %v2765, %v2753
    %v2778 = vpack.c.b16 %v2766, %v2754
    %v2779 = vpack.c.b16 %v2767, %v2755
    %v2780 = vpack.c.b16 %v2768, %v2756
    %2793 = vmatprep.subr.bf16.mxu0 0
    %2794 = vmatpush1.bf16.xpose.msra.mxu0 0
    %2795 = vmatprep.subr.bf16.mxu0 0
    %2796 = vmatpush1.bf16.xpose.msra.mxu0 0
    %2797 = vmatprep.subr.bf16.mxu0 0
    %2798 = vmatpush1.bf16.xpose.msra.mxu0 0
    %2799 = vmatprep.subr.bf16.mxu0 0
    %2800 = vmatpush1.bf16.xpose.msra.mxu0 0
    %2801 = vmatprep.subr.bf16.mxu0 0
    %2802 = vmatpush1.bf16.xpose.msra.mxu0 0
    %2803 = vmatprep.subr.bf16.mxu0 0
    %2804 = vmatpush1.bf16.xpose.msra.mxu0 0
    %2805 = vmatprep.subr.bf16.mxu0 0
    %2806 = vmatpush1.bf16.xpose.msra.mxu0 0
    %2807 = vmatprep.subr.bf16.mxu0 %v2770
    %2808 = vmatpush1.bf16.xpose.msra.mxu0 %v2769
    %2809 = vmatprep.subr.bf16.mxu0 0
    %2810 = vmatpush2.bf16.xpose.msra.mxu0 0
    %2811 = vmatprep.subr.bf16.mxu0 0
    %2812 = vmatpush2.bf16.xpose.msra.mxu0 0
    %2813 = vmatprep.subr.bf16.mxu0 0
    %2814 = vmatpush2.bf16.xpose.msra.mxu0 0
    %2815 = vmatprep.subr.bf16.mxu0 0
    %2816 = vmatpush2.bf16.xpose.msra.mxu0 0
    %2817 = vmatprep.subr.bf16.mxu0 0
    %2818 = vmatpush2.bf16.xpose.msra.mxu0 0
    %2819 = vmatprep.subr.bf16.mxu0 0
    %2820 = vmatpush2.bf16.xpose.msra.mxu0 0
    %2821 = vmatprep.subr.bf16.mxu0 0
    %2822 = vmatpush2.bf16.xpose.msra.mxu0 0
    %2823 = vmatprep.subr.bf16.mxu0 0
    %2824 = vmatpush2.bf16.xpose.msra.mxu0 0
    %2825 = vmatprep.mubr.bf16.mxu0 %v2715
    %2826 = vmatmul.mubr.bf16.gmra.mxu0 %v2714
    %v2827 = vpop.f32.mrf.mxu0
    %v2828 = vadd.f32 %v2731, %v2827
    %v2829 = vpop.f32.mrf.mxu0
    %v2830 = vpop.f32.mrf.mxu0
    %v2831 = vpop.f32.mrf.mxu0
    %2832 = vdwg.mxu0
    %2833 = vmatprep.subr.bf16.mxu0 0
    %2834 = vmatpush1.bf16.xpose.msra.mxu0 0
    %2835 = vmatprep.subr.bf16.mxu0 0
    %2836 = vmatpush1.bf16.xpose.msra.mxu0 0
    %2837 = vmatprep.subr.bf16.mxu0 0
    %2838 = vmatpush1.bf16.xpose.msra.mxu0 0
    %2839 = vmatprep.subr.bf16.mxu0 0
    %2840 = vmatpush1.bf16.xpose.msra.mxu0 0
    %2841 = vmatprep.subr.bf16.mxu0 0
    %2842 = vmatpush1.bf16.xpose.msra.mxu0 0
    %2843 = vmatprep.subr.bf16.mxu0 0
    %2844 = vmatpush1.bf16.xpose.msra.mxu0 0
    %2845 = vmatprep.subr.bf16.mxu0 0
    %2846 = vmatpush1.bf16.xpose.msra.mxu0 0
    %2847 = vmatprep.subr.bf16.mxu0 %v2772
    %2848 = vmatpush1.bf16.xpose.msra.mxu0 %v2771
    %2849 = vmatprep.subr.bf16.mxu0 0
    %2850 = vmatpush2.bf16.xpose.msra.mxu0 0
    %2851 = vmatprep.subr.bf16.mxu0 0
    %2852 = vmatpush2.bf16.xpose.msra.mxu0 0
    %2853 = vmatprep.subr.bf16.mxu0 0
    %2854 = vmatpush2.bf16.xpose.msra.mxu0 0
    %2855 = vmatprep.subr.bf16.mxu0 0
    %2856 = vmatpush2.bf16.xpose.msra.mxu0 0
    %2857 = vmatprep.subr.bf16.mxu0 0
    %2858 = vmatpush2.bf16.xpose.msra.mxu0 0
    %2859 = vmatprep.subr.bf16.mxu0 0
    %2860 = vmatpush2.bf16.xpose.msra.mxu0 0
    %2861 = vmatprep.subr.bf16.mxu0 0
    %2862 = vmatpush2.bf16.xpose.msra.mxu0 0
    %2863 = vmatprep.subr.bf16.mxu0 0
    %2864 = vmatpush2.bf16.xpose.msra.mxu0 0
    %2865 = vmatprep.mubr.bf16.mxu0 %v2717
    %2866 = vmatmul.mubr.bf16.gmra.mxu0 %v2716
    %v2867 = vpop.f32.mrf.mxu0
    %v2868 = vadd.f32 %v2828, %v2867
    %v2869 = vpop.f32.mrf.mxu0
    %v2870 = vpop.f32.mrf.mxu0
    %v2871 = vpop.f32.mrf.mxu0
    %2872 = vdwg.mxu0
    %2873 = vmatprep.subr.bf16.mxu0 0
    %2874 = vmatpush1.bf16.xpose.msra.mxu0 0
    %2875 = vmatprep.subr.bf16.mxu0 0
    %2876 = vmatpush1.bf16.xpose.msra.mxu0 0
    %2877 = vmatprep.subr.bf16.mxu0 0
    %2878 = vmatpush1.bf16.xpose.msra.mxu0 0
    %2879 = vmatprep.subr.bf16.mxu0 0
    %2880 = vmatpush1.bf16.xpose.msra.mxu0 0
    %2881 = vmatprep.subr.bf16.mxu0 0
    %2882 = vmatpush1.bf16.xpose.msra.mxu0 0
    %2883 = vmatprep.subr.bf16.mxu0 0
    %2884 = vmatpush1.bf16.xpose.msra.mxu0 0
    %2885 = vmatprep.subr.bf16.mxu0 0
    %2886 = vmatpush1.bf16.xpose.msra.mxu0 0
    %2887 = vmatprep.subr.bf16.mxu0 %v2774
    %2888 = vmatpush1.bf16.xpose.msra.mxu0 %v2773
    %2889 = vmatprep.subr.bf16.mxu0 0
    %2890 = vmatpush2.bf16.xpose.msra.mxu0 0
    %2891 = vmatprep.subr.bf16.mxu0 0
    %2892 = vmatpush2.bf16.xpose.msra.mxu0 0
    %2893 = vmatprep.subr.bf16.mxu0 0
    %2894 = vmatpush2.bf16.xpose.msra.mxu0 0
    %2895 = vmatprep.subr.bf16.mxu0 0
    %2896 = vmatpush2.bf16.xpose.msra.mxu0 0
    %2897 = vmatprep.subr.bf16.mxu0 0
    %2898 = vmatpush2.bf16.xpose.msra.mxu0 0
    %2899 = vmatprep.subr.bf16.mxu0 0
    %2900 = vmatpush2.bf16.xpose.msra.mxu0 0
    %2901 = vmatprep.subr.bf16.mxu0 0
    %2902 = vmatpush2.bf16.xpose.msra.mxu0 0
    %2903 = vmatprep.subr.bf16.mxu0 0
    %2904 = vmatpush2.bf16.xpose.msra.mxu0 0
    %2905 = vmatprep.mubr.bf16.mxu0 %v2719
    %2906 = vmatmul.mubr.bf16.gmra.mxu0 %v2718
    %v2907 = vpop.f32.mrf.mxu0
    %v2908 = vadd.f32 %v2868, %v2907
    %v2909 = vpop.f32.mrf.mxu0
    %v2910 = vpop.f32.mrf.mxu0
    %v2911 = vpop.f32.mrf.mxu0
    %2912 = vdwg.mxu0
    %2913 = vmatprep.subr.bf16.mxu0 0
    %2914 = vmatpush1.bf16.xpose.msra.mxu0 0
    %2915 = vmatprep.subr.bf16.mxu0 0
    %2916 = vmatpush1.bf16.xpose.msra.mxu0 0
    %2917 = vmatprep.subr.bf16.mxu0 0
    %2918 = vmatpush1.bf16.xpose.msra.mxu0 0
    %2919 = vmatprep.subr.bf16.mxu0 0
    %2920 = vmatpush1.bf16.xpose.msra.mxu0 0
    %2921 = vmatprep.subr.bf16.mxu0 0
    %2922 = vmatpush1.bf16.xpose.msra.mxu0 0
    %2923 = vmatprep.subr.bf16.mxu0 0
    %2924 = vmatpush1.bf16.xpose.msra.mxu0 0
    %2925 = vmatprep.subr.bf16.mxu0 0
    %2926 = vmatpush1.bf16.xpose.msra.mxu0 0
    %2927 = vmatprep.subr.bf16.mxu0 %v2776
    %2928 = vmatpush1.bf16.xpose.msra.mxu0 %v2775
    %2929 = vmatprep.subr.bf16.mxu0 0
    %2930 = vmatpush2.bf16.xpose.msra.mxu0 0
    %2931 = vmatprep.subr.bf16.mxu0 0
    %2932 = vmatpush2.bf16.xpose.msra.mxu0 0
    %2933 = vmatprep.subr.bf16.mxu0 0
    %2934 = vmatpush2.bf16.xpose.msra.mxu0 0
    %2935 = vmatprep.subr.bf16.mxu0 0
    %2936 = vmatpush2.bf16.xpose.msra.mxu0 0
    %2937 = vmatprep.subr.bf16.mxu0 0
    %2938 = vmatpush2.bf16.xpose.msra.mxu0 0
    %2939 = vmatprep.subr.bf16.mxu0 0
    %2940 = vmatpush2.bf16.xpose.msra.mxu0 0
    %2941 = vmatprep.subr.bf16.mxu0 0
    %2942 = vmatpush2.bf16.xpose.msra.mxu0 0
    %2943 = vmatprep.subr.bf16.mxu0 0
    %2944 = vmatpush2.bf16.xpose.msra.mxu0 0
    %2945 = vmatprep.mubr.bf16.mxu0 %v2721
    %2946 = vmatmul.mubr.bf16.gmra.mxu0 %v2720
    %v2947 = vpop.f32.mrf.mxu0
    %v2948 = vadd.f32 %v2908, %v2947
    %v2949 = vpop.f32.mrf.mxu0
    %v2950 = vpop.f32.mrf.mxu0
    %v2951 = vpop.f32.mrf.mxu0
    %2952 = vdwg.mxu0
    %2953 = vmatprep.subr.bf16.mxu0 0
    %2954 = vmatpush1.bf16.xpose.msra.mxu0 0
    %2955 = vmatprep.subr.bf16.mxu0 0
    %2956 = vmatpush1.bf16.xpose.msra.mxu0 0
    %2957 = vmatprep.subr.bf16.mxu0 0
    %2958 = vmatpush1.bf16.xpose.msra.mxu0 0
    %2959 = vmatprep.subr.bf16.mxu0 0
    %2960 = vmatpush1.bf16.xpose.msra.mxu0 0
    %2961 = vmatprep.subr.bf16.mxu0 0
    %2962 = vmatpush1.bf16.xpose.msra.mxu0 0
    %2963 = vmatprep.subr.bf16.mxu0 0
    %2964 = vmatpush1.bf16.xpose.msra.mxu0 0
    %2965 = vmatprep.subr.bf16.mxu0 0
    %2966 = vmatpush1.bf16.xpose.msra.mxu0 0
    %2967 = vmatprep.subr.bf16.mxu0 %v2778
    %2968 = vmatpush1.bf16.xpose.msra.mxu0 %v2777
    %2969 = vmatprep.subr.bf16.mxu0 0
    %2970 = vmatpush2.bf16.xpose.msra.mxu0 0
    %2971 = vmatprep.subr.bf16.mxu0 0
    %2972 = vmatpush2.bf16.xpose.msra.mxu0 0
    %2973 = vmatprep.subr.bf16.mxu0 0
    %2974 = vmatpush2.bf16.xpose.msra.mxu0 0
    %2975 = vmatprep.subr.bf16.mxu0 0
    %2976 = vmatpush2.bf16.xpose.msra.mxu0 0
    %2977 = vmatprep.subr.bf16.mxu0 0
    %2978 = vmatpush2.bf16.xpose.msra.mxu0 0
    %2979 = vmatprep.subr.bf16.mxu0 0
    %2980 = vmatpush2.bf16.xpose.msra.mxu0 0
    %2981 = vmatprep.subr.bf16.mxu0 0
    %2982 = vmatpush2.bf16.xpose.msra.mxu0 0
    %2983 = vmatprep.subr.bf16.mxu0 0
    %2984 = vmatpush2.bf16.xpose.msra.mxu0 0
    %2985 = vmatprep.mubr.bf16.mxu0 %v2723
    %2986 = vmatmul.mubr.bf16.gmra.mxu0 %v2722
    %v2987 = vpop.f32.mrf.mxu0
    %v2988 = vadd.f32 %v2948, %v2987
    %v2989 = vpop.f32.mrf.mxu0
    %v2990 = vpop.f32.mrf.mxu0
    %v2991 = vpop.f32.mrf.mxu0
    %2992 = vdwg.mxu0
    %2993 = vmatprep.subr.bf16.mxu0 0
    %2994 = vmatpush1.bf16.xpose.msra.mxu0 0
    %2995 = vmatprep.subr.bf16.mxu0 0
    %2996 = vmatpush1.bf16.xpose.msra.mxu0 0
    %2997 = vmatprep.subr.bf16.mxu0 0
    %2998 = vmatpush1.bf16.xpose.msra.mxu0 0
    %2999 = vmatprep.subr.bf16.mxu0 0
    %3000 = vmatpush1.bf16.xpose.msra.mxu0 0
    %3001 = vmatprep.subr.bf16.mxu0 0
    %3002 = vmatpush1.bf16.xpose.msra.mxu0 0
    %3003 = vmatprep.subr.bf16.mxu0 0
    %3004 = vmatpush1.bf16.xpose.msra.mxu0 0
    %3005 = vmatprep.subr.bf16.mxu0 0
    %3006 = vmatpush1.bf16.xpose.msra.mxu0 0
    %3007 = vmatprep.subr.bf16.mxu0 %v2780
    %3008 = vmatpush1.bf16.xpose.msra.mxu0 %v2779
    %3009 = vmatprep.subr.bf16.mxu0 0
    %3010 = vmatpush2.bf16.xpose.msra.mxu0 0
    %3011 = vmatprep.subr.bf16.mxu0 0
    %3012 = vmatpush2.bf16.xpose.msra.mxu0 0
    %3013 = vmatprep.subr.bf16.mxu0 0
    %3014 = vmatpush2.bf16.xpose.msra.mxu0 0
    %3015 = vmatprep.subr.bf16.mxu0 0
    %3016 = vmatpush2.bf16.xpose.msra.mxu0 0
    %3017 = vmatprep.subr.bf16.mxu0 0
    %3018 = vmatpush2.bf16.xpose.msra.mxu0 0
    %3019 = vmatprep.subr.bf16.mxu0 0
    %3020 = vmatpush2.bf16.xpose.msra.mxu0 0
    %3021 = vmatprep.subr.bf16.mxu0 0
    %3022 = vmatpush2.bf16.xpose.msra.mxu0 0
    %3023 = vmatprep.subr.bf16.mxu0 0
    %3024 = vmatpush2.bf16.xpose.msra.mxu0 0
    %3025 = vmatprep.mubr.bf16.mxu0 %v2725
    %3026 = vmatmul.mubr.bf16.gmra.mxu0 %v2724
    %v3027 = vpop.f32.mrf.mxu0
    %v3028 = vadd.f32 %v2988, %v3027
    %v3029 = vpop.f32.mrf.mxu0
    %v3030 = vpop.f32.mrf.mxu0
    %v3031 = vpop.f32.mrf.mxu0
    %3032 = vdwg.mxu0
    %v3033 = vmul.f32 %v3028, 0.01
    %v3034 = vmax.f32 %v3028, %v3033
    %v3035 = vld [vmem:[#allocation2 + $0x35] sm:$0x1]
    %v3037 = vlaneseq
    %v3038 = vshrl.u32 %v3037, 7
    %v3039 = vsub.s32 0, %v3038
    %v3040 = vrot.slane %v3035, %v3039
    %v3042 = vmul.f32 %v3034, %v3040
    %vm3043 = vcmask 130048
    %v3044 = vsel %vm3043, %v3042, 0.0
    %3045 = vadd.xlane.f32.xlu0 %v3044
    %v3046 = vpop.xlane.xlu0 %3045
    %v3047 = vld [vmem:[#allocation2 + $0x36] sm:$0x1]
    %v3049 = vlaneseq
    %v3050 = vshrl.u32 %v3049, 7
    %v3051 = vsub.s32 0, %v3050
    %v3052 = vrot.slane %v3047, %v3051
    %v3054 = vadd.f32 %v3046, %v3052
    %v3055 = vsub.f32 0.0, %v3054
    %v3056 = vmul.f32 %v3055, 1.442695
    %v3057 = vpow.pop %v3056
    %v3058 = vadd.f32 %v3057, 1.0
    %v3059 = vrcp.pop %v3058
    %v3060 = vmul.f32 1.0, %v3059
    %v3061 = vlaneseq
    %v3062 = vand.u32 %v3061, 127
    %vm3063 = vcmp.eq.s32.totalorder %v3062, 11
    %3065 = vset.pattern.permute.xlu0 0
    %3066 = vperm.xlu0 %3065, %v3060
    %v3067 = vpop.permute.xlu0 %3066
    %v3069 = vsel %vm3063, %v3067, %v3034
    %3070 = vst.msk [vmem:[%s8] sm:$0xff] %vm3043, %v3069
    // Predicated region
    $region50: #{fwd.1} parent=1 // pred_check
      _
    $region51: #{fwd.1} parent=1 // pred_check_branch
      %3072 = sbr.rel (0) target = $region53
    $region52: #{fwd.1} parent=1 // pred_region
      _
    $region53: #{fwd.1} parent=1 // pred_fallthru
      _
    // Predicated region
    $region54: #{fwd.1} parent=1 // pred_check
      _
    $region55: #{fwd.1} parent=1 // pred_check_branch
      %3074 = sbr.rel (0) target = $region57
    $region56: #{fwd.1} parent=1 // pred_region
      _
    $region57: #{fwd.1} parent=1 // pred_fallthru
      _
    %3075 = vsyncpa [#allocation3], 1
    %3076 = vsyncpa [#allocation5], 1
    %3077 = vsyncpa [#allocation8], 1

</llo_original>
